<compile_context>
chip_gen: v7x
topology: tpu7x:2x2x1
jax: 0.10.0
libtpu: 0.0.40
codegen_flags: <defaults>
</compile_context>

<pallas_src>
import functools
import math

import jax
import jax.numpy as jnp
from jax.experimental import pallas as pl
from jax.experimental.pallas import tpu as pltpu

_LN_EPS = 1e-5          # PyTorch LayerNorm default
_ROW_TILE_TARGET = 256  # rows per block (token-parallel kernels); v7x-safe
_COL_TILE_TARGET = 512  # Dff chunk for the FFN accumulator loop
_Q_TILE_TARGET = 256    # query rows per attention block


# ------------------------------ tiling helpers ------------------------------ #

def _row_tile(n, target=_ROW_TILE_TARGET):
    """Largest row tile that divides n, is a multiple of 8 and <= target."""
    if n <= target:
        return n
    t = target - (target % 8)
    while t >= 8:
        if n % t == 0:
            return t
        t -= 8
    # TODO(synk): pad + mask instead of falling back to one huge block.
    return n


def _col_tile(n, target=_COL_TILE_TARGET):
    """Largest column tile that divides n, is a multiple of 128 and <= target."""
    if n <= target:
        return n
    t = target - (target % 128)
    while t >= 128:
        if n % t == 0:
            return t
        t -= 128
    return n


def _pick_vmem_limit():
    """~75% of physical VMEM (capped at 100 MiB); conservative fallback."""
    try:
        cap = getattr(pltpu.get_tpu_info(), "vmem_capacity_bytes", None)
        if cap:
            return min(100 * 1024 * 1024, (int(cap) * 3) // 4)
    except Exception:
        pass
    return 48 * 1024 * 1024


_VMEM_LIMIT_BYTES = _pick_vmem_limit()


def _cp(dims):
    return pltpu.CompilerParams(dimension_semantics=dims,
                                vmem_limit_bytes=_VMEM_LIMIT_BYTES)


def _probe_single_buffering():
    """Check pl.Buffered(1) (single-buffered constant blocks) is supported."""
    try:
        def k(x_ref, c_ref, o_ref):
            o_ref[...] = x_ref[...] + c_ref[...]

        out = pl.pallas_call(
            k,
            out_shape=jax.ShapeDtypeStruct((8, 128), jnp.float32),
            grid=(2,),
            in_specs=[pl.BlockSpec((8, 128), lambda i: (0, 0)),
                      pl.BlockSpec((1, 128), lambda i: (0, 0),
                                   pipeline_mode=pl.Buffered(1))],
            out_specs=pl.BlockSpec((8, 128), lambda i: (0, 0)),
        )(jnp.zeros((8, 128), jnp.float32), jnp.ones((1, 128), jnp.float32))
        jax.block_until_ready(out)
        return True
    except Exception:
        return False


_CONST_SPEC_KW = ({"pipeline_mode": pl.Buffered(1)}
                  if _probe_single_buffering() else {})


def _const_spec(shape):
    """BlockSpec for a block whose index never changes (weights / biases)."""
    nd = len(shape)
    return pl.BlockSpec(shape, lambda *_: (0,) * nd, **_CONST_SPEC_KW)


# ----------------------------- Pallas kernels ------------------------------ #

def _layernorm_f32(z, g, b):
    # z is f32 (rows, E); g, b are (1, E)
    mu = jnp.mean(z, axis=-1, keepdims=True)
    var = jnp.mean(jnp.square(z - mu), axis=-1, keepdims=True)
    return (z - mu) * jax.lax.rsqrt(var + _LN_EPS) * g.astype(jnp.float32) \
        + b.astype(jnp.float32)


def _mha_kernel(xq_ref, xkv_ref, wq_ref, bq_ref, wkv_ref, bkv_ref,
                wo_ref, bo_ref, g_ref, be_ref, o_ref, ctx_ref,
                *, nhead, scale):
    """Fully fused MHA block:
         out = LayerNorm(xq + (attention(xq@Wq, xkv@Wk, xkv@Wv)) @ Wo + bo)
    xq_ref:(1,tq,E)  xkv_ref:(1,S,E)  o_ref:(1,tq,E)  ctx_ref:(tq,E) f32.
    """
    xq = xq_ref[0]                      # (tq, E) activation dtype (f32)
    xkv = xkv_ref[0]                    # (S,  E)
    E = xq.shape[-1]
    dh = E // nhead

    # Fused Q and K/V projections (bf16 MXU inputs, f32 accumulation).
    q = (jnp.dot(xq.astype(jnp.bfloat16), wq_ref[...],
                 preferred_element_type=jnp.float32)
         + bq_ref[...].astype(jnp.float32)) * scale
    kv = (jnp.dot(xkv.astype(jnp.bfloat16), wkv_ref[...],
                  preferred_element_type=jnp.float32)
          + bkv_ref[...].astype(jnp.float32))
    q = q.astype(jnp.bfloat16)
    k = kv[:, :E].astype(jnp.bfloat16)
    v = kv[:, E:].astype(jnp.bfloat16)

    # Per-head attention.  Scores via dot_general contracting last dims
    # (no XLU transpose); each head writes straight into the ctx scratch
    # (no concat -> lower vreg pressure).  Softmax math stays in f32.
    for h in range(nhead):              # static, small head count
        lo = h * dh
        s = jax.lax.dot_general(q[:, lo:lo + dh], k[:, lo:lo + dh],
                                (((1,), (1,)), ((), ())),
                                preferred_element_type=jnp.float32)
        s = s - jnp.max(s, axis=-1, keepdims=True)
        p = jnp.exp(s)
        inv = pl.reciprocal(jnp.sum(p, axis=-1, keepdims=True), approx=True)
        ctx_h = jnp.dot(p.astype(jnp.bfloat16), v[:, lo:lo + dh],
                        preferred_element_type=jnp.float32)
        ctx_ref[:, lo:lo + dh] = ctx_h * inv

    # Output projection + residual + LayerNorm fused epilogue (f32 math).
    y = jnp.dot(ctx_ref[...].astype(jnp.bfloat16), wo_ref[...],
                preferred_element_type=jnp.float32) \
        + bo_ref[...].astype(jnp.float32)
    z = xq.astype(jnp.float32) + y
    o_ref[0] = _layernorm_f32(z, g_ref[...], be_ref[...]).astype(o_ref.dtype)


def _ffn_kernel(x_ref, w1_ref, b1_ref, w2_ref, b2_ref, g_ref, be_ref,
                o_ref, acc_ref):
    """out = LayerNorm(x + relu(x@W1+b1)@W2 + b2), Dff tiled on grid axis 1."""
    kk = pl.program_id(1)

    @pl.when(kk == 0)
    def _():
        acc_ref[...] = jnp.zeros_like(acc_ref)

    x = x_ref[...]
    h = jnp.dot(x.astype(jnp.bfloat16), w1_ref[...],
                preferred_element_type=jnp.float32) \
        + b1_ref[...].astype(jnp.float32)
    h = jnp.maximum(h, 0.0)
    acc_ref[...] += jnp.dot(h.astype(jnp.bfloat16), w2_ref[...],
                            preferred_element_type=jnp.float32)

    @pl.when(kk == pl.num_programs(1) - 1)
    def _():
        z = x.astype(jnp.float32) + acc_ref[...] + b2_ref[...].astype(jnp.float32)
        o_ref[...] = _layernorm_f32(z, g_ref[...], be_ref[...]).astype(o_ref.dtype)


def _ln_kernel(x_ref, g_ref, b_ref, o_ref):
    z = x_ref[...].astype(jnp.float32)
    o_ref[...] = _layernorm_f32(z, g_ref[...], b_ref[...]).astype(o_ref.dtype)


# ------------------------------ op wrappers -------------------------------- #

def fused_mha_block(xq, xkv, wq, bq, wkv, bkv, wo, bo, gamma, beta, nhead):
    """LayerNorm(xq + MHA(q=xq, k=v=xkv) @ Wo + bo); xq:(B,T,E) xkv:(B,S,E)."""
    B, T, E = xq.shape
    S = xkv.shape[1]
    scale = 1.0 / math.sqrt(E // nhead)
    tq = _row_tile(T, _Q_TILE_TARGET)
    kern = functools.partial(_mha_kernel, nhead=nhead, scale=scale)
    return pl.pallas_call(
        kern,
        out_shape=jax.ShapeDtypeStruct((B, T, E), xq.dtype),
        grid=(B, T // tq),
        in_specs=[pl.BlockSpec((1, tq, E), lambda b, t: (b, t, 0)),
                  pl.BlockSpec((1, S, E), lambda b, t: (b, 0, 0)),
                  _const_spec((E, E)),       # wq   (bf16)
                  _const_spec((1, E)),       # bq
                  _const_spec((E, 2 * E)),   # wkv  (bf16)
                  _const_spec((1, 2 * E)),   # bkv
                  _const_spec((E, E)),       # wo   (bf16)
                  _const_spec((1, E)),       # bo
                  _const_spec((1, E)),       # gamma
                  _const_spec((1, E))],      # beta
        out_specs=pl.BlockSpec((1, tq, E), lambda b, t: (b, t, 0)),
        scratch_shapes=[pltpu.VMEM((tq, E), jnp.float32)],
        compiler_params=_cp(("parallel", "parallel")),
    )(xq, xkv, wq, bq.reshape(1, E), wkv, bkv.reshape(1, 2 * E),
      wo, bo.reshape(1, E), gamma.reshape(1, E), beta.reshape(1, E))


def ffn_add_ln(x, w1, b1, w2, b2, gamma, beta):
    """LayerNorm(x + relu(x@W1+b1)@W2 + b2), row-tiled, Dff-tiled accumulator."""
    N, E = x.shape
    Dff = w1.shape[1]
    tn = _row_tile(N)
    tdff = _col_tile(Dff)
    return pl.pallas_call(
        _ffn_kernel,
        out_shape=jax.ShapeDtypeStruct((N, E), x.dtype),
        grid=(N // tn, Dff // tdff),
        in_specs=[pl.BlockSpec((tn, E), lambda i, k: (i, 0)),
                  pl.BlockSpec((E, tdff), lambda i, k: (0, k)),   # w1 chunk
                  pl.BlockSpec((1, tdff), lambda i, k: (0, k)),   # b1 chunk
                  pl.BlockSpec((tdff, E), lambda i, k: (k, 0)),   # w2 chunk
                  _const_spec((1, E)),                            # b2
                  _const_spec((1, E)),                            # gamma
                  _const_spec((1, E))],                           # beta
        out_specs=pl.BlockSpec((tn, E), lambda i, k: (i, 0)),
        scratch_shapes=[pltpu.VMEM((tn, E), jnp.float32)],
        compiler_params=_cp(("parallel", "arbitrary")),
    )(x, w1, b1.reshape(1, Dff), w2, b2.reshape(1, E),
      gamma.reshape(1, E), beta.reshape(1, E))


def layernorm(x, gamma, beta):
    """Plain LayerNorm over the last axis, row-tiled (final decoder norm)."""
    N, E = x.shape
    tn = _row_tile(N)
    return pl.pallas_call(
        _ln_kernel,
        out_shape=jax.ShapeDtypeStruct((N, E), x.dtype),
        grid=(N // tn,),
        in_specs=[pl.BlockSpec((tn, E), lambda i: (i, 0)),
                  _const_spec((1, E)), _const_spec((1, E))],
        out_specs=pl.BlockSpec((tn, E), lambda i: (i, 0)),
        compiler_params=_cp(("parallel",)),
    )(x, gamma.reshape(1, E), beta.reshape(1, E))


# ------------------------ transformer decoder model ------------------------ #

def decoder_layer(x, memory, p, nhead):
    """nn.TransformerDecoderLayer forward (post-norm, ReLU, eval mode).

    x: (B, T, E) batch-first; memory: (B, S, E) batch-first.
    """
    B, T, E = x.shape
    sa = p["self_attn"]
    x = fused_mha_block(x, x, sa["wq"], sa["bq"], sa["wkv"], sa["bkv"],
                        sa["wo"], sa["bo"], p["ln1_g"], p["ln1_b"], nhead)
    ca = p["cross_attn"]
    x = fused_mha_block(x, memory, ca["wq"], ca["bq"], ca["wkv"], ca["bkv"],
                        ca["wo"], ca["bo"], p["ln2_g"], p["ln2_b"], nhead)
    x = ffn_add_ln(x.reshape(B * T, E), p["w1"], p["b1"], p["w2"], p["b2"],
                   p["ln3_g"], p["ln3_b"]).reshape(B, T, E)
    return x


def transformer_decoder(tgt, memory, params, nhead):
    """TransformerDecoder.forward with all masks = None.

    tgt: (T, B, E), memory: (S, B, E)  (PyTorch batch_first=False layout).
    Internally batch-first; only two transposes total (entry + exit).
    """
    # TODO(synk): fold these two transposes into the first/last kernels'
    # BlockSpec index_maps to save two HBM passes over the activation slab.
    x = jnp.transpose(tgt, (1, 0, 2))        # (B, T, E)
    mem = jnp.transpose(memory, (1, 0, 2))   # (B, S, E)
    for lp in params["layers"]:
        x = decoder_layer(x, mem, lp, nhead)
    if params.get("final_norm") is not None:
        g, b = params["final_norm"]
        B, T, E = x.shape
        x = layernorm(x.reshape(B * T, E), g, b).reshape(B, T, E)
    return jnp.transpose(x, (1, 0, 2))       # back to (T, B, E)


# ------------------------------ param init --------------------------------- #

def _uw(key, shape, scale=0.1):
    # MXU-side weights stored in bf16; accumulation is f32 inside the kernels.
    return jax.random.uniform(key, shape, jnp.float32, -scale, scale).astype(
        jnp.bfloat16)


def _ub(key, shape, scale=0.1):
    # Biases / LN params stay f32 (added in the f32 epilogues).
    return jax.random.uniform(key, shape, jnp.float32, -scale, scale)


def init_attn_params(key, E):
    ks = jax.random.split(key, 8)
    wk, wv = _uw(ks[2], (E, E)), _uw(ks[4], (E, E))
    bk, bv = _ub(ks[3], (E,)), _ub(ks[5], (E,))
    return {
        "wq": _uw(ks[0], (E, E)), "bq": _ub(ks[1], (E,)),
        "wkv": jnp.concatenate([wk, wv], axis=1),   # (E, 2E) bf16
        "bkv": jnp.concatenate([bk, bv]),           # (2E,)  f32
        "wo": _uw(ks[6], (E, E)), "bo": _ub(ks[7], (E,)),
    }


def init_params(key, num_layers, E, dff, with_final_norm=True):
    layers = []
    for l in range(num_layers):
        lk = jax.random.fold_in(key, l)
        ks = jax.random.split(lk, 6)
        layers.append({
            "self_attn": init_attn_params(ks[0], E),
            "cross_attn": init_attn_params(ks[1], E),
            "w1": _uw(ks[2], (E, dff)), "b1": _ub(ks[3], (dff,)),
            "w2": _uw(ks[4], (dff, E)), "b2": _ub(ks[5], (E,)),
            "ln1_g": jnp.ones((E,), jnp.float32), "ln1_b": jnp.zeros((E,), jnp.float32),
            "ln2_g": jnp.ones((E,), jnp.float32), "ln2_b": jnp.zeros((E,), jnp.float32),
            "ln3_g": jnp.ones((E,), jnp.float32), "ln3_b": jnp.zeros((E,), jnp.float32),
        })
    final_norm = (jnp.ones((E,), jnp.float32),
                  jnp.zeros((E,), jnp.float32)) if with_final_norm else None
    return {"layers": layers, "final_norm": final_norm}


# ---------------------------------- main ------------------------------------ #

if __name__ == "__main__":
    # small shapes: d_model=32, nhead=4, dim_feedforward=64, num_layers=2
    T, S, B, E, NHEAD, DFF, NLAYERS = 8, 10, 2, 32, 4, 64, 2

    key = jax.random.PRNGKey(0)
    k_tgt, k_mem, k_par = jax.random.split(key, 3)

    tgt = jax.random.normal(k_tgt, (T, B, E), jnp.float32)     # (tgt_len, batch, d_model)
    memory = jax.random.normal(k_mem, (S, B, E), jnp.float32)  # (src_len, batch, d_model)
    params = init_params(k_par, NLAYERS, E, DFF, with_final_norm=True)

    fwd = jax.jit(lambda t, m, p: transformer_decoder(t, m, p, NHEAD))
    out = fwd(tgt, memory, params)
    out = jax.block_until_ready(out)

    assert out.shape == (T, B, E)
    assert bool(jnp.all(jnp.isfinite(out)))
    print("KERNEL_OK")
</pallas_src>

<mosaic_0001>
module attributes {stable_mosaic.version = 11 : i64} {
  func.func @k(%arg0: i32, %arg1: memref<8x128xf32, #tpu.memory_space<vmem>>, %arg2: memref<1x128xf32, #tpu.memory_space<vmem>>, %arg3: memref<8x128xf32, #tpu.memory_space<vmem>>) attributes {dimension_semantics = [#tpu.dimension_semantics<arbitrary>], iteration_bounds = array<i64: 2>, scalar_prefetch = 0 : i64, scratch_operands = 0 : i64, tpu.core_type = #tpu.core_type<tc>, window_params = [{pipeline_mode = #tpu.pipeline_mode<synchronous>, transform_indices = @transform_0, window_bounds = array<i64: 8, 128>}, {pipeline_mode = #tpu.pipeline_mode<synchronous>, transform_indices = @transform_1, window_bounds = array<i64: 1, 128>}, {pipeline_mode = #tpu.pipeline_mode<synchronous>, transform_indices = @transform_2, window_bounds = array<i64: 8, 128>}]} {
    %c0 = arith.constant 0 : index
    %c0_0 = arith.constant 0 : index
    %0 = vector.load %arg1[%c0, %c0_0] : memref<8x128xf32, #tpu.memory_space<vmem>>, vector<8x128xf32>
    %c0_1 = arith.constant 0 : index
    %c0_2 = arith.constant 0 : index
    %1 = vector.load %arg2[%c0_1, %c0_2] : memref<1x128xf32, #tpu.memory_space<vmem>>, vector<1x128xf32>
    %2 = vector.broadcast %1 : vector<1x128xf32> to vector<8x128xf32>
    %3 = arith.addf %0, %2 : vector<8x128xf32>
    %c0_3 = arith.constant 0 : index
    %c0_4 = arith.constant 0 : index
    %4 = vector.load %arg3[%c0_3, %c0_4] : memref<8x128xf32, #tpu.memory_space<vmem>>, vector<8x128xf32>
    tpu.vector_store %arg3[%c0_3, %c0_4], %3 {strides = array<i32>} : memref<8x128xf32, #tpu.memory_space<vmem>>, vector<8x128xf32>,
    return
  }
  func.func @transform_0(%arg0: i32) -> (i32, i32) {
    %c0_i32 = arith.constant 0 : i32
    %c0_i32_0 = arith.constant 0 : i32
    %c0_i32_1 = arith.constant 0 : i32
    return %c0_i32, %c0_i32_0 : i32, i32
  }
  func.func @transform_1(%arg0: i32) -> (i32, i32) {
    %c0_i32 = arith.constant 0 : i32
    %c0_i32_0 = arith.constant 0 : i32
    %c0_i32_1 = arith.constant 0 : i32
    return %c0_i32, %c0_i32_0 : i32, i32
  }
  func.func @transform_2(%arg0: i32) -> (i32, i32) {
    %c0_i32 = arith.constant 0 : i32
    %c0_i32_0 = arith.constant 0 : i32
    %c0_i32_1 = arith.constant 0 : i32
    return %c0_i32, %c0_i32_0 : i32, i32
  }
}

module attributes {stable_mosaic.version = 11 : i64} {
  func.func @_mha_kernel(%arg0: i32, %arg1: i32, %arg2: memref<1x8x32xf32, #tpu.memory_space<vmem>>, %arg3: memref<1x10x32xf32, #tpu.memory_space<vmem>>, %arg4: memref<32x32xbf16, #tpu.memory_space<vmem>>, %arg5: memref<1x32xf32, #tpu.memory_space<vmem>>, %arg6: memref<32x64xbf16, #tpu.memory_space<vmem>>, %arg7: memref<1x64xf32, #tpu.memory_space<vmem>>, %arg8: memref<32x32xbf16, #tpu.memory_space<vmem>>, %arg9: memref<1x32xf32, #tpu.memory_space<vmem>>, %arg10: memref<1x32xf32, #tpu.memory_space<vmem>>, %arg11: memref<1x32xf32, #tpu.memory_space<vmem>>, %arg12: memref<1x8x32xf32, #tpu.memory_space<vmem>>, %arg13: memref<8x32xf32, #tpu.memory_space<vmem>>) attributes {dimension_semantics = [#tpu.dimension_semantics<parallel>, #tpu.dimension_semantics<parallel>], iteration_bounds = array<i64: 2, 1>, scalar_prefetch = 0 : i64, scratch_operands = 1 : i64, tpu.core_type = #tpu.core_type<tc>, window_params = [{transform_indices = @transform_0, window_bounds = array<i64: 1, 8, 32>}, {transform_indices = @transform_1, window_bounds = array<i64: 1, 10, 32>}, {pipeline_mode = #tpu.pipeline_mode<synchronous>, transform_indices = @transform_2, window_bounds = array<i64: 32, 32>}, {pipeline_mode = #tpu.pipeline_mode<synchronous>, transform_indices = @transform_3, window_bounds = array<i64: 1, 32>}, {pipeline_mode = #tpu.pipeline_mode<synchronous>, transform_indices = @transform_4, window_bounds = array<i64: 32, 64>}, {pipeline_mode = #tpu.pipeline_mode<synchronous>, transform_indices = @transform_5, window_bounds = array<i64: 1, 64>}, {pipeline_mode = #tpu.pipeline_mode<synchronous>, transform_indices = @transform_6, window_bounds = array<i64: 32, 32>}, {pipeline_mode = #tpu.pipeline_mode<synchronous>, transform_indices = @transform_7, window_bounds = array<i64: 1, 32>}, {pipeline_mode = #tpu.pipeline_mode<synchronous>, transform_indices = @transform_8, window_bounds = array<i64: 1, 32>}, {pipeline_mode = #tpu.pipeline_mode<synchronous>, transform_indices = @transform_9, window_bounds = array<i64: 1, 32>}, {transform_indices = @transform_10, window_bounds = array<i64: 1, 8, 32>}]} {
    %c0 = arith.constant 0 : index
    %c0_0 = arith.constant 0 : index
    %c0_1 = arith.constant 0 : index
    %0 = vector.load %arg2[%c0, %c0_0, %c0_1] : memref<1x8x32xf32, #tpu.memory_space<vmem>>, vector<1x8x32xf32>
    %1 = vector.shape_cast %0 : vector<1x8x32xf32> to vector<8x32xf32>
    %c0_2 = arith.constant 0 : index
    %c0_3 = arith.constant 0 : index
    %c0_4 = arith.constant 0 : index
    %2 = vector.load %arg3[%c0_2, %c0_3, %c0_4] : memref<1x10x32xf32, #tpu.memory_space<vmem>>, vector<1x10x32xf32>
    %3 = vector.shape_cast %2 : vector<1x10x32xf32> to vector<10x32xf32>
    %4 = arith.truncf %1 : vector<8x32xf32> to vector<8x32xbf16>
    %c0_5 = arith.constant 0 : index
    %c0_6 = arith.constant 0 : index
    %5 = vector.load %arg4[%c0_5, %c0_6] : memref<32x32xbf16, #tpu.memory_space<vmem>>, vector<32x32xbf16>
    %cst = arith.constant dense<0.000000e+00> : vector<8x32xf32>
    %6 = tpu.matmul %4, %5, %cst {dimension_numbers = #tpu.dot_dimension_numbers<[1], [0], [0], [1], [0, 0, 1, 1], [], []>} : vector<8x32xbf16>, vector<32x32xbf16>, vector<8x32xf32> -> vector<8x32xf32>
    %c0_7 = arith.constant 0 : index
    %c0_8 = arith.constant 0 : index
    %7 = vector.load %arg5[%c0_7, %c0_8] : memref<1x32xf32, #tpu.memory_space<vmem>>, vector<1x32xf32>
    %8 = vector.broadcast %7 : vector<1x32xf32> to vector<8x32xf32>
    %9 = arith.addf %6, %8 : vector<8x32xf32>
    %cst_9 = arith.constant 0.353553385 : f32
    %10 = vector.broadcast %cst_9 : f32 to vector<8x32xf32>
    %11 = arith.mulf %9, %10 : vector<8x32xf32>
    %12 = arith.truncf %3 : vector<10x32xf32> to vector<10x32xbf16>
    %c0_10 = arith.constant 0 : index
    %c0_11 = arith.constant 0 : index
    %13 = vector.load %arg6[%c0_10, %c0_11] : memref<32x64xbf16, #tpu.memory_space<vmem>>, vector<32x64xbf16>
    %cst_12 = arith.constant dense<0.000000e+00> : vector<10x64xf32>
    %14 = tpu.matmul %12, %13, %cst_12 {dimension_numbers = #tpu.dot_dimension_numbers<[1], [0], [0], [1], [0, 0, 1, 1], [], []>} : vector<10x32xbf16>, vector<32x64xbf16>, vector<10x64xf32> -> vector<10x64xf32>
    %c0_13 = arith.constant 0 : index
    %c0_14 = arith.constant 0 : index
    %15 = vector.load %arg7[%c0_13, %c0_14] : memref<1x64xf32, #tpu.memory_space<vmem>>, vector<1x64xf32>
    %16 = vector.broadcast %15 : vector<1x64xf32> to vector<10x64xf32>
    %17 = arith.addf %14, %16 : vector<10x64xf32>
    %18 = arith.truncf %11 : vector<8x32xf32> to vector<8x32xbf16>
    %19 = vector.extract_strided_slice %17 {offsets = [0, 0], sizes = [10, 32], strides = [1, 1]} : vector<10x64xf32> to vector<10x32xf32>
    %20 = arith.truncf %19 : vector<10x32xf32> to vector<10x32xbf16>
    %21 = vector.extract_strided_slice %17 {offsets = [0, 32], sizes = [10, 32], strides = [1, 1]} : vector<10x64xf32> to vector<10x32xf32>
    %22 = arith.truncf %21 : vector<10x32xf32> to vector<10x32xbf16>
    %23 = vector.extract_strided_slice %18 {offsets = [0, 0], sizes = [8, 8], strides = [1, 1]} : vector<8x32xbf16> to vector<8x8xbf16>
    %24 = vector.extract_strided_slice %20 {offsets = [0, 0], sizes = [10, 8], strides = [1, 1]} : vector<10x32xbf16> to vector<10x8xbf16>
    %cst_15 = arith.constant dense<0.000000e+00> : vector<8x10xf32>
    %25 = tpu.matmul %23, %24, %cst_15 {dimension_numbers = #tpu.dot_dimension_numbers<[1], [1], [0], [0], [0, 0, 1, 0], [], []>} : vector<8x8xbf16>, vector<10x8xbf16>, vector<8x10xf32> -> vector<8x10xf32>
    %cst_16 = arith.constant dense<0xFF800000> : vector<8xf32>
    %26 = vector.multi_reduction <maximumf>, %25, %cst_16 [1] : vector<8x10xf32> to vector<8xf32>
    %27 = vector.shape_cast %26 : vector<8xf32> to vector<8x1xf32>
    %28 = vector.broadcast %27 : vector<8x1xf32> to vector<8x10xf32>
    %29 = arith.subf %25, %28 : vector<8x10xf32>
    %30 = math.exp %29 : vector<8x10xf32>
    %cst_17 = arith.constant dense<0.000000e+00> : vector<8xf32>
    %31 = vector.multi_reduction <add>, %30, %cst_17 [1] : vector<8x10xf32> to vector<8xf32>
    %32 = vector.shape_cast %31 : vector<8xf32> to vector<8x1xf32>
    %33 = tpu.reciprocal %32 {approx = true} : vector<8x1xf32> -> vector<8x1xf32>
    %34 = arith.truncf %30 : vector<8x10xf32> to vector<8x10xbf16>
    %35 = vector.extract_strided_slice %22 {offsets = [0, 0], sizes = [10, 8], strides = [1, 1]} : vector<10x32xbf16> to vector<10x8xbf16>
    %cst_18 = arith.constant dense<0.000000e+00> : vector<8x8xf32>
    %36 = tpu.matmul %34, %35, %cst_18 {dimension_numbers = #tpu.dot_dimension_numbers<[1], [0], [0], [1], [0, 0, 1, 1], [], []>} : vector<8x10xbf16>, vector<10x8xbf16>, vector<8x8xf32> -> vector<8x8xf32>
    %37 = vector.broadcast %33 : vector<8x1xf32> to vector<8x8xf32>
    %38 = arith.mulf %36, %37 : vector<8x8xf32>
    %c0_19 = arith.constant 0 : index
    %c0_20 = arith.constant 0 : index
    %39 = vector.load %arg13[%c0_19, %c0_20] : memref<8x32xf32, #tpu.memory_space<vmem>>, vector<8x8xf32>
    tpu.vector_store %arg13[%c0_19, %c0_20], %38 {strides = array<i32>} : memref<8x32xf32, #tpu.memory_space<vmem>>, vector<8x8xf32>,
    %40 = vector.extract_strided_slice %18 {offsets = [0, 8], sizes = [8, 8], strides = [1, 1]} : vector<8x32xbf16> to vector<8x8xbf16>
    %41 = vector.extract_strided_slice %20 {offsets = [0, 8], sizes = [10, 8], strides = [1, 1]} : vector<10x32xbf16> to vector<10x8xbf16>
    %cst_21 = arith.constant dense<0.000000e+00> : vector<8x10xf32>
    %42 = tpu.matmul %40, %41, %cst_21 {dimension_numbers = #tpu.dot_dimension_numbers<[1], [1], [0], [0], [0, 0, 1, 0], [], []>} : vector<8x8xbf16>, vector<10x8xbf16>, vector<8x10xf32> -> vector<8x10xf32>
    %cst_22 = arith.constant dense<0xFF800000> : vector<8xf32>
    %43 = vector.multi_reduction <maximumf>, %42, %cst_22 [1] : vector<8x10xf32> to vector<8xf32>
    %44 = vector.shape_cast %43 : vector<8xf32> to vector<8x1xf32>
    %45 = vector.broadcast %44 : vector<8x1xf32> to vector<8x10xf32>
    %46 = arith.subf %42, %45 : vector<8x10xf32>
    %47 = math.exp %46 : vector<8x10xf32>
    %cst_23 = arith.constant dense<0.000000e+00> : vector<8xf32>
    %48 = vector.multi_reduction <add>, %47, %cst_23 [1] : vector<8x10xf32> to vector<8xf32>
    %49 = vector.shape_cast %48 : vector<8xf32> to vector<8x1xf32>
    %50 = tpu.reciprocal %49 {approx = true} : vector<8x1xf32> -> vector<8x1xf32>
    %51 = arith.truncf %47 : vector<8x10xf32> to vector<8x10xbf16>
    %52 = vector.extract_strided_slice %22 {offsets = [0, 8], sizes = [10, 8], strides = [1, 1]} : vector<10x32xbf16> to vector<10x8xbf16>
    %cst_24 = arith.constant dense<0.000000e+00> : vector<8x8xf32>
    %53 = tpu.matmul %51, %52, %cst_24 {dimension_numbers = #tpu.dot_dimension_numbers<[1], [0], [0], [1], [0, 0, 1, 1], [], []>} : vector<8x10xbf16>, vector<10x8xbf16>, vector<8x8xf32> -> vector<8x8xf32>
    %54 = vector.broadcast %50 : vector<8x1xf32> to vector<8x8xf32>
    %55 = arith.mulf %53, %54 : vector<8x8xf32>
    %c0_25 = arith.constant 0 : index
    %c8 = arith.constant 8 : index
    %56 = vector.load %arg13[%c0_25, %c8] : memref<8x32xf32, #tpu.memory_space<vmem>>, vector<8x8xf32>
    tpu.vector_store %arg13[%c0_25, %c8], %55 {strides = array<i32>} : memref<8x32xf32, #tpu.memory_space<vmem>>, vector<8x8xf32>,
    %57 = vector.extract_strided_slice %18 {offsets = [0, 16], sizes = [8, 8], strides = [1, 1]} : vector<8x32xbf16> to vector<8x8xbf16>
    %58 = vector.extract_strided_slice %20 {offsets = [0, 16], sizes = [10, 8], strides = [1, 1]} : vector<10x32xbf16> to vector<10x8xbf16>
    %cst_26 = arith.constant dense<0.000000e+00> : vector<8x10xf32>
    %59 = tpu.matmul %57, %58, %cst_26 {dimension_numbers = #tpu.dot_dimension_numbers<[1], [1], [0], [0], [0, 0, 1, 0], [], []>} : vector<8x8xbf16>, vector<10x8xbf16>, vector<8x10xf32> -> vector<8x10xf32>
    %cst_27 = arith.constant dense<0xFF800000> : vector<8xf32>
    %60 = vector.multi_reduction <maximumf>, %59, %cst_27 [1] : vector<8x10xf32> to vector<8xf32>
    %61 = vector.shape_cast %60 : vector<8xf32> to vector<8x1xf32>
    %62 = vector.broadcast %61 : vector<8x1xf32> to vector<8x10xf32>
    %63 = arith.subf %59, %62 : vector<8x10xf32>
    %64 = math.exp %63 : vector<8x10xf32>
    %cst_28 = arith.constant dense<0.000000e+00> : vector<8xf32>
    %65 = vector.multi_reduction <add>, %64, %cst_28 [1] : vector<8x10xf32> to vector<8xf32>
    %66 = vector.shape_cast %65 : vector<8xf32> to vector<8x1xf32>
    %67 = tpu.reciprocal %66 {approx = true} : vector<8x1xf32> -> vector<8x1xf32>
    %68 = arith.truncf %64 : vector<8x10xf32> to vector<8x10xbf16>
    %69 = vector.extract_strided_slice %22 {offsets = [0, 16], sizes = [10, 8], strides = [1, 1]} : vector<10x32xbf16> to vector<10x8xbf16>
    %cst_29 = arith.constant dense<0.000000e+00> : vector<8x8xf32>
    %70 = tpu.matmul %68, %69, %cst_29 {dimension_numbers = #tpu.dot_dimension_numbers<[1], [0], [0], [1], [0, 0, 1, 1], [], []>} : vector<8x10xbf16>, vector<10x8xbf16>, vector<8x8xf32> -> vector<8x8xf32>
    %71 = vector.broadcast %67 : vector<8x1xf32> to vector<8x8xf32>
    %72 = arith.mulf %70, %71 : vector<8x8xf32>
    %c0_30 = arith.constant 0 : index
    %c16 = arith.constant 16 : index
    %73 = vector.load %arg13[%c0_30, %c16] : memref<8x32xf32, #tpu.memory_space<vmem>>, vector<8x8xf32>
    tpu.vector_store %arg13[%c0_30, %c16], %72 {strides = array<i32>} : memref<8x32xf32, #tpu.memory_space<vmem>>, vector<8x8xf32>,
    %74 = vector.extract_strided_slice %18 {offsets = [0, 24], sizes = [8, 8], strides = [1, 1]} : vector<8x32xbf16> to vector<8x8xbf16>
    %75 = vector.extract_strided_slice %20 {offsets = [0, 24], sizes = [10, 8], strides = [1, 1]} : vector<10x32xbf16> to vector<10x8xbf16>
    %cst_31 = arith.constant dense<0.000000e+00> : vector<8x10xf32>
    %76 = tpu.matmul %74, %75, %cst_31 {dimension_numbers = #tpu.dot_dimension_numbers<[1], [1], [0], [0], [0, 0, 1, 0], [], []>} : vector<8x8xbf16>, vector<10x8xbf16>, vector<8x10xf32> -> vector<8x10xf32>
    %cst_32 = arith.constant dense<0xFF800000> : vector<8xf32>
    %77 = vector.multi_reduction <maximumf>, %76, %cst_32 [1] : vector<8x10xf32> to vector<8xf32>
    %78 = vector.shape_cast %77 : vector<8xf32> to vector<8x1xf32>
    %79 = vector.broadcast %78 : vector<8x1xf32> to vector<8x10xf32>
    %80 = arith.subf %76, %79 : vector<8x10xf32>
    %81 = math.exp %80 : vector<8x10xf32>
    %cst_33 = arith.constant dense<0.000000e+00> : vector<8xf32>
    %82 = vector.multi_reduction <add>, %81, %cst_33 [1] : vector<8x10xf32> to vector<8xf32>
    %83 = vector.shape_cast %82 : vector<8xf32> to vector<8x1xf32>
    %84 = tpu.reciprocal %83 {approx = true} : vector<8x1xf32> -> vector<8x1xf32>
    %85 = arith.truncf %81 : vector<8x10xf32> to vector<8x10xbf16>
    %86 = vector.extract_strided_slice %22 {offsets = [0, 24], sizes = [10, 8], strides = [1, 1]} : vector<10x32xbf16> to vector<10x8xbf16>
    %cst_34 = arith.constant dense<0.000000e+00> : vector<8x8xf32>
    %87 = tpu.matmul %85, %86, %cst_34 {dimension_numbers = #tpu.dot_dimension_numbers<[1], [0], [0], [1], [0, 0, 1, 1], [], []>} : vector<8x10xbf16>, vector<10x8xbf16>, vector<8x8xf32> -> vector<8x8xf32>
    %88 = vector.broadcast %84 : vector<8x1xf32> to vector<8x8xf32>
    %89 = arith.mulf %87, %88 : vector<8x8xf32>
    %c0_35 = arith.constant 0 : index
    %c24 = arith.constant 24 : index
    %90 = vector.load %arg13[%c0_35, %c24] : memref<8x32xf32, #tpu.memory_space<vmem>>, vector<8x8xf32>
    tpu.vector_store %arg13[%c0_35, %c24], %89 {strides = array<i32>} : memref<8x32xf32, #tpu.memory_space<vmem>>, vector<8x8xf32>,
    %c0_36 = arith.constant 0 : index
    %c0_37 = arith.constant 0 : index
    %91 = vector.load %arg13[%c0_36, %c0_37] : memref<8x32xf32, #tpu.memory_space<vmem>>, vector<8x32xf32>
    %92 = arith.truncf %91 : vector<8x32xf32> to vector<8x32xbf16>
    %c0_38 = arith.constant 0 : index
    %c0_39 = arith.constant 0 : index
    %93 = vector.load %arg8[%c0_38, %c0_39] : memref<32x32xbf16, #tpu.memory_space<vmem>>, vector<32x32xbf16>
    %cst_40 = arith.constant dense<0.000000e+00> : vector<8x32xf32>
    %94 = tpu.matmul %92, %93, %cst_40 {dimension_numbers = #tpu.dot_dimension_numbers<[1], [0], [0], [1], [0, 0, 1, 1], [], []>} : vector<8x32xbf16>, vector<32x32xbf16>, vector<8x32xf32> -> vector<8x32xf32>
    %c0_41 = arith.constant 0 : index
    %c0_42 = arith.constant 0 : index
    %95 = vector.load %arg9[%c0_41, %c0_42] : memref<1x32xf32, #tpu.memory_space<vmem>>, vector<1x32xf32>
    %96 = vector.broadcast %95 : vector<1x32xf32> to vector<8x32xf32>
    %97 = arith.addf %94, %96 : vector<8x32xf32>
    %98 = arith.addf %1, %97 : vector<8x32xf32>
    %c0_43 = arith.constant 0 : index
    %c0_44 = arith.constant 0 : index
    %99 = vector.load %arg10[%c0_43, %c0_44] : memref<1x32xf32, #tpu.memory_space<vmem>>, vector<1x32xf32>
    %c0_45 = arith.constant 0 : index
    %c0_46 = arith.constant 0 : index
    %100 = vector.load %arg11[%c0_45, %c0_46] : memref<1x32xf32, #tpu.memory_space<vmem>>, vector<1x32xf32>
    %cst_47 = arith.constant dense<0.000000e+00> : vector<8xf32>
    %101 = vector.multi_reduction <add>, %98, %cst_47 [1] : vector<8x32xf32> to vector<8xf32>
    %102 = vector.shape_cast %101 : vector<8xf32> to vector<8x1xf32>
    %cst_48 = arith.constant 3.200000e+01 : f32
    %103 = vector.broadcast %cst_48 : f32 to vector<8x1xf32>
    %104 = arith.divf %102, %103 : vector<8x1xf32>
    %105 = vector.broadcast %104 : vector<8x1xf32> to vector<8x32xf32>
    %106 = arith.subf %98, %105 : vector<8x32xf32>
    %107 = arith.mulf %106, %106 : vector<8x32xf32>
    %cst_49 = arith.constant dense<0.000000e+00> : vector<8xf32>
    %108 = vector.multi_reduction <add>, %107, %cst_49 [1] : vector<8x32xf32> to vector<8xf32>
    %109 = vector.shape_cast %108 : vector<8xf32> to vector<8x1xf32>
    %cst_50 = arith.constant 3.200000e+01 : f32
    %110 = vector.broadcast %cst_50 : f32 to vector<8x1xf32>
    %111 = arith.divf %109, %110 : vector<8x1xf32>
    %112 = vector.broadcast %104 : vector<8x1xf32> to vector<8x32xf32>
    %113 = arith.subf %98, %112 : vector<8x32xf32>
    %cst_51 = arith.constant 9.99999974E-6 : f32
    %114 = vector.broadcast %cst_51 : f32 to vector<8x1xf32>
    %115 = arith.addf %111, %114 : vector<8x1xf32>
    %116 = math.rsqrt %115 : vector<8x1xf32>
    %117 = vector.broadcast %116 : vector<8x1xf32> to vector<8x32xf32>
    %118 = arith.mulf %113, %117 : vector<8x32xf32>
    %119 = vector.broadcast %99 : vector<1x32xf32> to vector<8x32xf32>
    %120 = arith.mulf %118, %119 : vector<8x32xf32>
    %121 = vector.broadcast %100 : vector<1x32xf32> to vector<8x32xf32>
    %122 = arith.addf %120, %121 : vector<8x32xf32>
    %c0_52 = arith.constant 0 : index
    %c0_53 = arith.constant 0 : index
    %c0_54 = arith.constant 0 : index
    %123 = vector.load %arg12[%c0_52, %c0_53, %c0_54] : memref<1x8x32xf32, #tpu.memory_space<vmem>>, vector<1x8x32xf32>
    %124 = vector.shape_cast %123 : vector<1x8x32xf32> to vector<8x32xf32>
    %125 = vector.shape_cast %122 : vector<8x32xf32> to vector<1x8x32xf32>
    tpu.vector_store %arg12[%c0_52, %c0_53, %c0_54], %125 {strides = array<i32>} : memref<1x8x32xf32, #tpu.memory_space<vmem>>, vector<1x8x32xf32>,
    return
  }
  func.func @transform_0(%arg0: i32, %arg1: i32) -> (i32, i32, i32) {
    %c0_i32 = arith.constant 0 : i32
    %c0_i32_0 = arith.constant 0 : i32
    return %arg0, %arg1, %c0_i32 : i32, i32, i32
  }
  func.func @transform_1(%arg0: i32, %arg1: i32) -> (i32, i32, i32) {
    %c0_i32 = arith.constant 0 : i32
    %c0_i32_0 = arith.constant 0 : i32
    %c0_i32_1 = arith.constant 0 : i32
    return %arg0, %c0_i32, %c0_i32_0 : i32, i32, i32
  }
  func.func @transform_2(%arg0: i32, %arg1: i32) -> (i32, i32) {
    %c0_i32 = arith.constant 0 : i32
    %c0_i32_0 = arith.constant 0 : i32
    %c0_i32_1 = arith.constant 0 : i32
    return %c0_i32, %c0_i32_0 : i32, i32
  }
  func.func @transform_3(%arg0: i32, %arg1: i32) -> (i32, i32) {
    %c0_i32 = arith.constant 0 : i32
    %c0_i32_0 = arith.constant 0 : i32
    %c0_i32_1 = arith.constant 0 : i32
    return %c0_i32, %c0_i32_0 : i32, i32
  }
  func.func @transform_4(%arg0: i32, %arg1: i32) -> (i32, i32) {
    %c0_i32 = arith.constant 0 : i32
    %c0_i32_0 = arith.constant 0 : i32
    %c0_i32_1 = arith.constant 0 : i32
    return %c0_i32, %c0_i32_0 : i32, i32
  }
  func.func @transform_5(%arg0: i32, %arg1: i32) -> (i32, i32) {
    %c0_i32 = arith.constant 0 : i32
    %c0_i32_0 = arith.constant 0 : i32
    %c0_i32_1 = arith.constant 0 : i32
    return %c0_i32, %c0_i32_0 : i32, i32
  }
  func.func @transform_6(%arg0: i32, %arg1: i32) -> (i32, i32) {
    %c0_i32 = arith.constant 0 : i32
    %c0_i32_0 = arith.constant 0 : i32
    %c0_i32_1 = arith.constant 0 : i32
    return %c0_i32, %c0_i32_0 : i32, i32
  }
  func.func @transform_7(%arg0: i32, %arg1: i32) -> (i32, i32) {
    %c0_i32 = arith.constant 0 : i32
    %c0_i32_0 = arith.constant 0 : i32
    %c0_i32_1 = arith.constant 0 : i32
    return %c0_i32, %c0_i32_0 : i32, i32
  }
  func.func @transform_8(%arg0: i32, %arg1: i32) -> (i32, i32) {
    %c0_i32 = arith.constant 0 : i32
    %c0_i32_0 = arith.constant 0 : i32
    %c0_i32_1 = arith.constant 0 : i32
    return %c0_i32, %c0_i32_0 : i32, i32
  }
  func.func @transform_9(%arg0: i32, %arg1: i32) -> (i32, i32) {
    %c0_i32 = arith.constant 0 : i32
    %c0_i32_0 = arith.constant 0 : i32
    %c0_i32_1 = arith.constant 0 : i32
    return %c0_i32, %c0_i32_0 : i32, i32
  }
  func.func @transform_10(%arg0: i32, %arg1: i32) -> (i32, i32, i32) {
    %c0_i32 = arith.constant 0 : i32
    %c0_i32_0 = arith.constant 0 : i32
    return %arg0, %arg1, %c0_i32 : i32, i32, i32
  }
}

module attributes {stable_mosaic.version = 11 : i64} {
  func.func @_mha_kernel(%arg0: i32, %arg1: i32, %arg2: memref<1x8x32xf32, #tpu.memory_space<vmem>>, %arg3: memref<1x8x32xf32, #tpu.memory_space<vmem>>, %arg4: memref<32x32xbf16, #tpu.memory_space<vmem>>, %arg5: memref<1x32xf32, #tpu.memory_space<vmem>>, %arg6: memref<32x64xbf16, #tpu.memory_space<vmem>>, %arg7: memref<1x64xf32, #tpu.memory_space<vmem>>, %arg8: memref<32x32xbf16, #tpu.memory_space<vmem>>, %arg9: memref<1x32xf32, #tpu.memory_space<vmem>>, %arg10: memref<1x32xf32, #tpu.memory_space<vmem>>, %arg11: memref<1x32xf32, #tpu.memory_space<vmem>>, %arg12: memref<1x8x32xf32, #tpu.memory_space<vmem>>, %arg13: memref<8x32xf32, #tpu.memory_space<vmem>>) attributes {dimension_semantics = [#tpu.dimension_semantics<parallel>, #tpu.dimension_semantics<parallel>], iteration_bounds = array<i64: 2, 1>, scalar_prefetch = 0 : i64, scratch_operands = 1 : i64, tpu.core_type = #tpu.core_type<tc>, window_params = [{transform_indices = @transform_0, window_bounds = array<i64: 1, 8, 32>}, {transform_indices = @transform_1, window_bounds = array<i64: 1, 8, 32>}, {pipeline_mode = #tpu.pipeline_mode<synchronous>, transform_indices = @transform_2, window_bounds = array<i64: 32, 32>}, {pipeline_mode = #tpu.pipeline_mode<synchronous>, transform_indices = @transform_3, window_bounds = array<i64: 1, 32>}, {pipeline_mode = #tpu.pipeline_mode<synchronous>, transform_indices = @transform_4, window_bounds = array<i64: 32, 64>}, {pipeline_mode = #tpu.pipeline_mode<synchronous>, transform_indices = @transform_5, window_bounds = array<i64: 1, 64>}, {pipeline_mode = #tpu.pipeline_mode<synchronous>, transform_indices = @transform_6, window_bounds = array<i64: 32, 32>}, {pipeline_mode = #tpu.pipeline_mode<synchronous>, transform_indices = @transform_7, window_bounds = array<i64: 1, 32>}, {pipeline_mode = #tpu.pipeline_mode<synchronous>, transform_indices = @transform_8, window_bounds = array<i64: 1, 32>}, {pipeline_mode = #tpu.pipeline_mode<synchronous>, transform_indices = @transform_9, window_bounds = array<i64: 1, 32>}, {transform_indices = @transform_10, window_bounds = array<i64: 1, 8, 32>}]} {
    %c0 = arith.constant 0 : index
    %c0_0 = arith.constant 0 : index
    %c0_1 = arith.constant 0 : index
    %0 = vector.load %arg2[%c0, %c0_0, %c0_1] : memref<1x8x32xf32, #tpu.memory_space<vmem>>, vector<1x8x32xf32>
    %1 = vector.shape_cast %0 : vector<1x8x32xf32> to vector<8x32xf32>
    %c0_2 = arith.constant 0 : index
    %c0_3 = arith.constant 0 : index
    %c0_4 = arith.constant 0 : index
    %2 = vector.load %arg3[%c0_2, %c0_3, %c0_4] : memref<1x8x32xf32, #tpu.memory_space<vmem>>, vector<1x8x32xf32>
    %3 = vector.shape_cast %2 : vector<1x8x32xf32> to vector<8x32xf32>
    %4 = arith.truncf %1 : vector<8x32xf32> to vector<8x32xbf16>
    %c0_5 = arith.constant 0 : index
    %c0_6 = arith.constant 0 : index
    %5 = vector.load %arg4[%c0_5, %c0_6] : memref<32x32xbf16, #tpu.memory_space<vmem>>, vector<32x32xbf16>
    %cst = arith.constant dense<0.000000e+00> : vector<8x32xf32>
    %6 = tpu.matmul %4, %5, %cst {dimension_numbers = #tpu.dot_dimension_numbers<[1], [0], [0], [1], [0, 0, 1, 1], [], []>} : vector<8x32xbf16>, vector<32x32xbf16>, vector<8x32xf32> -> vector<8x32xf32>
    %c0_7 = arith.constant 0 : index
    %c0_8 = arith.constant 0 : index
    %7 = vector.load %arg5[%c0_7, %c0_8] : memref<1x32xf32, #tpu.memory_space<vmem>>, vector<1x32xf32>
    %8 = vector.broadcast %7 : vector<1x32xf32> to vector<8x32xf32>
    %9 = arith.addf %6, %8 : vector<8x32xf32>
    %cst_9 = arith.constant 0.353553385 : f32
    %10 = vector.broadcast %cst_9 : f32 to vector<8x32xf32>
    %11 = arith.mulf %9, %10 : vector<8x32xf32>
    %12 = arith.truncf %3 : vector<8x32xf32> to vector<8x32xbf16>
    %c0_10 = arith.constant 0 : index
    %c0_11 = arith.constant 0 : index
    %13 = vector.load %arg6[%c0_10, %c0_11] : memref<32x64xbf16, #tpu.memory_space<vmem>>, vector<32x64xbf16>
    %cst_12 = arith.constant dense<0.000000e+00> : vector<8x64xf32>
    %14 = tpu.matmul %12, %13, %cst_12 {dimension_numbers = #tpu.dot_dimension_numbers<[1], [0], [0], [1], [0, 0, 1, 1], [], []>} : vector<8x32xbf16>, vector<32x64xbf16>, vector<8x64xf32> -> vector<8x64xf32>
    %c0_13 = arith.constant 0 : index
    %c0_14 = arith.constant 0 : index
    %15 = vector.load %arg7[%c0_13, %c0_14] : memref<1x64xf32, #tpu.memory_space<vmem>>, vector<1x64xf32>
    %16 = vector.broadcast %15 : vector<1x64xf32> to vector<8x64xf32>
    %17 = arith.addf %14, %16 : vector<8x64xf32>
    %18 = arith.truncf %11 : vector<8x32xf32> to vector<8x32xbf16>
    %19 = vector.extract_strided_slice %17 {offsets = [0, 0], sizes = [8, 32], strides = [1, 1]} : vector<8x64xf32> to vector<8x32xf32>
    %20 = arith.truncf %19 : vector<8x32xf32> to vector<8x32xbf16>
    %21 = vector.extract_strided_slice %17 {offsets = [0, 32], sizes = [8, 32], strides = [1, 1]} : vector<8x64xf32> to vector<8x32xf32>
    %22 = arith.truncf %21 : vector<8x32xf32> to vector<8x32xbf16>
    %23 = vector.extract_strided_slice %18 {offsets = [0, 0], sizes = [8, 8], strides = [1, 1]} : vector<8x32xbf16> to vector<8x8xbf16>
    %24 = vector.extract_strided_slice %20 {offsets = [0, 0], sizes = [8, 8], strides = [1, 1]} : vector<8x32xbf16> to vector<8x8xbf16>
    %cst_15 = arith.constant dense<0.000000e+00> : vector<8x8xf32>
    %25 = tpu.matmul %23, %24, %cst_15 {dimension_numbers = #tpu.dot_dimension_numbers<[1], [1], [0], [0], [0, 0, 1, 0], [], []>} : vector<8x8xbf16>, vector<8x8xbf16>, vector<8x8xf32> -> vector<8x8xf32>
    %cst_16 = arith.constant dense<0xFF800000> : vector<8xf32>
    %26 = vector.multi_reduction <maximumf>, %25, %cst_16 [1] : vector<8x8xf32> to vector<8xf32>
    %27 = vector.shape_cast %26 : vector<8xf32> to vector<8x1xf32>
    %28 = vector.broadcast %27 : vector<8x1xf32> to vector<8x8xf32>
    %29 = arith.subf %25, %28 : vector<8x8xf32>
    %30 = math.exp %29 : vector<8x8xf32>
    %cst_17 = arith.constant dense<0.000000e+00> : vector<8xf32>
    %31 = vector.multi_reduction <add>, %30, %cst_17 [1] : vector<8x8xf32> to vector<8xf32>
    %32 = vector.shape_cast %31 : vector<8xf32> to vector<8x1xf32>
    %33 = tpu.reciprocal %32 {approx = true} : vector<8x1xf32> -> vector<8x1xf32>
    %34 = arith.truncf %30 : vector<8x8xf32> to vector<8x8xbf16>
    %35 = vector.extract_strided_slice %22 {offsets = [0, 0], sizes = [8, 8], strides = [1, 1]} : vector<8x32xbf16> to vector<8x8xbf16>
    %cst_18 = arith.constant dense<0.000000e+00> : vector<8x8xf32>
    %36 = tpu.matmul %34, %35, %cst_18 {dimension_numbers = #tpu.dot_dimension_numbers<[1], [0], [0], [1], [0, 0, 1, 1], [], []>} : vector<8x8xbf16>, vector<8x8xbf16>, vector<8x8xf32> -> vector<8x8xf32>
    %37 = vector.broadcast %33 : vector<8x1xf32> to vector<8x8xf32>
    %38 = arith.mulf %36, %37 : vector<8x8xf32>
    %c0_19 = arith.constant 0 : index
    %c0_20 = arith.constant 0 : index
    %39 = vector.load %arg13[%c0_19, %c0_20] : memref<8x32xf32, #tpu.memory_space<vmem>>, vector<8x8xf32>
    tpu.vector_store %arg13[%c0_19, %c0_20], %38 {strides = array<i32>} : memref<8x32xf32, #tpu.memory_space<vmem>>, vector<8x8xf32>,
    %40 = vector.extract_strided_slice %18 {offsets = [0, 8], sizes = [8, 8], strides = [1, 1]} : vector<8x32xbf16> to vector<8x8xbf16>
    %41 = vector.extract_strided_slice %20 {offsets = [0, 8], sizes = [8, 8], strides = [1, 1]} : vector<8x32xbf16> to vector<8x8xbf16>
    %cst_21 = arith.constant dense<0.000000e+00> : vector<8x8xf32>
    %42 = tpu.matmul %40, %41, %cst_21 {dimension_numbers = #tpu.dot_dimension_numbers<[1], [1], [0], [0], [0, 0, 1, 0], [], []>} : vector<8x8xbf16>, vector<8x8xbf16>, vector<8x8xf32> -> vector<8x8xf32>
    %cst_22 = arith.constant dense<0xFF800000> : vector<8xf32>
    %43 = vector.multi_reduction <maximumf>, %42, %cst_22 [1] : vector<8x8xf32> to vector<8xf32>
    %44 = vector.shape_cast %43 : vector<8xf32> to vector<8x1xf32>
    %45 = vector.broadcast %44 : vector<8x1xf32> to vector<8x8xf32>
    %46 = arith.subf %42, %45 : vector<8x8xf32>
    %47 = math.exp %46 : vector<8x8xf32>
    %cst_23 = arith.constant dense<0.000000e+00> : vector<8xf32>
    %48 = vector.multi_reduction <add>, %47, %cst_23 [1] : vector<8x8xf32> to vector<8xf32>
    %49 = vector.shape_cast %48 : vector<8xf32> to vector<8x1xf32>
    %50 = tpu.reciprocal %49 {approx = true} : vector<8x1xf32> -> vector<8x1xf32>
    %51 = arith.truncf %47 : vector<8x8xf32> to vector<8x8xbf16>
    %52 = vector.extract_strided_slice %22 {offsets = [0, 8], sizes = [8, 8], strides = [1, 1]} : vector<8x32xbf16> to vector<8x8xbf16>
    %cst_24 = arith.constant dense<0.000000e+00> : vector<8x8xf32>
    %53 = tpu.matmul %51, %52, %cst_24 {dimension_numbers = #tpu.dot_dimension_numbers<[1], [0], [0], [1], [0, 0, 1, 1], [], []>} : vector<8x8xbf16>, vector<8x8xbf16>, vector<8x8xf32> -> vector<8x8xf32>
    %54 = vector.broadcast %50 : vector<8x1xf32> to vector<8x8xf32>
    %55 = arith.mulf %53, %54 : vector<8x8xf32>
    %c0_25 = arith.constant 0 : index
    %c8 = arith.constant 8 : index
    %56 = vector.load %arg13[%c0_25, %c8] : memref<8x32xf32, #tpu.memory_space<vmem>>, vector<8x8xf32>
    tpu.vector_store %arg13[%c0_25, %c8], %55 {strides = array<i32>} : memref<8x32xf32, #tpu.memory_space<vmem>>, vector<8x8xf32>,
    %57 = vector.extract_strided_slice %18 {offsets = [0, 16], sizes = [8, 8], strides = [1, 1]} : vector<8x32xbf16> to vector<8x8xbf16>
    %58 = vector.extract_strided_slice %20 {offsets = [0, 16], sizes = [8, 8], strides = [1, 1]} : vector<8x32xbf16> to vector<8x8xbf16>
    %cst_26 = arith.constant dense<0.000000e+00> : vector<8x8xf32>
    %59 = tpu.matmul %57, %58, %cst_26 {dimension_numbers = #tpu.dot_dimension_numbers<[1], [1], [0], [0], [0, 0, 1, 0], [], []>} : vector<8x8xbf16>, vector<8x8xbf16>, vector<8x8xf32> -> vector<8x8xf32>
    %cst_27 = arith.constant dense<0xFF800000> : vector<8xf32>
    %60 = vector.multi_reduction <maximumf>, %59, %cst_27 [1] : vector<8x8xf32> to vector<8xf32>
    %61 = vector.shape_cast %60 : vector<8xf32> to vector<8x1xf32>
    %62 = vector.broadcast %61 : vector<8x1xf32> to vector<8x8xf32>
    %63 = arith.subf %59, %62 : vector<8x8xf32>
    %64 = math.exp %63 : vector<8x8xf32>
    %cst_28 = arith.constant dense<0.000000e+00> : vector<8xf32>
    %65 = vector.multi_reduction <add>, %64, %cst_28 [1] : vector<8x8xf32> to vector<8xf32>
    %66 = vector.shape_cast %65 : vector<8xf32> to vector<8x1xf32>
    %67 = tpu.reciprocal %66 {approx = true} : vector<8x1xf32> -> vector<8x1xf32>
    %68 = arith.truncf %64 : vector<8x8xf32> to vector<8x8xbf16>
    %69 = vector.extract_strided_slice %22 {offsets = [0, 16], sizes = [8, 8], strides = [1, 1]} : vector<8x32xbf16> to vector<8x8xbf16>
    %cst_29 = arith.constant dense<0.000000e+00> : vector<8x8xf32>
    %70 = tpu.matmul %68, %69, %cst_29 {dimension_numbers = #tpu.dot_dimension_numbers<[1], [0], [0], [1], [0, 0, 1, 1], [], []>} : vector<8x8xbf16>, vector<8x8xbf16>, vector<8x8xf32> -> vector<8x8xf32>
    %71 = vector.broadcast %67 : vector<8x1xf32> to vector<8x8xf32>
    %72 = arith.mulf %70, %71 : vector<8x8xf32>
    %c0_30 = arith.constant 0 : index
    %c16 = arith.constant 16 : index
    %73 = vector.load %arg13[%c0_30, %c16] : memref<8x32xf32, #tpu.memory_space<vmem>>, vector<8x8xf32>
    tpu.vector_store %arg13[%c0_30, %c16], %72 {strides = array<i32>} : memref<8x32xf32, #tpu.memory_space<vmem>>, vector<8x8xf32>,
    %74 = vector.extract_strided_slice %18 {offsets = [0, 24], sizes = [8, 8], strides = [1, 1]} : vector<8x32xbf16> to vector<8x8xbf16>
    %75 = vector.extract_strided_slice %20 {offsets = [0, 24], sizes = [8, 8], strides = [1, 1]} : vector<8x32xbf16> to vector<8x8xbf16>
    %cst_31 = arith.constant dense<0.000000e+00> : vector<8x8xf32>
    %76 = tpu.matmul %74, %75, %cst_31 {dimension_numbers = #tpu.dot_dimension_numbers<[1], [1], [0], [0], [0, 0, 1, 0], [], []>} : vector<8x8xbf16>, vector<8x8xbf16>, vector<8x8xf32> -> vector<8x8xf32>
    %cst_32 = arith.constant dense<0xFF800000> : vector<8xf32>
    %77 = vector.multi_reduction <maximumf>, %76, %cst_32 [1] : vector<8x8xf32> to vector<8xf32>
    %78 = vector.shape_cast %77 : vector<8xf32> to vector<8x1xf32>
    %79 = vector.broadcast %78 : vector<8x1xf32> to vector<8x8xf32>
    %80 = arith.subf %76, %79 : vector<8x8xf32>
    %81 = math.exp %80 : vector<8x8xf32>
    %cst_33 = arith.constant dense<0.000000e+00> : vector<8xf32>
    %82 = vector.multi_reduction <add>, %81, %cst_33 [1] : vector<8x8xf32> to vector<8xf32>
    %83 = vector.shape_cast %82 : vector<8xf32> to vector<8x1xf32>
    %84 = tpu.reciprocal %83 {approx = true} : vector<8x1xf32> -> vector<8x1xf32>
    %85 = arith.truncf %81 : vector<8x8xf32> to vector<8x8xbf16>
    %86 = vector.extract_strided_slice %22 {offsets = [0, 24], sizes = [8, 8], strides = [1, 1]} : vector<8x32xbf16> to vector<8x8xbf16>
    %cst_34 = arith.constant dense<0.000000e+00> : vector<8x8xf32>
    %87 = tpu.matmul %85, %86, %cst_34 {dimension_numbers = #tpu.dot_dimension_numbers<[1], [0], [0], [1], [0, 0, 1, 1], [], []>} : vector<8x8xbf16>, vector<8x8xbf16>, vector<8x8xf32> -> vector<8x8xf32>
    %88 = vector.broadcast %84 : vector<8x1xf32> to vector<8x8xf32>
    %89 = arith.mulf %87, %88 : vector<8x8xf32>
    %c0_35 = arith.constant 0 : index
    %c24 = arith.constant 24 : index
    %90 = vector.load %arg13[%c0_35, %c24] : memref<8x32xf32, #tpu.memory_space<vmem>>, vector<8x8xf32>
    tpu.vector_store %arg13[%c0_35, %c24], %89 {strides = array<i32>} : memref<8x32xf32, #tpu.memory_space<vmem>>, vector<8x8xf32>,
    %c0_36 = arith.constant 0 : index
    %c0_37 = arith.constant 0 : index
    %91 = vector.load %arg13[%c0_36, %c0_37] : memref<8x32xf32, #tpu.memory_space<vmem>>, vector<8x32xf32>
    %92 = arith.truncf %91 : vector<8x32xf32> to vector<8x32xbf16>
    %c0_38 = arith.constant 0 : index
    %c0_39 = arith.constant 0 : index
    %93 = vector.load %arg8[%c0_38, %c0_39] : memref<32x32xbf16, #tpu.memory_space<vmem>>, vector<32x32xbf16>
    %cst_40 = arith.constant dense<0.000000e+00> : vector<8x32xf32>
    %94 = tpu.matmul %92, %93, %cst_40 {dimension_numbers = #tpu.dot_dimension_numbers<[1], [0], [0], [1], [0, 0, 1, 1], [], []>} : vector<8x32xbf16>, vector<32x32xbf16>, vector<8x32xf32> -> vector<8x32xf32>
    %c0_41 = arith.constant 0 : index
    %c0_42 = arith.constant 0 : index
    %95 = vector.load %arg9[%c0_41, %c0_42] : memref<1x32xf32, #tpu.memory_space<vmem>>, vector<1x32xf32>
    %96 = vector.broadcast %95 : vector<1x32xf32> to vector<8x32xf32>
    %97 = arith.addf %94, %96 : vector<8x32xf32>
    %98 = arith.addf %1, %97 : vector<8x32xf32>
    %c0_43 = arith.constant 0 : index
    %c0_44 = arith.constant 0 : index
    %99 = vector.load %arg10[%c0_43, %c0_44] : memref<1x32xf32, #tpu.memory_space<vmem>>, vector<1x32xf32>
    %c0_45 = arith.constant 0 : index
    %c0_46 = arith.constant 0 : index
    %100 = vector.load %arg11[%c0_45, %c0_46] : memref<1x32xf32, #tpu.memory_space<vmem>>, vector<1x32xf32>
    %cst_47 = arith.constant dense<0.000000e+00> : vector<8xf32>
    %101 = vector.multi_reduction <add>, %98, %cst_47 [1] : vector<8x32xf32> to vector<8xf32>
    %102 = vector.shape_cast %101 : vector<8xf32> to vector<8x1xf32>
    %cst_48 = arith.constant 3.200000e+01 : f32
    %103 = vector.broadcast %cst_48 : f32 to vector<8x1xf32>
    %104 = arith.divf %102, %103 : vector<8x1xf32>
    %105 = vector.broadcast %104 : vector<8x1xf32> to vector<8x32xf32>
    %106 = arith.subf %98, %105 : vector<8x32xf32>
    %107 = arith.mulf %106, %106 : vector<8x32xf32>
    %cst_49 = arith.constant dense<0.000000e+00> : vector<8xf32>
    %108 = vector.multi_reduction <add>, %107, %cst_49 [1] : vector<8x32xf32> to vector<8xf32>
    %109 = vector.shape_cast %108 : vector<8xf32> to vector<8x1xf32>
    %cst_50 = arith.constant 3.200000e+01 : f32
    %110 = vector.broadcast %cst_50 : f32 to vector<8x1xf32>
    %111 = arith.divf %109, %110 : vector<8x1xf32>
    %112 = vector.broadcast %104 : vector<8x1xf32> to vector<8x32xf32>
    %113 = arith.subf %98, %112 : vector<8x32xf32>
    %cst_51 = arith.constant 9.99999974E-6 : f32
    %114 = vector.broadcast %cst_51 : f32 to vector<8x1xf32>
    %115 = arith.addf %111, %114 : vector<8x1xf32>
    %116 = math.rsqrt %115 : vector<8x1xf32>
    %117 = vector.broadcast %116 : vector<8x1xf32> to vector<8x32xf32>
    %118 = arith.mulf %113, %117 : vector<8x32xf32>
    %119 = vector.broadcast %99 : vector<1x32xf32> to vector<8x32xf32>
    %120 = arith.mulf %118, %119 : vector<8x32xf32>
    %121 = vector.broadcast %100 : vector<1x32xf32> to vector<8x32xf32>
    %122 = arith.addf %120, %121 : vector<8x32xf32>
    %c0_52 = arith.constant 0 : index
    %c0_53 = arith.constant 0 : index
    %c0_54 = arith.constant 0 : index
    %123 = vector.load %arg12[%c0_52, %c0_53, %c0_54] : memref<1x8x32xf32, #tpu.memory_space<vmem>>, vector<1x8x32xf32>
    %124 = vector.shape_cast %123 : vector<1x8x32xf32> to vector<8x32xf32>
    %125 = vector.shape_cast %122 : vector<8x32xf32> to vector<1x8x32xf32>
    tpu.vector_store %arg12[%c0_52, %c0_53, %c0_54], %125 {strides = array<i32>} : memref<1x8x32xf32, #tpu.memory_space<vmem>>, vector<1x8x32xf32>,
    return
  }
  func.func @transform_0(%arg0: i32, %arg1: i32) -> (i32, i32, i32) {
    %c0_i32 = arith.constant 0 : i32
    %c0_i32_0 = arith.constant 0 : i32
    return %arg0, %arg1, %c0_i32 : i32, i32, i32
  }
  func.func @transform_1(%arg0: i32, %arg1: i32) -> (i32, i32, i32) {
    %c0_i32 = arith.constant 0 : i32
    %c0_i32_0 = arith.constant 0 : i32
    %c0_i32_1 = arith.constant 0 : i32
    return %arg0, %c0_i32, %c0_i32_0 : i32, i32, i32
  }
  func.func @transform_2(%arg0: i32, %arg1: i32) -> (i32, i32) {
    %c0_i32 = arith.constant 0 : i32
    %c0_i32_0 = arith.constant 0 : i32
    %c0_i32_1 = arith.constant 0 : i32
    return %c0_i32, %c0_i32_0 : i32, i32
  }
  func.func @transform_3(%arg0: i32, %arg1: i32) -> (i32, i32) {
    %c0_i32 = arith.constant 0 : i32
    %c0_i32_0 = arith.constant 0 : i32
    %c0_i32_1 = arith.constant 0 : i32
    return %c0_i32, %c0_i32_0 : i32, i32
  }
  func.func @transform_4(%arg0: i32, %arg1: i32) -> (i32, i32) {
    %c0_i32 = arith.constant 0 : i32
    %c0_i32_0 = arith.constant 0 : i32
    %c0_i32_1 = arith.constant 0 : i32
    return %c0_i32, %c0_i32_0 : i32, i32
  }
  func.func @transform_5(%arg0: i32, %arg1: i32) -> (i32, i32) {
    %c0_i32 = arith.constant 0 : i32
    %c0_i32_0 = arith.constant 0 : i32
    %c0_i32_1 = arith.constant 0 : i32
    return %c0_i32, %c0_i32_0 : i32, i32
  }
  func.func @transform_6(%arg0: i32, %arg1: i32) -> (i32, i32) {
    %c0_i32 = arith.constant 0 : i32
    %c0_i32_0 = arith.constant 0 : i32
    %c0_i32_1 = arith.constant 0 : i32
    return %c0_i32, %c0_i32_0 : i32, i32
  }
  func.func @transform_7(%arg0: i32, %arg1: i32) -> (i32, i32) {
    %c0_i32 = arith.constant 0 : i32
    %c0_i32_0 = arith.constant 0 : i32
    %c0_i32_1 = arith.constant 0 : i32
    return %c0_i32, %c0_i32_0 : i32, i32
  }
  func.func @transform_8(%arg0: i32, %arg1: i32) -> (i32, i32) {
    %c0_i32 = arith.constant 0 : i32
    %c0_i32_0 = arith.constant 0 : i32
    %c0_i32_1 = arith.constant 0 : i32
    return %c0_i32, %c0_i32_0 : i32, i32
  }
  func.func @transform_9(%arg0: i32, %arg1: i32) -> (i32, i32) {
    %c0_i32 = arith.constant 0 : i32
    %c0_i32_0 = arith.constant 0 : i32
    %c0_i32_1 = arith.constant 0 : i32
    return %c0_i32, %c0_i32_0 : i32, i32
  }
  func.func @transform_10(%arg0: i32, %arg1: i32) -> (i32, i32, i32) {
    %c0_i32 = arith.constant 0 : i32
    %c0_i32_0 = arith.constant 0 : i32
    return %arg0, %arg1, %c0_i32 : i32, i32, i32
  }
}

module attributes {stable_mosaic.version = 11 : i64} {
  func.func @_ffn_kernel(%arg0: i32, %arg1: i32, %arg2: memref<16x32xf32, #tpu.memory_space<vmem>>, %arg3: memref<32x64xbf16, #tpu.memory_space<vmem>>, %arg4: memref<1x64xf32, #tpu.memory_space<vmem>>, %arg5: memref<64x32xbf16, #tpu.memory_space<vmem>>, %arg6: memref<1x32xf32, #tpu.memory_space<vmem>>, %arg7: memref<1x32xf32, #tpu.memory_space<vmem>>, %arg8: memref<1x32xf32, #tpu.memory_space<vmem>>, %arg9: memref<16x32xf32, #tpu.memory_space<vmem>>, %arg10: memref<16x32xf32, #tpu.memory_space<vmem>>) attributes {dimension_semantics = [#tpu.dimension_semantics<parallel>, #tpu.dimension_semantics<arbitrary>], iteration_bounds = array<i64: 1, 1>, scalar_prefetch = 0 : i64, scratch_operands = 1 : i64, tpu.core_type = #tpu.core_type<tc>, window_params = [{transform_indices = @transform_0, window_bounds = array<i64: 16, 32>}, {transform_indices = @transform_1, window_bounds = array<i64: 32, 64>}, {transform_indices = @transform_2, window_bounds = array<i64: 1, 64>}, {transform_indices = @transform_3, window_bounds = array<i64: 64, 32>}, {pipeline_mode = #tpu.pipeline_mode<synchronous>, transform_indices = @transform_4, window_bounds = array<i64: 1, 32>}, {pipeline_mode = #tpu.pipeline_mode<synchronous>, transform_indices = @transform_5, window_bounds = array<i64: 1, 32>}, {pipeline_mode = #tpu.pipeline_mode<synchronous>, transform_indices = @transform_6, window_bounds = array<i64: 1, 32>}, {transform_indices = @transform_7, window_bounds = array<i64: 16, 32>}]} {
    %c0_i32 = arith.constant 0 : i32
    %0 = arith.cmpi eq, %arg1, %c0_i32 : i32
    %1 = arith.extui %0 : i1 to i32
    %c0_i32_0 = arith.constant 0 : i32
    %2 = arith.cmpi ne, %1, %c0_i32_0 : i32
    scf.if %2 {
      %cst_16 = arith.constant 0.000000e+00 : f32
      %21 = vector.broadcast %cst_16 : f32 to vector<16x32xf32>
      %c0_17 = arith.constant 0 : index
      %c0_18 = arith.constant 0 : index
      %22 = vector.load %arg10[%c0_17, %c0_18] : memref<16x32xf32, #tpu.memory_space<vmem>>, vector<16x32xf32>
      tpu.vector_store %arg10[%c0_17, %c0_18], %21 {strides = array<i32>} : memref<16x32xf32, #tpu.memory_space<vmem>>, vector<16x32xf32>,
    } else {
    }
    %c0 = arith.constant 0 : index
    %c0_1 = arith.constant 0 : index
    %3 = vector.load %arg2[%c0, %c0_1] : memref<16x32xf32, #tpu.memory_space<vmem>>, vector<16x32xf32>
    %4 = arith.truncf %3 : vector<16x32xf32> to vector<16x32xbf16>
    %c0_2 = arith.constant 0 : index
    %c0_3 = arith.constant 0 : index
    %5 = vector.load %arg3[%c0_2, %c0_3] : memref<32x64xbf16, #tpu.memory_space<vmem>>, vector<32x64xbf16>
    %cst = arith.constant dense<0.000000e+00> : vector<16x64xf32>
    %6 = tpu.matmul %4, %5, %cst {dimension_numbers = #tpu.dot_dimension_numbers<[1], [0], [0], [1], [0, 0, 1, 1], [], []>} : vector<16x32xbf16>, vector<32x64xbf16>, vector<16x64xf32> -> vector<16x64xf32>
    %c0_4 = arith.constant 0 : index
    %c0_5 = arith.constant 0 : index
    %7 = vector.load %arg4[%c0_4, %c0_5] : memref<1x64xf32, #tpu.memory_space<vmem>>, vector<1x64xf32>
    %8 = vector.broadcast %7 : vector<1x64xf32> to vector<16x64xf32>
    %9 = arith.addf %6, %8 : vector<16x64xf32>
    %cst_6 = arith.constant 0.000000e+00 : f32
    %10 = vector.broadcast %cst_6 : f32 to vector<16x64xf32>
    %11 = arith.maximumf %9, %10 : vector<16x64xf32>
    %c0_7 = arith.constant 0 : index
    %c0_8 = arith.constant 0 : index
    %12 = vector.load %arg10[%c0_7, %c0_8] : memref<16x32xf32, #tpu.memory_space<vmem>>, vector<16x32xf32>
    %13 = arith.truncf %11 : vector<16x64xf32> to vector<16x64xbf16>
    %c0_9 = arith.constant 0 : index
    %c0_10 = arith.constant 0 : index
    %14 = vector.load %arg5[%c0_9, %c0_10] : memref<64x32xbf16, #tpu.memory_space<vmem>>, vector<64x32xbf16>
    %cst_11 = arith.constant dense<0.000000e+00> : vector<16x32xf32>
    %15 = tpu.matmul %13, %14, %cst_11 {dimension_numbers = #tpu.dot_dimension_numbers<[1], [0], [0], [1], [0, 0, 1, 1], [], []>} : vector<16x64xbf16>, vector<64x32xbf16>, vector<16x32xf32> -> vector<16x32xf32>
    %16 = arith.addf %12, %15 : vector<16x32xf32>
    %c0_12 = arith.constant 0 : index
    %c0_13 = arith.constant 0 : index
    %17 = vector.load %arg10[%c0_12, %c0_13] : memref<16x32xf32, #tpu.memory_space<vmem>>, vector<16x32xf32>
    tpu.vector_store %arg10[%c0_12, %c0_13], %16 {strides = array<i32>} : memref<16x32xf32, #tpu.memory_space<vmem>>, vector<16x32xf32>,
    %c0_i32_14 = arith.constant 0 : i32
    %18 = arith.cmpi eq, %arg1, %c0_i32_14 : i32
    %19 = arith.extui %18 : i1 to i32
    %c0_i32_15 = arith.constant 0 : i32
    %20 = arith.cmpi ne, %19, %c0_i32_15 : i32
    scf.if %20 {
      %c0_16 = arith.constant 0 : index
      %c0_17 = arith.constant 0 : index
      %21 = vector.load %arg10[%c0_16, %c0_17] : memref<16x32xf32, #tpu.memory_space<vmem>>, vector<16x32xf32>
      %22 = arith.addf %3, %21 : vector<16x32xf32>
      %c0_18 = arith.constant 0 : index
      %c0_19 = arith.constant 0 : index
      %23 = vector.load %arg6[%c0_18, %c0_19] : memref<1x32xf32, #tpu.memory_space<vmem>>, vector<1x32xf32>
      %24 = vector.broadcast %23 : vector<1x32xf32> to vector<16x32xf32>
      %25 = arith.addf %22, %24 : vector<16x32xf32>
      %c0_20 = arith.constant 0 : index
      %c0_21 = arith.constant 0 : index
      %26 = vector.load %arg7[%c0_20, %c0_21] : memref<1x32xf32, #tpu.memory_space<vmem>>, vector<1x32xf32>
      %c0_22 = arith.constant 0 : index
      %c0_23 = arith.constant 0 : index
      %27 = vector.load %arg8[%c0_22, %c0_23] : memref<1x32xf32, #tpu.memory_space<vmem>>, vector<1x32xf32>
      %cst_24 = arith.constant dense<0.000000e+00> : vector<16xf32>
      %28 = vector.multi_reduction <add>, %25, %cst_24 [1] : vector<16x32xf32> to vector<16xf32>
      %29 = vector.shape_cast %28 : vector<16xf32> to vector<16x1xf32>
      %cst_25 = arith.constant 3.200000e+01 : f32
      %30 = vector.broadcast %cst_25 : f32 to vector<16x1xf32>
      %31 = arith.divf %29, %30 : vector<16x1xf32>
      %32 = vector.broadcast %31 : vector<16x1xf32> to vector<16x32xf32>
      %33 = arith.subf %25, %32 : vector<16x32xf32>
      %34 = arith.mulf %33, %33 : vector<16x32xf32>
      %cst_26 = arith.constant dense<0.000000e+00> : vector<16xf32>
      %35 = vector.multi_reduction <add>, %34, %cst_26 [1] : vector<16x32xf32> to vector<16xf32>
      %36 = vector.shape_cast %35 : vector<16xf32> to vector<16x1xf32>
      %cst_27 = arith.constant 3.200000e+01 : f32
      %37 = vector.broadcast %cst_27 : f32 to vector<16x1xf32>
      %38 = arith.divf %36, %37 : vector<16x1xf32>
      %39 = vector.broadcast %31 : vector<16x1xf32> to vector<16x32xf32>
      %40 = arith.subf %25, %39 : vector<16x32xf32>
      %cst_28 = arith.constant 9.99999974E-6 : f32
      %41 = vector.broadcast %cst_28 : f32 to vector<16x1xf32>
      %42 = arith.addf %38, %41 : vector<16x1xf32>
      %43 = math.rsqrt %42 : vector<16x1xf32>
      %44 = vector.broadcast %43 : vector<16x1xf32> to vector<16x32xf32>
      %45 = arith.mulf %40, %44 : vector<16x32xf32>
      %46 = vector.broadcast %26 : vector<1x32xf32> to vector<16x32xf32>
      %47 = arith.mulf %45, %46 : vector<16x32xf32>
      %48 = vector.broadcast %27 : vector<1x32xf32> to vector<16x32xf32>
      %49 = arith.addf %47, %48 : vector<16x32xf32>
      %c0_29 = arith.constant 0 : index
      %c0_30 = arith.constant 0 : index
      %50 = vector.load %arg9[%c0_29, %c0_30] : memref<16x32xf32, #tpu.memory_space<vmem>>, vector<16x32xf32>
      tpu.vector_store %arg9[%c0_29, %c0_30], %49 {strides = array<i32>} : memref<16x32xf32, #tpu.memory_space<vmem>>, vector<16x32xf32>,
    } else {
    }
    return
  }
  func.func @transform_0(%arg0: i32, %arg1: i32) -> (i32, i32) {
    %c0_i32 = arith.constant 0 : i32
    %c0_i32_0 = arith.constant 0 : i32
    return %arg0, %c0_i32 : i32, i32
  }
  func.func @transform_1(%arg0: i32, %arg1: i32) -> (i32, i32) {
    %c0_i32 = arith.constant 0 : i32
    %c0_i32_0 = arith.constant 0 : i32
    return %c0_i32, %arg1 : i32, i32
  }
  func.func @transform_2(%arg0: i32, %arg1: i32) -> (i32, i32) {
    %c0_i32 = arith.constant 0 : i32
    %c0_i32_0 = arith.constant 0 : i32
    return %c0_i32, %arg1 : i32, i32
  }
  func.func @transform_3(%arg0: i32, %arg1: i32) -> (i32, i32) {
    %c0_i32 = arith.constant 0 : i32
    %c0_i32_0 = arith.constant 0 : i32
    return %arg1, %c0_i32 : i32, i32
  }
  func.func @transform_4(%arg0: i32, %arg1: i32) -> (i32, i32) {
    %c0_i32 = arith.constant 0 : i32
    %c0_i32_0 = arith.constant 0 : i32
    %c0_i32_1 = arith.constant 0 : i32
    return %c0_i32, %c0_i32_0 : i32, i32
  }
  func.func @transform_5(%arg0: i32, %arg1: i32) -> (i32, i32) {
    %c0_i32 = arith.constant 0 : i32
    %c0_i32_0 = arith.constant 0 : i32
    %c0_i32_1 = arith.constant 0 : i32
    return %c0_i32, %c0_i32_0 : i32, i32
  }
  func.func @transform_6(%arg0: i32, %arg1: i32) -> (i32, i32) {
    %c0_i32 = arith.constant 0 : i32
    %c0_i32_0 = arith.constant 0 : i32
    %c0_i32_1 = arith.constant 0 : i32
    return %c0_i32, %c0_i32_0 : i32, i32
  }
  func.func @transform_7(%arg0: i32, %arg1: i32) -> (i32, i32) {
    %c0_i32 = arith.constant 0 : i32
    %c0_i32_0 = arith.constant 0 : i32
    return %arg0, %c0_i32 : i32, i32
  }
}

module attributes {stable_mosaic.version = 11 : i64} {
  func.func @_ln_kernel(%arg0: i32, %arg1: memref<16x32xf32, #tpu.memory_space<vmem>>, %arg2: memref<1x32xf32, #tpu.memory_space<vmem>>, %arg3: memref<1x32xf32, #tpu.memory_space<vmem>>, %arg4: memref<16x32xf32, #tpu.memory_space<vmem>>) attributes {dimension_semantics = [#tpu.dimension_semantics<parallel>], iteration_bounds = array<i64: 1>, scalar_prefetch = 0 : i64, scratch_operands = 0 : i64, tpu.core_type = #tpu.core_type<tc>, window_params = [{transform_indices = @transform_0, window_bounds = array<i64: 16, 32>}, {pipeline_mode = #tpu.pipeline_mode<synchronous>, transform_indices = @transform_1, window_bounds = array<i64: 1, 32>}, {pipeline_mode = #tpu.pipeline_mode<synchronous>, transform_indices = @transform_2, window_bounds = array<i64: 1, 32>}, {transform_indices = @transform_3, window_bounds = array<i64: 16, 32>}]} {
    %c0 = arith.constant 0 : index
    %c0_0 = arith.constant 0 : index
    %0 = vector.load %arg1[%c0, %c0_0] : memref<16x32xf32, #tpu.memory_space<vmem>>, vector<16x32xf32>
    %c0_1 = arith.constant 0 : index
    %c0_2 = arith.constant 0 : index
    %1 = vector.load %arg2[%c0_1, %c0_2] : memref<1x32xf32, #tpu.memory_space<vmem>>, vector<1x32xf32>
    %c0_3 = arith.constant 0 : index
    %c0_4 = arith.constant 0 : index
    %2 = vector.load %arg3[%c0_3, %c0_4] : memref<1x32xf32, #tpu.memory_space<vmem>>, vector<1x32xf32>
    %cst = arith.constant dense<0.000000e+00> : vector<16xf32>
    %3 = vector.multi_reduction <add>, %0, %cst [1] : vector<16x32xf32> to vector<16xf32>
    %4 = vector.shape_cast %3 : vector<16xf32> to vector<16x1xf32>
    %cst_5 = arith.constant 3.200000e+01 : f32
    %5 = vector.broadcast %cst_5 : f32 to vector<16x1xf32>
    %6 = arith.divf %4, %5 : vector<16x1xf32>
    %7 = vector.broadcast %6 : vector<16x1xf32> to vector<16x32xf32>
    %8 = arith.subf %0, %7 : vector<16x32xf32>
    %9 = arith.mulf %8, %8 : vector<16x32xf32>
    %cst_6 = arith.constant dense<0.000000e+00> : vector<16xf32>
    %10 = vector.multi_reduction <add>, %9, %cst_6 [1] : vector<16x32xf32> to vector<16xf32>
    %11 = vector.shape_cast %10 : vector<16xf32> to vector<16x1xf32>
    %cst_7 = arith.constant 3.200000e+01 : f32
    %12 = vector.broadcast %cst_7 : f32 to vector<16x1xf32>
    %13 = arith.divf %11, %12 : vector<16x1xf32>
    %14 = vector.broadcast %6 : vector<16x1xf32> to vector<16x32xf32>
    %15 = arith.subf %0, %14 : vector<16x32xf32>
    %cst_8 = arith.constant 9.99999974E-6 : f32
    %16 = vector.broadcast %cst_8 : f32 to vector<16x1xf32>
    %17 = arith.addf %13, %16 : vector<16x1xf32>
    %18 = math.rsqrt %17 : vector<16x1xf32>
    %19 = vector.broadcast %18 : vector<16x1xf32> to vector<16x32xf32>
    %20 = arith.mulf %15, %19 : vector<16x32xf32>
    %21 = vector.broadcast %1 : vector<1x32xf32> to vector<16x32xf32>
    %22 = arith.mulf %20, %21 : vector<16x32xf32>
    %23 = vector.broadcast %2 : vector<1x32xf32> to vector<16x32xf32>
    %24 = arith.addf %22, %23 : vector<16x32xf32>
    %c0_9 = arith.constant 0 : index
    %c0_10 = arith.constant 0 : index
    %25 = vector.load %arg4[%c0_9, %c0_10] : memref<16x32xf32, #tpu.memory_space<vmem>>, vector<16x32xf32>
    tpu.vector_store %arg4[%c0_9, %c0_10], %24 {strides = array<i32>} : memref<16x32xf32, #tpu.memory_space<vmem>>, vector<16x32xf32>,
    return
  }
  func.func @transform_0(%arg0: i32) -> (i32, i32) {
    %c0_i32 = arith.constant 0 : i32
    %c0_i32_0 = arith.constant 0 : i32
    return %arg0, %c0_i32 : i32, i32
  }
  func.func @transform_1(%arg0: i32) -> (i32, i32) {
    %c0_i32 = arith.constant 0 : i32
    %c0_i32_0 = arith.constant 0 : i32
    %c0_i32_1 = arith.constant 0 : i32
    return %c0_i32, %c0_i32_0 : i32, i32
  }
  func.func @transform_2(%arg0: i32) -> (i32, i32) {
    %c0_i32 = arith.constant 0 : i32
    %c0_i32_0 = arith.constant 0 : i32
    %c0_i32_1 = arith.constant 0 : i32
    return %c0_i32, %c0_i32_0 : i32, i32
  }
  func.func @transform_3(%arg0: i32) -> (i32, i32) {
    %c0_i32 = arith.constant 0 : i32
    %c0_i32_0 = arith.constant 0 : i32
    return %arg0, %c0_i32 : i32, i32
  }
}

</mosaic_0001>

<llo_original>
// kernel: tpu_custom_call.1
$region0: #{tpu_custom_call.1}
  #allocation0 [shape = 'u32[]', space=smem, size = 0x4, offset = 0x4, fixed_abs, tag = 'smem constant byte address 0x4 - core index']
  #allocation1 [shape = 'u32[144,128]{1,0:T(1,128)}', space=vmem, size = 0x12000, scoped, tag = 'internal scratch']
  %s0 = inlined_call_operand.hbm [shape: f32[8,128], index: 0, kind: input, shape index: {}]
  %s1 = inlined_call_operand.vmem [shape: f32[1,128], index: 1, kind: input, shape index: {}]
  %s2 = inlined_call_operand.hbm [shape: f32[8,128], index: 2, kind: output, shape index: {}]
  %s3 = sld [smem:[#allocation0]]
  $region45: #{tpu_custom_call.1} parent=0
    _
  %s5 = ssub.s32 1, %s3
  %s6 = scalar_select 0, %s5, %s3
  $region1: #{tpu_custom_call.1} parent=0
    #allocation2 [shape = 'u8[4096]{0}', space=vmem, size = 0x1000, scoped, tag = 'input window, operand 0, single buffered']
    #allocation3 [shape = 's32[2]{0}', space=sflag, size = 0x8, scoped, tag = 'scoped memory for tpu_custom_call.1']
    #allocation4 [shape = 's32[2]{0}', space=sflag, size = 0x8, scoped, tag = 'scoped memory for tpu_custom_call.1']
    #allocation5 [shape = 'u8[4096]{0}', space=vmem, size = 0x1000, scoped, tag = 'output window, operand 0, single buffered']
    %7 = vsyncpa [#allocation3], 0
    %8 = vsyncpa [#allocation4], 0
    loop: start=0, step=1, limit=4
    $region2: #{tpu_custom_call.1} parent=1 // loop_pre_header
      _
    $region3: #{tpu_custom_call.1} parent=1 // loop_header
      %s10 = sphi 0, %s14
      %p11 = scmp.ge.s32.totalorder %s10, 4
      %s18 = sphi 0, %s18
      %s20 = sphi 0, %s18
      %s21 = sphi 0, %s20
      %s35 = sphi 0, %s21
      %s39 = sphi 0, %s39
      %s41 = sphi 0, %s39
      %s42 = sphi 0, %s41
      %s56 = sphi 0, %s42
      %s60 = sphi 0, %s60
      %s62 = sphi 0, %s60
      %s63 = sphi 0, %s62
      %s77 = sphi 0, %s63
    $region4: #{tpu_custom_call.1} parent=1 // loop_header_branch
      %13 = sbr.rel (%p11) target = $region8
    $region5: #{tpu_custom_call.1} parent=1 // loop_body
      %s15 = ssub.s32 %s10, 1
      %s16 = ssub.s32 %s10, 2
      %s17 = sadd.s32 %s10, 1
      %s19 = sadd.s32 %s18, 1
      %p22 = scmp.eq.s32.totalorder %s10, 1
      %p23 = scmp.ne.s32.totalorder %s18, %s20
      %p24 = scmp.eq.s32.totalorder %s10, 0
      %p25 = por %p23, %p24
      %p26 = scmp.ne.s32.totalorder %s18, %s20
      %p27 = scmp.eq.s32.totalorder %s15, 1
      %p28 = por %p26, %p27
      %p29 = scmp.ne.s32.totalorder %s20, %s21
      %p30 = scmp.eq.s32.totalorder %s15, 0
      %p31 = por %p29, %p30
      %p32 = scmp.ne.s32.totalorder %s20, %s21
      %p33 = scmp.eq.s32.totalorder %s16, 1
      %p34 = por %p32, %p33
      %p36 = scmp.ne.s32.totalorder %s21, %s35
      %p37 = scmp.eq.s32.totalorder %s16, 0
      %p38 = por %p36, %p37
      %s40 = sadd.s32 %s39, 1
      %p43 = scmp.eq.s32.totalorder %s10, 1
      %p44 = scmp.ne.s32.totalorder %s39, %s41
      %p45 = scmp.eq.s32.totalorder %s10, 0
      %p46 = por %p44, %p45
      %p47 = scmp.ne.s32.totalorder %s39, %s41
      %p48 = scmp.eq.s32.totalorder %s15, 1
      %p49 = por %p47, %p48
      %p50 = scmp.ne.s32.totalorder %s41, %s42
      %p51 = scmp.eq.s32.totalorder %s15, 0
      %p52 = por %p50, %p51
      %p53 = scmp.ne.s32.totalorder %s41, %s42
      %p54 = scmp.eq.s32.totalorder %s16, 1
      %p55 = por %p53, %p54
      %p57 = scmp.ne.s32.totalorder %s42, %s56
      %p58 = scmp.eq.s32.totalorder %s16, 0
      %p59 = por %p57, %p58
      %s61 = sadd.s32 %s60, 1
      %p64 = scmp.eq.s32.totalorder %s10, 1
      %p65 = scmp.ne.s32.totalorder %s60, %s62
      %p66 = scmp.eq.s32.totalorder %s10, 0
      %p67 = por %p65, %p66
      %p68 = scmp.ne.s32.totalorder %s60, %s62
      %p69 = scmp.eq.s32.totalorder %s15, 1
      %p70 = por %p68, %p69
      %p71 = scmp.ne.s32.totalorder %s62, %s63
      %p72 = scmp.eq.s32.totalorder %s15, 0
      %p73 = por %p71, %p72
      %p74 = scmp.ne.s32.totalorder %s62, %s63
      %p75 = scmp.eq.s32.totalorder %s16, 1
      %p76 = por %p74, %p75
      %p78 = scmp.ne.s32.totalorder %s63, %s77
      %p79 = scmp.eq.s32.totalorder %s16, 0
      %p80 = por %p78, %p79
      %p81 = scmp.le.s32.totalorder 1, %s10
      %p82 = scmp.lt.s32.totalorder %s10, 3
      %p83 = pnand %p81, %p82
      %p84 = pneg %p83
      // Predicated region
      $region9: #{tpu_custom_call.1} parent=5 // pred_check
        _
      $region10: #{tpu_custom_call.1} parent=5 // pred_check_branch
        %86 = sbr.rel (%p83) target = $region12
      $region11: #{tpu_custom_call.1} parent=5 // pred_region
        %s87 = ssub.s32 %s10, 1
        // Predicated region
        $region13: #{tpu_custom_call.1} parent=11 // pred_check
          %p88 = pneg %p31
        $region14: #{tpu_custom_call.1} parent=11 // pred_check_branch
          %90 = sbr.rel (%p88) target = $region16
        $region15: #{tpu_custom_call.1} parent=11 // pred_region
          %s92 = ssub.s32 128, 128
          %93 = vsyncadd [#allocation3], %s92
          %s95 = sshll.u32 [#allocation2], 4
          %s96 = int_to_ptr.vmem [resolvable:$true] %s95
          %98 = dma.hbm_to_vmem [thread:$0]  %s0, 128, %s96, [#allocation3]
        $region16: #{tpu_custom_call.1} parent=11 // pred_fallthru
          _
        // Predicated region
        $region17: #{tpu_custom_call.1} parent=11 // pred_check
          %p99 = pneg %p52
        $region18: #{tpu_custom_call.1} parent=11 // pred_check_branch
          %101 = sbr.rel (%p99) target = $region20
        $region19: #{tpu_custom_call.1} parent=11 // pred_region
          _
        $region20: #{tpu_custom_call.1} parent=11 // pred_fallthru
          _
      $region12: #{tpu_custom_call.1} parent=5 // pred_fallthru
        _
      %p102 = scmp.lt.s32.totalorder %s10, 2
      // Predicated region
      $region21: #{tpu_custom_call.1} parent=5 // pred_check
        %p103 = pneg %p102
      $region22: #{tpu_custom_call.1} parent=5 // pred_check_branch
        %105 = sbr.rel (%p103) target = $region24
      $region23: #{tpu_custom_call.1} parent=5 // pred_region
        _
      $region24: #{tpu_custom_call.1} parent=5 // pred_fallthru
        _
      %p106 = scmp.le.s32.totalorder 1, %s10
      %p107 = scmp.lt.s32.totalorder %s10, 3
      %p108 = pnand %p106, %p107
      %p109 = pneg %p108
      // Predicated region
      $region25: #{tpu_custom_call.1} parent=5 // pred_check
        _
      $region26: #{tpu_custom_call.1} parent=5 // pred_check_branch
        %111 = sbr.rel (%p108) target = $region28
      $region27: #{tpu_custom_call.1} parent=5 // pred_region
        %s112 = ssub.s32 %s10, 1
        // Predicated region
        $region29: #{tpu_custom_call.1} parent=27 // pred_check
          %p113 = pneg %p31
        $region30: #{tpu_custom_call.1} parent=27 // pred_check_branch
          %115 = sbr.rel (%p113) target = $region32
        $region31: #{tpu_custom_call.1} parent=27 // pred_region
          %116 = dma.done [#allocation3], 128
        $region32: #{tpu_custom_call.1} parent=27 // pred_fallthru
          _
        %p117 = pneg %p31
        %p118 = pneg %p28
        %p119 = pneg %p52
        %p120 = pneg %p49
        %p121 = pneg %p73
        %p122 = pneg %p70
        %v123 = vld [vmem:[#allocation2] sm:$0xff]
        %v124 = vld [vmem:[%s1] sm:$0x1]
        %v126 = vlaneseq
        %v127 = vshrl.u32 %v126, 7
        %v128 = vsub.s32 0, %v127
        %v129 = vrot.slane %v124, %v128
        %v131 = vadd.f32 %v123, %v129
        %132 = vst [vmem:[#allocation5] sm:$0xff] %v131
        // Predicated region
        $region33: #{tpu_custom_call.1} parent=27 // pred_check
          %p133 = pneg %p70
        $region34: #{tpu_custom_call.1} parent=27 // pred_check_branch
          %135 = sbr.rel (%p133) target = $region36
        $region35: #{tpu_custom_call.1} parent=27 // pred_region
          %s137 = ssub.s32 128, 128
          %138 = vsyncadd [#allocation4], %s137
          %s140 = sshll.u32 [#allocation5], 4
          %s141 = int_to_ptr.vmem [resolvable:$true] %s140
          %143 = dma.vmem_to_hbm [thread:$0]  %s141, 128, %s2, [#allocation4]
        $region36: #{tpu_custom_call.1} parent=27 // pred_fallthru
          _
        // Predicated region
        $region37: #{tpu_custom_call.1} parent=27 // pred_check
          %p144 = pneg %p70
        $region38: #{tpu_custom_call.1} parent=27 // pred_check_branch
          %146 = sbr.rel (%p144) target = $region40
        $region39: #{tpu_custom_call.1} parent=27 // pred_region
          %147 = dma.done [#allocation4], 128
        $region40: #{tpu_custom_call.1} parent=27 // pred_fallthru
          _
      $region28: #{tpu_custom_call.1} parent=5 // pred_fallthru
        _
      %p148 = scmp.le.s32.totalorder 2, %s10
      // Predicated region
      $region41: #{tpu_custom_call.1} parent=5 // pred_check
        %p149 = pneg %p148
      $region42: #{tpu_custom_call.1} parent=5 // pred_check_branch
        %151 = sbr.rel (%p149) target = $region44
      $region43: #{tpu_custom_call.1} parent=5 // pred_region
        %s152 = ssub.s32 %s10, 2
      $region44: #{tpu_custom_call.1} parent=5 // pred_fallthru
        _
    $region6: #{tpu_custom_call.1} parent=1 // loop_footer
      %s14 = sadd.s32 1, %s10
    $region7: #{tpu_custom_call.1} parent=1 // loop_footer_branch
      %9 = sbr.rel target = $region3
    $region8: #{tpu_custom_call.1} parent=1 // loop_exit
      _
    %153 = vsyncpa [#allocation3], 1
    %s154 = scalar_lea.sflag [#allocation3], 1
    %155 = vsyncpa %s154, 1
    %156 = vsyncpa [#allocation4], 1
    %s157 = scalar_lea.sflag [#allocation4], 1
    %158 = vsyncpa %s157, 1

// kernel: _lambda_.8
$region0: #{_lambda_.8}
  #allocation0 [shape = 'u32[]', space=smem, size = 0x4, offset = 0x4, fixed_abs, tag = 'smem constant byte address 0x4 - core index']
  #allocation1 [shape = 'u32[144,128]{1,0:T(1,128)}', space=vmem, size = 0x12000, scoped, tag = 'internal scratch']
  #allocation2 [shape = 'f32[8,32]{1,0:T(8,128)}', space=vmem, size = 0x1000, scoped, tag = 'scratch operand']
  %s0 = inlined_call_operand.vmem [shape: f32[2,8,32], index: 0, kind: input, shape index: {}]
  %s1 = inlined_call_operand.vmem [shape: f32[2,10,32], index: 1, kind: input, shape index: {}]
  %s2 = inlined_call_operand.vmem [shape: bf16[32,32], index: 2, kind: input, shape index: {}]
  %s3 = inlined_call_operand.vmem [shape: f32[1,32], index: 3, kind: input, shape index: {}]
  %s4 = inlined_call_operand.vmem [shape: bf16[32,64], index: 4, kind: input, shape index: {}]
  %s5 = inlined_call_operand.vmem [shape: f32[1,64], index: 5, kind: input, shape index: {}]
  %s6 = inlined_call_operand.vmem [shape: bf16[32,32], index: 6, kind: input, shape index: {}]
  %s7 = inlined_call_operand.vmem [shape: f32[1,32], index: 7, kind: input, shape index: {}]
  %s8 = inlined_call_operand.vmem [shape: f32[1,32], index: 8, kind: input, shape index: {}]
  %s9 = inlined_call_operand.vmem [shape: f32[1,32], index: 9, kind: input, shape index: {}]
  %s10 = inlined_call_operand.vmem [shape: f32[2,8,32], index: 10, kind: output, shape index: {}]
  %s11 = sld [smem:[#allocation0]]
  $region73: #{_lambda_.8} parent=0
    _
  %s13 = ssub.s32 1, %s11
  %s14 = scalar_select 0, %s13, %s11
  loop: start=0, step=1, limit=4
  $region2: #{_lambda_.8} parent=0 // loop_pre_header
    _
  $region3: #{_lambda_.8} parent=0 // loop_header
    %s16 = sphi 0, %s20
    %p17 = scmp.ge.s32.totalorder %s16, 4
    %s23 = sphi 0, %s35
    %s24 = sphi 0, %s31
    %s25 = sphi 0, %s23
    %s26 = sphi 0, %s24
    %s27 = sphi 0, %s25
    %s28 = sphi 0, %s26
    %s40 = sphi 0, %s42
    %s43 = sphi 0, %s40
    %s44 = sphi 0, %s43
    %s60 = sphi 0, %s44
    %s66 = sphi 0, %s68
    %s69 = sphi 0, %s66
    %s70 = sphi 0, %s69
    %s86 = sphi 0, %s70
    %s90 = sphi 0, %s90
    %s92 = sphi 0, %s90
    %s93 = sphi 0, %s92
    %s107 = sphi 0, %s93
    %s111 = sphi 0, %s111
    %s113 = sphi 0, %s111
    %s114 = sphi 0, %s113
    %s128 = sphi 0, %s114
    %s132 = sphi 0, %s132
    %s134 = sphi 0, %s132
    %s135 = sphi 0, %s134
    %s149 = sphi 0, %s135
    %s153 = sphi 0, %s153
    %s155 = sphi 0, %s153
    %s156 = sphi 0, %s155
    %s170 = sphi 0, %s156
    %s174 = sphi 0, %s174
    %s176 = sphi 0, %s174
    %s177 = sphi 0, %s176
    %s191 = sphi 0, %s177
    %s195 = sphi 0, %s195
    %s197 = sphi 0, %s195
    %s198 = sphi 0, %s197
    %s212 = sphi 0, %s198
    %s216 = sphi 0, %s216
    %s218 = sphi 0, %s216
    %s219 = sphi 0, %s218
    %s233 = sphi 0, %s219
    %s237 = sphi 0, %s237
    %s239 = sphi 0, %s237
    %s240 = sphi 0, %s239
    %s254 = sphi 0, %s240
    %s262 = sphi 0, %s264
    %s265 = sphi 0, %s262
    %s266 = sphi 0, %s265
    %s282 = sphi 0, %s266
  $region4: #{_lambda_.8} parent=0 // loop_header_branch
    %19 = sbr.rel (%p17) target = $region8
  $region5: #{_lambda_.8} parent=0 // loop_body
    %s21 = ssub.s32 %s16, 1
    %s22 = ssub.s32 %s16, 2
    %s29 = sadd.s32 1, %s24
    %p30 = scmp.ge.s32.totalorder %s29, 1
    %s31 = scalar_select %p30, 0, %s29
    %s32 = sadd.s32 1, %s23
    %s33 = scalar_select %p30, %s32, %s23
    %p34 = scmp.ge.s32.totalorder %s33, 2
    %s35 = scalar_select %p34, 0, %s33
    %s36 = ssub.s32 %s23, %s35
    %s37 = ssub.s32 %s24, %s31
    %s38 = sor.u32 %s36, %s37
    %p39 = scmp.eq.s32.totalorder %s38, 0
    %s41 = sadd.s32 %s40, 1
    %s42 = scalar_select %p39, %s40, %s41
    %p45 = pneg %p39
    %p46 = scmp.eq.s32.totalorder %s16, 1
    %p47 = por %p45, %p46
    %p48 = scmp.ne.s32.totalorder %s40, %s43
    %p49 = scmp.eq.s32.totalorder %s16, 0
    %p50 = por %p48, %p49
    %p51 = scmp.ne.s32.totalorder %s40, %s43
    %p52 = scmp.eq.s32.totalorder %s21, 1
    %p53 = por %p51, %p52
    %p54 = scmp.ne.s32.totalorder %s43, %s44
    %p55 = scmp.eq.s32.totalorder %s21, 0
    %p56 = por %p54, %p55
    %p57 = scmp.ne.s32.totalorder %s43, %s44
    %p58 = scmp.eq.s32.totalorder %s22, 1
    %p59 = por %p57, %p58
    %p61 = scmp.ne.s32.totalorder %s44, %s60
    %p62 = scmp.eq.s32.totalorder %s22, 0
    %p63 = por %p61, %p62
    %s64 = ssub.s32 %s23, %s35
    %p65 = scmp.eq.s32.totalorder %s64, 0
    %s67 = sadd.s32 %s66, 1
    %s68 = scalar_select %p65, %s66, %s67
    %p71 = pneg %p65
    %p72 = scmp.eq.s32.totalorder %s16, 1
    %p73 = por %p71, %p72
    %p74 = scmp.ne.s32.totalorder %s66, %s69
    %p75 = scmp.eq.s32.totalorder %s16, 0
    %p76 = por %p74, %p75
    %p77 = scmp.ne.s32.totalorder %s66, %s69
    %p78 = scmp.eq.s32.totalorder %s21, 1
    %p79 = por %p77, %p78
    %p80 = scmp.ne.s32.totalorder %s69, %s70
    %p81 = scmp.eq.s32.totalorder %s21, 0
    %p82 = por %p80, %p81
    %p83 = scmp.ne.s32.totalorder %s69, %s70
    %p84 = scmp.eq.s32.totalorder %s22, 1
    %p85 = por %p83, %p84
    %p87 = scmp.ne.s32.totalorder %s70, %s86
    %p88 = scmp.eq.s32.totalorder %s22, 0
    %p89 = por %p87, %p88
    %s91 = sadd.s32 %s90, 1
    %p94 = scmp.eq.s32.totalorder %s16, 1
    %p95 = scmp.ne.s32.totalorder %s90, %s92
    %p96 = scmp.eq.s32.totalorder %s16, 0
    %p97 = por %p95, %p96
    %p98 = scmp.ne.s32.totalorder %s90, %s92
    %p99 = scmp.eq.s32.totalorder %s21, 1
    %p100 = por %p98, %p99
    %p101 = scmp.ne.s32.totalorder %s92, %s93
    %p102 = scmp.eq.s32.totalorder %s21, 0
    %p103 = por %p101, %p102
    %p104 = scmp.ne.s32.totalorder %s92, %s93
    %p105 = scmp.eq.s32.totalorder %s22, 1
    %p106 = por %p104, %p105
    %p108 = scmp.ne.s32.totalorder %s93, %s107
    %p109 = scmp.eq.s32.totalorder %s22, 0
    %p110 = por %p108, %p109
    %s112 = sadd.s32 %s111, 1
    %p115 = scmp.eq.s32.totalorder %s16, 1
    %p116 = scmp.ne.s32.totalorder %s111, %s113
    %p117 = scmp.eq.s32.totalorder %s16, 0
    %p118 = por %p116, %p117
    %p119 = scmp.ne.s32.totalorder %s111, %s113
    %p120 = scmp.eq.s32.totalorder %s21, 1
    %p121 = por %p119, %p120
    %p122 = scmp.ne.s32.totalorder %s113, %s114
    %p123 = scmp.eq.s32.totalorder %s21, 0
    %p124 = por %p122, %p123
    %p125 = scmp.ne.s32.totalorder %s113, %s114
    %p126 = scmp.eq.s32.totalorder %s22, 1
    %p127 = por %p125, %p126
    %p129 = scmp.ne.s32.totalorder %s114, %s128
    %p130 = scmp.eq.s32.totalorder %s22, 0
    %p131 = por %p129, %p130
    %s133 = sadd.s32 %s132, 1
    %p136 = scmp.eq.s32.totalorder %s16, 1
    %p137 = scmp.ne.s32.totalorder %s132, %s134
    %p138 = scmp.eq.s32.totalorder %s16, 0
    %p139 = por %p137, %p138
    %p140 = scmp.ne.s32.totalorder %s132, %s134
    %p141 = scmp.eq.s32.totalorder %s21, 1
    %p142 = por %p140, %p141
    %p143 = scmp.ne.s32.totalorder %s134, %s135
    %p144 = scmp.eq.s32.totalorder %s21, 0
    %p145 = por %p143, %p144
    %p146 = scmp.ne.s32.totalorder %s134, %s135
    %p147 = scmp.eq.s32.totalorder %s22, 1
    %p148 = por %p146, %p147
    %p150 = scmp.ne.s32.totalorder %s135, %s149
    %p151 = scmp.eq.s32.totalorder %s22, 0
    %p152 = por %p150, %p151
    %s154 = sadd.s32 %s153, 1
    %p157 = scmp.eq.s32.totalorder %s16, 1
    %p158 = scmp.ne.s32.totalorder %s153, %s155
    %p159 = scmp.eq.s32.totalorder %s16, 0
    %p160 = por %p158, %p159
    %p161 = scmp.ne.s32.totalorder %s153, %s155
    %p162 = scmp.eq.s32.totalorder %s21, 1
    %p163 = por %p161, %p162
    %p164 = scmp.ne.s32.totalorder %s155, %s156
    %p165 = scmp.eq.s32.totalorder %s21, 0
    %p166 = por %p164, %p165
    %p167 = scmp.ne.s32.totalorder %s155, %s156
    %p168 = scmp.eq.s32.totalorder %s22, 1
    %p169 = por %p167, %p168
    %p171 = scmp.ne.s32.totalorder %s156, %s170
    %p172 = scmp.eq.s32.totalorder %s22, 0
    %p173 = por %p171, %p172
    %s175 = sadd.s32 %s174, 1
    %p178 = scmp.eq.s32.totalorder %s16, 1
    %p179 = scmp.ne.s32.totalorder %s174, %s176
    %p180 = scmp.eq.s32.totalorder %s16, 0
    %p181 = por %p179, %p180
    %p182 = scmp.ne.s32.totalorder %s174, %s176
    %p183 = scmp.eq.s32.totalorder %s21, 1
    %p184 = por %p182, %p183
    %p185 = scmp.ne.s32.totalorder %s176, %s177
    %p186 = scmp.eq.s32.totalorder %s21, 0
    %p187 = por %p185, %p186
    %p188 = scmp.ne.s32.totalorder %s176, %s177
    %p189 = scmp.eq.s32.totalorder %s22, 1
    %p190 = por %p188, %p189
    %p192 = scmp.ne.s32.totalorder %s177, %s191
    %p193 = scmp.eq.s32.totalorder %s22, 0
    %p194 = por %p192, %p193
    %s196 = sadd.s32 %s195, 1
    %p199 = scmp.eq.s32.totalorder %s16, 1
    %p200 = scmp.ne.s32.totalorder %s195, %s197
    %p201 = scmp.eq.s32.totalorder %s16, 0
    %p202 = por %p200, %p201
    %p203 = scmp.ne.s32.totalorder %s195, %s197
    %p204 = scmp.eq.s32.totalorder %s21, 1
    %p205 = por %p203, %p204
    %p206 = scmp.ne.s32.totalorder %s197, %s198
    %p207 = scmp.eq.s32.totalorder %s21, 0
    %p208 = por %p206, %p207
    %p209 = scmp.ne.s32.totalorder %s197, %s198
    %p210 = scmp.eq.s32.totalorder %s22, 1
    %p211 = por %p209, %p210
    %p213 = scmp.ne.s32.totalorder %s198, %s212
    %p214 = scmp.eq.s32.totalorder %s22, 0
    %p215 = por %p213, %p214
    %s217 = sadd.s32 %s216, 1
    %p220 = scmp.eq.s32.totalorder %s16, 1
    %p221 = scmp.ne.s32.totalorder %s216, %s218
    %p222 = scmp.eq.s32.totalorder %s16, 0
    %p223 = por %p221, %p222
    %p224 = scmp.ne.s32.totalorder %s216, %s218
    %p225 = scmp.eq.s32.totalorder %s21, 1
    %p226 = por %p224, %p225
    %p227 = scmp.ne.s32.totalorder %s218, %s219
    %p228 = scmp.eq.s32.totalorder %s21, 0
    %p229 = por %p227, %p228
    %p230 = scmp.ne.s32.totalorder %s218, %s219
    %p231 = scmp.eq.s32.totalorder %s22, 1
    %p232 = por %p230, %p231
    %p234 = scmp.ne.s32.totalorder %s219, %s233
    %p235 = scmp.eq.s32.totalorder %s22, 0
    %p236 = por %p234, %p235
    %s238 = sadd.s32 %s237, 1
    %p241 = scmp.eq.s32.totalorder %s16, 1
    %p242 = scmp.ne.s32.totalorder %s237, %s239
    %p243 = scmp.eq.s32.totalorder %s16, 0
    %p244 = por %p242, %p243
    %p245 = scmp.ne.s32.totalorder %s237, %s239
    %p246 = scmp.eq.s32.totalorder %s21, 1
    %p247 = por %p245, %p246
    %p248 = scmp.ne.s32.totalorder %s239, %s240
    %p249 = scmp.eq.s32.totalorder %s21, 0
    %p250 = por %p248, %p249
    %p251 = scmp.ne.s32.totalorder %s239, %s240
    %p252 = scmp.eq.s32.totalorder %s22, 1
    %p253 = por %p251, %p252
    %p255 = scmp.ne.s32.totalorder %s240, %s254
    %p256 = scmp.eq.s32.totalorder %s22, 0
    %p257 = por %p255, %p256
    %s258 = ssub.s32 %s23, %s35
    %s259 = ssub.s32 %s24, %s31
    %s260 = sor.u32 %s258, %s259
    %p261 = scmp.eq.s32.totalorder %s260, 0
    %s263 = sadd.s32 %s262, 1
    %s264 = scalar_select %p261, %s262, %s263
    %p267 = pneg %p261
    %p268 = scmp.eq.s32.totalorder %s16, 1
    %p269 = por %p267, %p268
    %p270 = scmp.ne.s32.totalorder %s262, %s265
    %p271 = scmp.eq.s32.totalorder %s16, 0
    %p272 = por %p270, %p271
    %p273 = scmp.ne.s32.totalorder %s262, %s265
    %p274 = scmp.eq.s32.totalorder %s21, 1
    %p275 = por %p273, %p274
    %p276 = scmp.ne.s32.totalorder %s265, %s266
    %p277 = scmp.eq.s32.totalorder %s21, 0
    %p278 = por %p276, %p277
    %p279 = scmp.ne.s32.totalorder %s265, %s266
    %p280 = scmp.eq.s32.totalorder %s22, 1
    %p281 = por %p279, %p280
    %p283 = scmp.ne.s32.totalorder %s266, %s282
    %p284 = scmp.eq.s32.totalorder %s22, 0
    %p285 = por %p283, %p284
    %p286 = scmp.le.s32.totalorder 1, %s16
    %p287 = scmp.lt.s32.totalorder %s16, 3
    %p288 = pnand %p286, %p287
    %p289 = pneg %p288
    // Predicated region
    $region9: #{_lambda_.8} parent=5 // pred_check
      _
    $region10: #{_lambda_.8} parent=5 // pred_check_branch
      %291 = sbr.rel (%p288) target = $region12
    $region11: #{_lambda_.8} parent=5 // pred_region
      %s292 = ssub.s32 %s16, 1
      // Predicated region
      $region13: #{_lambda_.8} parent=11 // pred_check
        %p293 = pneg %p103
      $region14: #{_lambda_.8} parent=11 // pred_check_branch
        %295 = sbr.rel (%p293) target = $region16
      $region15: #{_lambda_.8} parent=11 // pred_region
        _
      $region16: #{_lambda_.8} parent=11 // pred_fallthru
        _
      // Predicated region
      $region17: #{_lambda_.8} parent=11 // pred_check
        %p296 = pneg %p124
      $region18: #{_lambda_.8} parent=11 // pred_check_branch
        %298 = sbr.rel (%p296) target = $region20
      $region19: #{_lambda_.8} parent=11 // pred_region
        _
      $region20: #{_lambda_.8} parent=11 // pred_fallthru
        _
      // Predicated region
      $region21: #{_lambda_.8} parent=11 // pred_check
        %p299 = pneg %p145
      $region22: #{_lambda_.8} parent=11 // pred_check_branch
        %301 = sbr.rel (%p299) target = $region24
      $region23: #{_lambda_.8} parent=11 // pred_region
        _
      $region24: #{_lambda_.8} parent=11 // pred_fallthru
        _
      // Predicated region
      $region25: #{_lambda_.8} parent=11 // pred_check
        %p302 = pneg %p166
      $region26: #{_lambda_.8} parent=11 // pred_check_branch
        %304 = sbr.rel (%p302) target = $region28
      $region27: #{_lambda_.8} parent=11 // pred_region
        _
      $region28: #{_lambda_.8} parent=11 // pred_fallthru
        _
      // Predicated region
      $region29: #{_lambda_.8} parent=11 // pred_check
        %p305 = pneg %p187
      $region30: #{_lambda_.8} parent=11 // pred_check_branch
        %307 = sbr.rel (%p305) target = $region32
      $region31: #{_lambda_.8} parent=11 // pred_region
        _
      $region32: #{_lambda_.8} parent=11 // pred_fallthru
        _
      // Predicated region
      $region33: #{_lambda_.8} parent=11 // pred_check
        %p308 = pneg %p208
      $region34: #{_lambda_.8} parent=11 // pred_check_branch
        %310 = sbr.rel (%p308) target = $region36
      $region35: #{_lambda_.8} parent=11 // pred_region
        _
      $region36: #{_lambda_.8} parent=11 // pred_fallthru
        _
      // Predicated region
      $region37: #{_lambda_.8} parent=11 // pred_check
        %p311 = pneg %p229
      $region38: #{_lambda_.8} parent=11 // pred_check_branch
        %313 = sbr.rel (%p311) target = $region40
      $region39: #{_lambda_.8} parent=11 // pred_region
        _
      $region40: #{_lambda_.8} parent=11 // pred_fallthru
        _
      // Predicated region
      $region41: #{_lambda_.8} parent=11 // pred_check
        %p314 = pneg %p250
      $region42: #{_lambda_.8} parent=11 // pred_check_branch
        %316 = sbr.rel (%p314) target = $region44
      $region43: #{_lambda_.8} parent=11 // pred_region
        _
      $region44: #{_lambda_.8} parent=11 // pred_fallthru
        _
    $region12: #{_lambda_.8} parent=5 // pred_fallthru
      _
    %p317 = scmp.lt.s32.totalorder %s16, 2
    // Predicated region
    $region45: #{_lambda_.8} parent=5 // pred_check
      %p318 = pneg %p317
    $region46: #{_lambda_.8} parent=5 // pred_check_branch
      %320 = sbr.rel (%p318) target = $region48
    $region47: #{_lambda_.8} parent=5 // pred_region
      // Predicated region
      $region49: #{_lambda_.8} parent=47 // pred_check
        %p321 = pneg %p50
      $region50: #{_lambda_.8} parent=47 // pred_check_branch
        %323 = sbr.rel (%p321) target = $region52
      $region51: #{_lambda_.8} parent=47 // pred_region
        %p324 = scmp.lt.s32.totalorder %s23, 1
        %s325 = scalar_select %p324, %s23, 1
        %p326 = scmp.lt.s32.totalorder %s24, 0
        %s327 = scalar_select %p326, %s24, 0
        %s328 = sadd.s32 %s327, %s325
        %s329 = smul.addr %s328, 8
        %s330 = scalar_lea.vmem %s0, %s329
      $region52: #{_lambda_.8} parent=47 // pred_fallthru
        _
      // Predicated region
      $region53: #{_lambda_.8} parent=47 // pred_check
        %p331 = pneg %p76
      $region54: #{_lambda_.8} parent=47 // pred_check_branch
        %333 = sbr.rel (%p331) target = $region56
      $region55: #{_lambda_.8} parent=47 // pred_region
        %p334 = scmp.lt.s32.totalorder %s23, 1
        %s335 = scalar_select %p334, %s23, 1
        %s336 = smul.addr %s335, 2
        %s337 = smul.addr %s336, 8
        %s338 = scalar_lea.vmem %s1, %s337
      $region56: #{_lambda_.8} parent=47 // pred_fallthru
        _
    $region48: #{_lambda_.8} parent=5 // pred_fallthru
      _
    %p339 = scmp.le.s32.totalorder 1, %s16
    %p340 = scmp.lt.s32.totalorder %s16, 3
    %p341 = pnand %p339, %p340
    %p342 = pneg %p341
    // Predicated region
    $region57: #{_lambda_.8} parent=5 // pred_check
      _
    $region58: #{_lambda_.8} parent=5 // pred_check_branch
      %344 = sbr.rel (%p341) target = $region60
    $region59: #{_lambda_.8} parent=5 // pred_region
      %s345 = ssub.s32 %s16, 1
      %p346 = scmp.lt.s32.totalorder %s25, 1
      %s347 = scalar_select %p346, %s25, 1
      %p348 = scmp.lt.s32.totalorder %s26, 0
      %s349 = scalar_select %p348, %s26, 0
      %s350 = sadd.s32 %s349, %s347
      %s351 = smul.addr %s350, 8
      %s352 = scalar_lea.vmem %s0, %s351
      %p353 = pneg %p56
      %p354 = pneg %p53
      %p355 = scmp.lt.s32.totalorder %s25, 1
      %s356 = scalar_select %p355, %s25, 1
      %s357 = smul.addr %s356, 2
      %s358 = smul.addr %s357, 8
      %s359 = scalar_lea.vmem %s1, %s358
      %p360 = pneg %p82
      %p361 = pneg %p79
      %p362 = pneg %p103
      %p363 = pneg %p100
      %p364 = pneg %p124
      %p365 = pneg %p121
      %p366 = pneg %p145
      %p367 = pneg %p142
      %p368 = pneg %p166
      %p369 = pneg %p163
      %p370 = pneg %p187
      %p371 = pneg %p184
      %p372 = pneg %p208
      %p373 = pneg %p205
      %p374 = pneg %p229
      %p375 = pneg %p226
      %p376 = pneg %p250
      %p377 = pneg %p247
      %p378 = pneg %p278
      %p379 = pneg %p275
      %p380 = scmp.lt.s32.totalorder %s25, 1
      %s381 = scalar_select %p380, %s25, 1
      %p382 = scmp.lt.s32.totalorder %s26, 0
      %s383 = scalar_select %p382, %s26, 0
      %s384 = sadd.s32 %s383, %s381
      %s385 = smul.addr %s384, 8
      %s386 = scalar_lea.vmem %s10, %s385
      %p387 = scmp.lt.s32.totalorder %s25, 1
      %s388 = scalar_select %p387, %s25, 1
      %p389 = scmp.lt.s32.totalorder %s26, 0
      %s390 = scalar_select %p389, %s26, 0
      %s391 = sadd.s32 %s390, %s388
      %s392 = smul.addr %s391, 8
      %s393 = scalar_lea.vmem %s0, %s392
      %p394 = scmp.lt.s32.totalorder %s25, 1
      %s395 = scalar_select %p394, %s25, 1
      %s396 = smul.addr %s395, 2
      %s397 = smul.addr %s396, 8
      %s398 = scalar_lea.vmem %s1, %s397
      %p399 = scmp.lt.s32.totalorder %s25, 1
      %s400 = scalar_select %p399, %s25, 1
      %p401 = scmp.lt.s32.totalorder %s26, 0
      %s402 = scalar_select %p401, %s26, 0
      %s403 = sadd.s32 %s402, %s400
      %s404 = smul.addr %s403, 8
      %s405 = scalar_lea.vmem %s10, %s404
      %v407 = vld [vmem:[%s393] sm:$0xff]
      %v408 = vld [vmem:[%s398] sm:$0xff]
      %v409 = vld [vmem:[%s398 + $0x8] sm:$0x3]
      %v410 = vpack.c.bf16 %v407, %v407
      %v411 = vld [vmem:[%s2] sm:$0xf]
      %v412 = vld [vmem:[%s2 + $0x4] sm:$0xf]
      %v413 = vld [vmem:[%s2 + $0x8] sm:$0xf]
      %v414 = vld [vmem:[%s2 + $0xc] sm:$0xf]
      %v415 = vld [vmem:[%s3] sm:$0x1]
      %v417 = vlaneseq
      %v418 = vshrl.u32 %v417, 7
      %v419 = vsub.s32 0, %v418
      %v420 = vrot.slane %v415, %v419
      %v426 = vunpack.c.l.b16 %v411
      %v427 = vunpack.c.l.b16 %v412
      %v428 = vunpack.c.l.b16 %v413
      %v429 = vunpack.c.l.b16 %v414
      %v430 = vpack.c.b16 %v427, %v426
      %v431 = vpack.c.b16 %v429, %v428
      %vm434 = vcmask 261120
      %v436 = vsel %vm434, %v410, 0
      %438 = vmatprep.subr.bf16.mxu0 0
      %439 = vmatpush1.bf16.msra.mxu0 %v430
      %440 = vmatprep.subr.bf16.mxu0 0
      %441 = vmatpush1.bf16.msra.mxu0 %v431
      %442 = vmatprep.subr.bf16.mxu0 0
      %443 = vmatpush1.bf16.msra.mxu0 0
      %444 = vmatprep.subr.bf16.mxu0 0
      %445 = vmatpush1.bf16.msra.mxu0 0
      %446 = vmatprep.subr.bf16.mxu0 0
      %447 = vmatpush1.bf16.msra.mxu0 0
      %448 = vmatprep.subr.bf16.mxu0 0
      %449 = vmatpush1.bf16.msra.mxu0 0
      %450 = vmatprep.subr.bf16.mxu0 0
      %451 = vmatpush1.bf16.msra.mxu0 0
      %452 = vmatprep.subr.bf16.mxu0 0
      %453 = vmatpush1.bf16.msra.mxu0 0
      %454 = vmatprep.subr.bf16.mxu0 0
      %455 = vmatpush1.bf16.msra.mxu0 0
      %456 = vmatprep.subr.bf16.mxu0 0
      %457 = vmatpush1.bf16.msra.mxu0 0
      %458 = vmatprep.subr.bf16.mxu0 0
      %459 = vmatpush1.bf16.msra.mxu0 0
      %460 = vmatprep.subr.bf16.mxu0 0
      %461 = vmatpush1.bf16.msra.mxu0 0
      %462 = vmatprep.subr.bf16.mxu0 0
      %463 = vmatpush1.bf16.msra.mxu0 0
      %464 = vmatprep.subr.bf16.mxu0 0
      %465 = vmatpush1.bf16.msra.mxu0 0
      %466 = vmatprep.subr.bf16.mxu0 0
      %467 = vmatpush1.bf16.msra.mxu0 0
      %468 = vmatprep.subr.bf16.mxu0 0
      %469 = vmatpush1.bf16.msra.mxu0 0
      %470 = vmatprep.mubr.bf16.mxu0 0
      %471 = vmatmul.mubr.bf16.gmra.mrb[0].mxu0 %v436
      %v472 = vpop.f32.mrb[0].mxu0
      %v473 = vadd.f32 %v420, %v472
      %v474 = vpop.f32.mrb[0].mxu0
      %v475 = vpop.f32.mrb[0].mxu0
      %v476 = vpop.f32.mrb[0].mxu0
      %477 = vdwg.mxu0
      %v478 = vmul.f32 %v473, 0.35355338
      %v479 = vpack.c.bf16 %v409, %v408
      %v480 = vld [vmem:[%s4] sm:$0xf]
      %v481 = vld [vmem:[%s4 + $0x4] sm:$0xf]
      %v482 = vld [vmem:[%s4 + $0x8] sm:$0xf]
      %v483 = vld [vmem:[%s4 + $0xc] sm:$0xf]
      %v484 = vld [vmem:[%s5] sm:$0x1]
      %v486 = vlaneseq
      %v487 = vshrl.u32 %v486, 7
      %v488 = vsub.s32 0, %v487
      %v489 = vrot.slane %v484, %v488
      %v495 = vunpack.c.l.b16 %v480
      %v496 = vunpack.c.l.b16 %v481
      %v497 = vunpack.c.l.b16 %v482
      %v498 = vunpack.c.l.b16 %v483
      %v499 = vpack.c.b16 %v496, %v495
      %v500 = vpack.c.b16 %v498, %v497
      %v504 = vsel %vm434, %v479, 0
      %506 = vmatprep.subr.bf16.mxu0 0
      %507 = vmatpush1.bf16.msra.mxu0 %v499
      %508 = vmatprep.subr.bf16.mxu0 0
      %509 = vmatpush1.bf16.msra.mxu0 %v500
      %510 = vmatprep.subr.bf16.mxu0 0
      %511 = vmatpush1.bf16.msra.mxu0 0
      %512 = vmatprep.subr.bf16.mxu0 0
      %513 = vmatpush1.bf16.msra.mxu0 0
      %514 = vmatprep.subr.bf16.mxu0 0
      %515 = vmatpush1.bf16.msra.mxu0 0
      %516 = vmatprep.subr.bf16.mxu0 0
      %517 = vmatpush1.bf16.msra.mxu0 0
      %518 = vmatprep.subr.bf16.mxu0 0
      %519 = vmatpush1.bf16.msra.mxu0 0
      %520 = vmatprep.subr.bf16.mxu0 0
      %521 = vmatpush1.bf16.msra.mxu0 0
      %522 = vmatprep.subr.bf16.mxu0 0
      %523 = vmatpush1.bf16.msra.mxu0 0
      %524 = vmatprep.subr.bf16.mxu0 0
      %525 = vmatpush1.bf16.msra.mxu0 0
      %526 = vmatprep.subr.bf16.mxu0 0
      %527 = vmatpush1.bf16.msra.mxu0 0
      %528 = vmatprep.subr.bf16.mxu0 0
      %529 = vmatpush1.bf16.msra.mxu0 0
      %530 = vmatprep.subr.bf16.mxu0 0
      %531 = vmatpush1.bf16.msra.mxu0 0
      %532 = vmatprep.subr.bf16.mxu0 0
      %533 = vmatpush1.bf16.msra.mxu0 0
      %534 = vmatprep.subr.bf16.mxu0 0
      %535 = vmatpush1.bf16.msra.mxu0 0
      %536 = vmatprep.subr.bf16.mxu0 0
      %537 = vmatpush1.bf16.msra.mxu0 0
      %538 = vmatprep.mubr.bf16.mxu0 0
      %539 = vmatmul.mubr.bf16.gmra.mrb[0].mxu0 %v504
      %v540 = vpop.f32.mrb[0].mxu0
      %v541 = vadd.f32 %v489, %v540
      %v542 = vpop.f32.mrb[0].mxu0
      %v543 = vpop.f32.mrb[0].mxu0
      %v544 = vadd.f32 %v489, %v543
      %v545 = vpop.f32.mrb[0].mxu0
      %546 = vdwg.mxu0
      %v547 = vpack.c.bf16 %v478, %v478
      %v548 = vpack.c.bf16 %v544, %v541
      %vm549 = vcmask 64512
      %v551 = vsel %vm549, %v547, 0
      %v554 = vsel %vm549, %v548, 0
      %556 = vmatprep.subr.bf16.mxu0 0
      %557 = vmatpush1.bf16.xpose.msra.mxu0 %v554
      %558 = vmatprep.subr.bf16.mxu0 0
      %559 = vmatpush1.bf16.xpose.msra.mxu0 0
      %560 = vmatprep.subr.bf16.mxu0 0
      %561 = vmatpush1.bf16.xpose.msra.mxu0 0
      %562 = vmatprep.subr.bf16.mxu0 0
      %563 = vmatpush1.bf16.xpose.msra.mxu0 0
      %564 = vmatprep.subr.bf16.mxu0 0
      %565 = vmatpush1.bf16.xpose.msra.mxu0 0
      %566 = vmatprep.subr.bf16.mxu0 0
      %567 = vmatpush1.bf16.xpose.msra.mxu0 0
      %568 = vmatprep.subr.bf16.mxu0 0
      %569 = vmatpush1.bf16.xpose.msra.mxu0 0
      %570 = vmatprep.subr.bf16.mxu0 0
      %571 = vmatpush1.bf16.xpose.msra.mxu0 0
      %572 = vmatprep.subr.bf16.mxu0 0
      %573 = vmatpush1.bf16.xpose.msra.mxu0 0
      %574 = vmatprep.subr.bf16.mxu0 0
      %575 = vmatpush1.bf16.xpose.msra.mxu0 0
      %576 = vmatprep.subr.bf16.mxu0 0
      %577 = vmatpush1.bf16.xpose.msra.mxu0 0
      %578 = vmatprep.subr.bf16.mxu0 0
      %579 = vmatpush1.bf16.xpose.msra.mxu0 0
      %580 = vmatprep.subr.bf16.mxu0 0
      %581 = vmatpush1.bf16.xpose.msra.mxu0 0
      %582 = vmatprep.subr.bf16.mxu0 0
      %583 = vmatpush1.bf16.xpose.msra.mxu0 0
      %584 = vmatprep.subr.bf16.mxu0 0
      %585 = vmatpush1.bf16.xpose.msra.mxu0 0
      %586 = vmatprep.subr.bf16.mxu0 0
      %587 = vmatpush1.bf16.xpose.msra.mxu0 0
      %588 = vmatprep.mubr.bf16.mxu0 0
      %589 = vmatmul.mubr.bf16.gmra.mrb[0].mxu0 %v551
      %v590 = vpop.f32.mrb[0].mxu0
      %v591 = vadd.f32 0.0, %v590
      %v592 = vpop.f32.mrb[0].mxu0
      %v593 = vpop.f32.mrb[0].mxu0
      %v594 = vpop.f32.mrb[0].mxu0
      %595 = vdwg.mxu0
      %vm596 = vcmask 80896
      %v597 = vsel %vm596, %v591, -inf
      %598 = vmax.xlane.f32.xlu0 %v597
      %v599 = vpop.xlane.xlu0 %598
      %v600 = vsub.f32 %v591, %v599
      %v601 = vmul.f32 %v600, 1.442695
      %v602 = vpow.pop %v601
      %v603 = vsel %vm596, %v602, 0.0
      %604 = vadd.xlane.f32.xlu0 %v603
      %v605 = vpop.xlane.xlu0 %604
      %v606 = vrcp.pop %v605
      %v607 = vpack.c.bf16 %v602, %v602
      %609 = vrot.lane.b32.xlu0 %v548, 96
      %v610 = vpop.permute.xlu0 %609
      %v612 = vsel %vm596, %v607, 0
      %vm614 = vcmask 1044480
      %v616 = vsel %vm614, %v610, 0
      %618 = vmatprep.subr.bf16.mxu0 0
      %619 = vmatpush1.bf16.msra.mxu0 %v616
      %620 = vmatprep.subr.bf16.mxu0 0
      %621 = vmatpush1.bf16.msra.mxu0 0
      %622 = vmatprep.subr.bf16.mxu0 0
      %623 = vmatpush1.bf16.msra.mxu0 0
      %624 = vmatprep.subr.bf16.mxu0 0
      %625 = vmatpush1.bf16.msra.mxu0 0
      %626 = vmatprep.subr.bf16.mxu0 0
      %627 = vmatpush1.bf16.msra.mxu0 0
      %628 = vmatprep.subr.bf16.mxu0 0
      %629 = vmatpush1.bf16.msra.mxu0 0
      %630 = vmatprep.subr.bf16.mxu0 0
      %631 = vmatpush1.bf16.msra.mxu0 0
      %632 = vmatprep.subr.bf16.mxu0 0
      %633 = vmatpush1.bf16.msra.mxu0 0
      %634 = vmatprep.subr.bf16.mxu0 0
      %635 = vmatpush1.bf16.msra.mxu0 0
      %636 = vmatprep.subr.bf16.mxu0 0
      %637 = vmatpush1.bf16.msra.mxu0 0
      %638 = vmatprep.subr.bf16.mxu0 0
      %639 = vmatpush1.bf16.msra.mxu0 0
      %640 = vmatprep.subr.bf16.mxu0 0
      %641 = vmatpush1.bf16.msra.mxu0 0
      %642 = vmatprep.subr.bf16.mxu0 0
      %643 = vmatpush1.bf16.msra.mxu0 0
      %644 = vmatprep.subr.bf16.mxu0 0
      %645 = vmatpush1.bf16.msra.mxu0 0
      %646 = vmatprep.subr.bf16.mxu0 0
      %647 = vmatpush1.bf16.msra.mxu0 0
      %648 = vmatprep.subr.bf16.mxu0 0
      %649 = vmatpush1.bf16.msra.mxu0 0
      %650 = vmatprep.mubr.bf16.mxu0 0
      %651 = vmatmul.mubr.bf16.gmra.mrb[0].mxu0 %v612
      %v652 = vpop.f32.mrb[0].mxu0
      %v653 = vadd.f32 0.0, %v652
      %v654 = vpop.f32.mrb[0].mxu0
      %v655 = vpop.f32.mrb[0].mxu0
      %v656 = vpop.f32.mrb[0].mxu0
      %657 = vdwg.mxu0
      %v658 = vmul.f32 %v653, %v606
      %659 = vst.msk [vmem:[#allocation2] sm:$0xff] %vm549, %v658
      %661 = vrot.lane.b32.xlu0 %v547, 120
      %v662 = vpop.permute.xlu0 %661
      %663 = vrot.lane.b32.xlu0 %v548, 120
      %v664 = vpop.permute.xlu0 %663
      %v666 = vsel %vm549, %v662, 0
      %v669 = vsel %vm549, %v664, 0
      %671 = vmatprep.subr.bf16.mxu0 0
      %672 = vmatpush1.bf16.xpose.msra.mxu0 %v669
      %673 = vmatprep.subr.bf16.mxu0 0
      %674 = vmatpush1.bf16.xpose.msra.mxu0 0
      %675 = vmatprep.subr.bf16.mxu0 0
      %676 = vmatpush1.bf16.xpose.msra.mxu0 0
      %677 = vmatprep.subr.bf16.mxu0 0
      %678 = vmatpush1.bf16.xpose.msra.mxu0 0
      %679 = vmatprep.subr.bf16.mxu0 0
      %680 = vmatpush1.bf16.xpose.msra.mxu0 0
      %681 = vmatprep.subr.bf16.mxu0 0
      %682 = vmatpush1.bf16.xpose.msra.mxu0 0
      %683 = vmatprep.subr.bf16.mxu0 0
      %684 = vmatpush1.bf16.xpose.msra.mxu0 0
      %685 = vmatprep.subr.bf16.mxu0 0
      %686 = vmatpush1.bf16.xpose.msra.mxu0 0
      %687 = vmatprep.subr.bf16.mxu0 0
      %688 = vmatpush1.bf16.xpose.msra.mxu0 0
      %689 = vmatprep.subr.bf16.mxu0 0
      %690 = vmatpush1.bf16.xpose.msra.mxu0 0
      %691 = vmatprep.subr.bf16.mxu0 0
      %692 = vmatpush1.bf16.xpose.msra.mxu0 0
      %693 = vmatprep.subr.bf16.mxu0 0
      %694 = vmatpush1.bf16.xpose.msra.mxu0 0
      %695 = vmatprep.subr.bf16.mxu0 0
      %696 = vmatpush1.bf16.xpose.msra.mxu0 0
      %697 = vmatprep.subr.bf16.mxu0 0
      %698 = vmatpush1.bf16.xpose.msra.mxu0 0
      %699 = vmatprep.subr.bf16.mxu0 0
      %700 = vmatpush1.bf16.xpose.msra.mxu0 0
      %701 = vmatprep.subr.bf16.mxu0 0
      %702 = vmatpush1.bf16.xpose.msra.mxu0 0
      %703 = vmatprep.mubr.bf16.mxu0 0
      %704 = vmatmul.mubr.bf16.gmra.mrb[0].mxu0 %v666
      %v705 = vpop.f32.mrb[0].mxu0
      %v706 = vadd.f32 0.0, %v705
      %v707 = vpop.f32.mrb[0].mxu0
      %v708 = vpop.f32.mrb[0].mxu0
      %v709 = vpop.f32.mrb[0].mxu0
      %710 = vdwg.mxu0
      %v711 = vsel %vm596, %v706, -inf
      %712 = vmax.xlane.f32.xlu0 %v711
      %v713 = vpop.xlane.xlu0 %712
      %v714 = vsub.f32 %v706, %v713
      %v715 = vmul.f32 %v714, 1.442695
      %v716 = vpow.pop %v715
      %v717 = vsel %vm596, %v716, 0.0
      %718 = vadd.xlane.f32.xlu0 %v717
      %v719 = vpop.xlane.xlu0 %718
      %v720 = vrcp.pop %v719
      %v721 = vpack.c.bf16 %v716, %v716
      %722 = vrot.lane.b32.xlu0 %v548, 88
      %v723 = vpop.permute.xlu0 %722
      %v725 = vsel %vm596, %v721, 0
      %v728 = vsel %vm614, %v723, 0
      %730 = vmatprep.subr.bf16.mxu0 0
      %731 = vmatpush1.bf16.msra.mxu0 %v728
      %732 = vmatprep.subr.bf16.mxu0 0
      %733 = vmatpush1.bf16.msra.mxu0 0
      %734 = vmatprep.subr.bf16.mxu0 0
      %735 = vmatpush1.bf16.msra.mxu0 0
      %736 = vmatprep.subr.bf16.mxu0 0
      %737 = vmatpush1.bf16.msra.mxu0 0
      %738 = vmatprep.subr.bf16.mxu0 0
      %739 = vmatpush1.bf16.msra.mxu0 0
      %740 = vmatprep.subr.bf16.mxu0 0
      %741 = vmatpush1.bf16.msra.mxu0 0
      %742 = vmatprep.subr.bf16.mxu0 0
      %743 = vmatpush1.bf16.msra.mxu0 0
      %744 = vmatprep.subr.bf16.mxu0 0
      %745 = vmatpush1.bf16.msra.mxu0 0
      %746 = vmatprep.subr.bf16.mxu0 0
      %747 = vmatpush1.bf16.msra.mxu0 0
      %748 = vmatprep.subr.bf16.mxu0 0
      %749 = vmatpush1.bf16.msra.mxu0 0
      %750 = vmatprep.subr.bf16.mxu0 0
      %751 = vmatpush1.bf16.msra.mxu0 0
      %752 = vmatprep.subr.bf16.mxu0 0
      %753 = vmatpush1.bf16.msra.mxu0 0
      %754 = vmatprep.subr.bf16.mxu0 0
      %755 = vmatpush1.bf16.msra.mxu0 0
      %756 = vmatprep.subr.bf16.mxu0 0
      %757 = vmatpush1.bf16.msra.mxu0 0
      %758 = vmatprep.subr.bf16.mxu0 0
      %759 = vmatpush1.bf16.msra.mxu0 0
      %760 = vmatprep.subr.bf16.mxu0 0
      %761 = vmatpush1.bf16.msra.mxu0 0
      %762 = vmatprep.mubr.bf16.mxu0 0
      %763 = vmatmul.mubr.bf16.gmra.mrb[0].mxu0 %v725
      %v764 = vpop.f32.mrb[0].mxu0
      %v765 = vadd.f32 0.0, %v764
      %v766 = vpop.f32.mrb[0].mxu0
      %v767 = vpop.f32.mrb[0].mxu0
      %v768 = vpop.f32.mrb[0].mxu0
      %769 = vdwg.mxu0
      %v770 = vmul.f32 %v765, %v720
      %772 = vrot.lane.b32.xlu0 %v770, 8
      %v773 = vpop.permute.xlu0 %772
      %vm775 = vcmask 130112
      %776 = vst.msk [vmem:[#allocation2] sm:$0xff] %vm775, %v773
      %777 = vrot.lane.b32.xlu0 %v547, 112
      %v778 = vpop.permute.xlu0 %777
      %779 = vrot.lane.b32.xlu0 %v548, 112
      %v780 = vpop.permute.xlu0 %779
      %v782 = vsel %vm549, %v778, 0
      %v785 = vsel %vm549, %v780, 0
      %787 = vmatprep.subr.bf16.mxu0 0
      %788 = vmatpush1.bf16.xpose.msra.mxu0 %v785
      %789 = vmatprep.subr.bf16.mxu0 0
      %790 = vmatpush1.bf16.xpose.msra.mxu0 0
      %791 = vmatprep.subr.bf16.mxu0 0
      %792 = vmatpush1.bf16.xpose.msra.mxu0 0
      %793 = vmatprep.subr.bf16.mxu0 0
      %794 = vmatpush1.bf16.xpose.msra.mxu0 0
      %795 = vmatprep.subr.bf16.mxu0 0
      %796 = vmatpush1.bf16.xpose.msra.mxu0 0
      %797 = vmatprep.subr.bf16.mxu0 0
      %798 = vmatpush1.bf16.xpose.msra.mxu0 0
      %799 = vmatprep.subr.bf16.mxu0 0
      %800 = vmatpush1.bf16.xpose.msra.mxu0 0
      %801 = vmatprep.subr.bf16.mxu0 0
      %802 = vmatpush1.bf16.xpose.msra.mxu0 0
      %803 = vmatprep.subr.bf16.mxu0 0
      %804 = vmatpush1.bf16.xpose.msra.mxu0 0
      %805 = vmatprep.subr.bf16.mxu0 0
      %806 = vmatpush1.bf16.xpose.msra.mxu0 0
      %807 = vmatprep.subr.bf16.mxu0 0
      %808 = vmatpush1.bf16.xpose.msra.mxu0 0
      %809 = vmatprep.subr.bf16.mxu0 0
      %810 = vmatpush1.bf16.xpose.msra.mxu0 0
      %811 = vmatprep.subr.bf16.mxu0 0
      %812 = vmatpush1.bf16.xpose.msra.mxu0 0
      %813 = vmatprep.subr.bf16.mxu0 0
      %814 = vmatpush1.bf16.xpose.msra.mxu0 0
      %815 = vmatprep.subr.bf16.mxu0 0
      %816 = vmatpush1.bf16.xpose.msra.mxu0 0
      %817 = vmatprep.subr.bf16.mxu0 0
      %818 = vmatpush1.bf16.xpose.msra.mxu0 0
      %819 = vmatprep.mubr.bf16.mxu0 0
      %820 = vmatmul.mubr.bf16.gmra.mrb[0].mxu0 %v782
      %v821 = vpop.f32.mrb[0].mxu0
      %v822 = vadd.f32 0.0, %v821
      %v823 = vpop.f32.mrb[0].mxu0
      %v824 = vpop.f32.mrb[0].mxu0
      %v825 = vpop.f32.mrb[0].mxu0
      %826 = vdwg.mxu0
      %v827 = vsel %vm596, %v822, -inf
      %828 = vmax.xlane.f32.xlu0 %v827
      %v829 = vpop.xlane.xlu0 %828
      %v830 = vsub.f32 %v822, %v829
      %v831 = vmul.f32 %v830, 1.442695
      %v832 = vpow.pop %v831
      %v833 = vsel %vm596, %v832, 0.0
      %834 = vadd.xlane.f32.xlu0 %v833
      %v835 = vpop.xlane.xlu0 %834
      %v836 = vrcp.pop %v835
      %v837 = vpack.c.bf16 %v832, %v832
      %838 = vrot.lane.b32.xlu0 %v548, 80
      %v839 = vpop.permute.xlu0 %838
      %v841 = vsel %vm596, %v837, 0
      %v844 = vsel %vm614, %v839, 0
      %846 = vmatprep.subr.bf16.mxu0 0
      %847 = vmatpush1.bf16.msra.mxu0 %v844
      %848 = vmatprep.subr.bf16.mxu0 0
      %849 = vmatpush1.bf16.msra.mxu0 0
      %850 = vmatprep.subr.bf16.mxu0 0
      %851 = vmatpush1.bf16.msra.mxu0 0
      %852 = vmatprep.subr.bf16.mxu0 0
      %853 = vmatpush1.bf16.msra.mxu0 0
      %854 = vmatprep.subr.bf16.mxu0 0
      %855 = vmatpush1.bf16.msra.mxu0 0
      %856 = vmatprep.subr.bf16.mxu0 0
      %857 = vmatpush1.bf16.msra.mxu0 0
      %858 = vmatprep.subr.bf16.mxu0 0
      %859 = vmatpush1.bf16.msra.mxu0 0
      %860 = vmatprep.subr.bf16.mxu0 0
      %861 = vmatpush1.bf16.msra.mxu0 0
      %862 = vmatprep.subr.bf16.mxu0 0
      %863 = vmatpush1.bf16.msra.mxu0 0
      %864 = vmatprep.subr.bf16.mxu0 0
      %865 = vmatpush1.bf16.msra.mxu0 0
      %866 = vmatprep.subr.bf16.mxu0 0
      %867 = vmatpush1.bf16.msra.mxu0 0
      %868 = vmatprep.subr.bf16.mxu0 0
      %869 = vmatpush1.bf16.msra.mxu0 0
      %870 = vmatprep.subr.bf16.mxu0 0
      %871 = vmatpush1.bf16.msra.mxu0 0
      %872 = vmatprep.subr.bf16.mxu0 0
      %873 = vmatpush1.bf16.msra.mxu0 0
      %874 = vmatprep.subr.bf16.mxu0 0
      %875 = vmatpush1.bf16.msra.mxu0 0
      %876 = vmatprep.subr.bf16.mxu0 0
      %877 = vmatpush1.bf16.msra.mxu0 0
      %878 = vmatprep.mubr.bf16.mxu0 0
      %879 = vmatmul.mubr.bf16.gmra.mrb[0].mxu0 %v841
      %v880 = vpop.f32.mrb[0].mxu0
      %v881 = vadd.f32 0.0, %v880
      %v882 = vpop.f32.mrb[0].mxu0
      %v883 = vpop.f32.mrb[0].mxu0
      %v884 = vpop.f32.mrb[0].mxu0
      %885 = vdwg.mxu0
      %v886 = vmul.f32 %v881, %v836
      %888 = vrot.lane.b32.xlu0 %v886, 16
      %v889 = vpop.permute.xlu0 %888
      %vm891 = vcmask 195712
      %892 = vst.msk [vmem:[#allocation2] sm:$0xff] %vm891, %v889
      %893 = vrot.lane.b32.xlu0 %v547, 104
      %v894 = vpop.permute.xlu0 %893
      %895 = vrot.lane.b32.xlu0 %v548, 104
      %v896 = vpop.permute.xlu0 %895
      %v898 = vsel %vm549, %v894, 0
      %v901 = vsel %vm549, %v896, 0
      %903 = vmatprep.subr.bf16.mxu0 0
      %904 = vmatpush1.bf16.xpose.msra.mxu0 %v901
      %905 = vmatprep.subr.bf16.mxu0 0
      %906 = vmatpush1.bf16.xpose.msra.mxu0 0
      %907 = vmatprep.subr.bf16.mxu0 0
      %908 = vmatpush1.bf16.xpose.msra.mxu0 0
      %909 = vmatprep.subr.bf16.mxu0 0
      %910 = vmatpush1.bf16.xpose.msra.mxu0 0
      %911 = vmatprep.subr.bf16.mxu0 0
      %912 = vmatpush1.bf16.xpose.msra.mxu0 0
      %913 = vmatprep.subr.bf16.mxu0 0
      %914 = vmatpush1.bf16.xpose.msra.mxu0 0
      %915 = vmatprep.subr.bf16.mxu0 0
      %916 = vmatpush1.bf16.xpose.msra.mxu0 0
      %917 = vmatprep.subr.bf16.mxu0 0
      %918 = vmatpush1.bf16.xpose.msra.mxu0 0
      %919 = vmatprep.subr.bf16.mxu0 0
      %920 = vmatpush1.bf16.xpose.msra.mxu0 0
      %921 = vmatprep.subr.bf16.mxu0 0
      %922 = vmatpush1.bf16.xpose.msra.mxu0 0
      %923 = vmatprep.subr.bf16.mxu0 0
      %924 = vmatpush1.bf16.xpose.msra.mxu0 0
      %925 = vmatprep.subr.bf16.mxu0 0
      %926 = vmatpush1.bf16.xpose.msra.mxu0 0
      %927 = vmatprep.subr.bf16.mxu0 0
      %928 = vmatpush1.bf16.xpose.msra.mxu0 0
      %929 = vmatprep.subr.bf16.mxu0 0
      %930 = vmatpush1.bf16.xpose.msra.mxu0 0
      %931 = vmatprep.subr.bf16.mxu0 0
      %932 = vmatpush1.bf16.xpose.msra.mxu0 0
      %933 = vmatprep.subr.bf16.mxu0 0
      %934 = vmatpush1.bf16.xpose.msra.mxu0 0
      %935 = vmatprep.mubr.bf16.mxu0 0
      %936 = vmatmul.mubr.bf16.gmra.mrb[0].mxu0 %v898
      %v937 = vpop.f32.mrb[0].mxu0
      %v938 = vadd.f32 0.0, %v937
      %v939 = vpop.f32.mrb[0].mxu0
      %v940 = vpop.f32.mrb[0].mxu0
      %v941 = vpop.f32.mrb[0].mxu0
      %942 = vdwg.mxu0
      %v943 = vsel %vm596, %v938, -inf
      %944 = vmax.xlane.f32.xlu0 %v943
      %v945 = vpop.xlane.xlu0 %944
      %v946 = vsub.f32 %v938, %v945
      %v947 = vmul.f32 %v946, 1.442695
      %v948 = vpow.pop %v947
      %v949 = vsel %vm596, %v948, 0.0
      %950 = vadd.xlane.f32.xlu0 %v949
      %v951 = vpop.xlane.xlu0 %950
      %v952 = vrcp.pop %v951
      %v953 = vpack.c.bf16 %v948, %v948
      %954 = vrot.lane.b32.xlu0 %v548, 72
      %v955 = vpop.permute.xlu0 %954
      %v957 = vsel %vm596, %v953, 0
      %v960 = vsel %vm614, %v955, 0
      %962 = vmatprep.subr.bf16.mxu0 0
      %963 = vmatpush1.bf16.msra.mxu0 %v960
      %964 = vmatprep.subr.bf16.mxu0 0
      %965 = vmatpush1.bf16.msra.mxu0 0
      %966 = vmatprep.subr.bf16.mxu0 0
      %967 = vmatpush1.bf16.msra.mxu0 0
      %968 = vmatprep.subr.bf16.mxu0 0
      %969 = vmatpush1.bf16.msra.mxu0 0
      %970 = vmatprep.subr.bf16.mxu0 0
      %971 = vmatpush1.bf16.msra.mxu0 0
      %972 = vmatprep.subr.bf16.mxu0 0
      %973 = vmatpush1.bf16.msra.mxu0 0
      %974 = vmatprep.subr.bf16.mxu0 0
      %975 = vmatpush1.bf16.msra.mxu0 0
      %976 = vmatprep.subr.bf16.mxu0 0
      %977 = vmatpush1.bf16.msra.mxu0 0
      %978 = vmatprep.subr.bf16.mxu0 0
      %979 = vmatpush1.bf16.msra.mxu0 0
      %980 = vmatprep.subr.bf16.mxu0 0
      %981 = vmatpush1.bf16.msra.mxu0 0
      %982 = vmatprep.subr.bf16.mxu0 0
      %983 = vmatpush1.bf16.msra.mxu0 0
      %984 = vmatprep.subr.bf16.mxu0 0
      %985 = vmatpush1.bf16.msra.mxu0 0
      %986 = vmatprep.subr.bf16.mxu0 0
      %987 = vmatpush1.bf16.msra.mxu0 0
      %988 = vmatprep.subr.bf16.mxu0 0
      %989 = vmatpush1.bf16.msra.mxu0 0
      %990 = vmatprep.subr.bf16.mxu0 0
      %991 = vmatpush1.bf16.msra.mxu0 0
      %992 = vmatprep.subr.bf16.mxu0 0
      %993 = vmatpush1.bf16.msra.mxu0 0
      %994 = vmatprep.mubr.bf16.mxu0 0
      %995 = vmatmul.mubr.bf16.gmra.mrb[0].mxu0 %v957
      %v996 = vpop.f32.mrb[0].mxu0
      %v997 = vadd.f32 0.0, %v996
      %v998 = vpop.f32.mrb[0].mxu0
      %v999 = vpop.f32.mrb[0].mxu0
      %v1000 = vpop.f32.mrb[0].mxu0
      %1001 = vdwg.mxu0
      %v1002 = vmul.f32 %v997, %v952
      %1004 = vrot.lane.b32.xlu0 %v1002, 24
      %v1005 = vpop.permute.xlu0 %1004
      %vm1007 = vcmask 261312
      %1008 = vst.msk [vmem:[#allocation2] sm:$0xff] %vm1007, %v1005
      %v1009 = vld [vmem:[#allocation2] sm:$0xff]
      %v1010 = vpack.c.bf16 %v1009, %v1009
      %v1011 = vld [vmem:[%s6] sm:$0xf]
      %v1012 = vld [vmem:[%s6 + $0x4] sm:$0xf]
      %v1013 = vld [vmem:[%s6 + $0x8] sm:$0xf]
      %v1014 = vld [vmem:[%s6 + $0xc] sm:$0xf]
      %v1015 = vld [vmem:[%s7] sm:$0x1]
      %v1017 = vlaneseq
      %v1018 = vshrl.u32 %v1017, 7
      %v1019 = vsub.s32 0, %v1018
      %v1020 = vrot.slane %v1015, %v1019
      %v1026 = vunpack.c.l.b16 %v1011
      %v1027 = vunpack.c.l.b16 %v1012
      %v1028 = vunpack.c.l.b16 %v1013
      %v1029 = vunpack.c.l.b16 %v1014
      %v1030 = vpack.c.b16 %v1027, %v1026
      %v1031 = vpack.c.b16 %v1029, %v1028
      %v1035 = vsel %vm434, %v1010, 0
      %1037 = vmatprep.subr.bf16.mxu0 0
      %1038 = vmatpush1.bf16.msra.mxu0 %v1030
      %1039 = vmatprep.subr.bf16.mxu0 0
      %1040 = vmatpush1.bf16.msra.mxu0 %v1031
      %1041 = vmatprep.subr.bf16.mxu0 0
      %1042 = vmatpush1.bf16.msra.mxu0 0
      %1043 = vmatprep.subr.bf16.mxu0 0
      %1044 = vmatpush1.bf16.msra.mxu0 0
      %1045 = vmatprep.subr.bf16.mxu0 0
      %1046 = vmatpush1.bf16.msra.mxu0 0
      %1047 = vmatprep.subr.bf16.mxu0 0
      %1048 = vmatpush1.bf16.msra.mxu0 0
      %1049 = vmatprep.subr.bf16.mxu0 0
      %1050 = vmatpush1.bf16.msra.mxu0 0
      %1051 = vmatprep.subr.bf16.mxu0 0
      %1052 = vmatpush1.bf16.msra.mxu0 0
      %1053 = vmatprep.subr.bf16.mxu0 0
      %1054 = vmatpush1.bf16.msra.mxu0 0
      %1055 = vmatprep.subr.bf16.mxu0 0
      %1056 = vmatpush1.bf16.msra.mxu0 0
      %1057 = vmatprep.subr.bf16.mxu0 0
      %1058 = vmatpush1.bf16.msra.mxu0 0
      %1059 = vmatprep.subr.bf16.mxu0 0
      %1060 = vmatpush1.bf16.msra.mxu0 0
      %1061 = vmatprep.subr.bf16.mxu0 0
      %1062 = vmatpush1.bf16.msra.mxu0 0
      %1063 = vmatprep.subr.bf16.mxu0 0
      %1064 = vmatpush1.bf16.msra.mxu0 0
      %1065 = vmatprep.subr.bf16.mxu0 0
      %1066 = vmatpush1.bf16.msra.mxu0 0
      %1067 = vmatprep.subr.bf16.mxu0 0
      %1068 = vmatpush1.bf16.msra.mxu0 0
      %1069 = vmatprep.mubr.bf16.mxu0 0
      %1070 = vmatmul.mubr.bf16.gmra.mrb[0].mxu0 %v1035
      %v1071 = vpop.f32.mrb[0].mxu0
      %v1072 = vadd.f32 %v1020, %v1071
      %v1073 = vpop.f32.mrb[0].mxu0
      %v1074 = vpop.f32.mrb[0].mxu0
      %v1075 = vpop.f32.mrb[0].mxu0
      %1076 = vdwg.mxu0
      %v1077 = vadd.f32 %v407, %v1072
      %v1078 = vld [vmem:[%s8] sm:$0x1]
      %v1079 = vld [vmem:[%s9] sm:$0x1]
      %v1080 = vsel %vm434, %v1077, 0.0
      %1081 = vadd.xlane.f32.xlu0 %v1080
      %v1082 = vpop.xlane.xlu0 %1081
      %v1083 = vrcp.pop 32.0
      %v1084 = vmul.f32 %v1082, %v1083
      %v1085 = vsub.f32 %v1077, %v1084
      %v1086 = vmul.f32 %v1085, %v1085
      %v1087 = vsel %vm434, %v1086, 0.0
      %1088 = vadd.xlane.f32.xlu0 %v1087
      %v1089 = vpop.xlane.xlu0 %1088
      %v1090 = vmul.f32 %v1089, %v1083
      %v1091 = vadd.f32 %v1090, 1e-05
      %v1092 = vrsqrt.pop %v1091
      %v1093 = vmul.f32 %v1085, %v1092
      %v1095 = vlaneseq
      %v1096 = vshrl.u32 %v1095, 7
      %v1097 = vsub.s32 0, %v1096
      %v1098 = vrot.slane %v1078, %v1097
      %v1100 = vmul.f32 %v1093, %v1098
      %v1102 = vlaneseq
      %v1103 = vshrl.u32 %v1102, 7
      %v1104 = vsub.s32 0, %v1103
      %v1105 = vrot.slane %v1079, %v1104
      %v1107 = vadd.f32 %v1100, %v1105
      %1108 = vst.msk [vmem:[%s405] sm:$0xff] %vm434, %v1107
      %p1109 = scmp.lt.s32.totalorder %s25, 1
      %s1110 = scalar_select %p1109, %s25, 1
      %p1111 = scmp.lt.s32.totalorder %s26, 0
      %s1112 = scalar_select %p1111, %s26, 0
      %s1113 = sadd.s32 %s1112, %s1110
      %s1114 = smul.addr %s1113, 8
      %s1115 = scalar_lea.vmem %s10, %s1114
      // Predicated region
      $region61: #{_lambda_.8} parent=59 // pred_check
        %p1116 = pneg %p275
      $region62: #{_lambda_.8} parent=59 // pred_check_branch
        %1118 = sbr.rel (%p1116) target = $region64
      $region63: #{_lambda_.8} parent=59 // pred_region
        _
      $region64: #{_lambda_.8} parent=59 // pred_fallthru
        _
    $region60: #{_lambda_.8} parent=5 // pred_fallthru
      _
    %p1119 = scmp.le.s32.totalorder 2, %s16
    // Predicated region
    $region65: #{_lambda_.8} parent=5 // pred_check
      %p1120 = pneg %p1119
    $region66: #{_lambda_.8} parent=5 // pred_check_branch
      %1122 = sbr.rel (%p1120) target = $region68
    $region67: #{_lambda_.8} parent=5 // pred_region
      %s1123 = ssub.s32 %s16, 2
      // Predicated region
      $region69: #{_lambda_.8} parent=67 // pred_check
        %p1124 = pneg %p281
      $region70: #{_lambda_.8} parent=67 // pred_check_branch
        %1126 = sbr.rel (%p1124) target = $region72
      $region71: #{_lambda_.8} parent=67 // pred_region
        %p1127 = scmp.lt.s32.totalorder %s27, 1
        %s1128 = scalar_select %p1127, %s27, 1
        %p1129 = scmp.lt.s32.totalorder %s28, 0
        %s1130 = scalar_select %p1129, %s28, 0
        %s1131 = sadd.s32 %s1130, %s1128
        %s1132 = smul.addr %s1131, 8
        %s1133 = scalar_lea.vmem %s10, %s1132
      $region72: #{_lambda_.8} parent=67 // pred_fallthru
        _
    $region68: #{_lambda_.8} parent=5 // pred_fallthru
      _
  $region6: #{_lambda_.8} parent=0 // loop_footer
    %s20 = sadd.s32 1, %s16
  $region7: #{_lambda_.8} parent=0 // loop_footer_branch
    %15 = sbr.rel target = $region3
  $region8: #{_lambda_.8} parent=0 // loop_exit
    _

// kernel: _lambda_.13
$region0: #{_lambda_.13}
  #allocation0 [shape = 'u32[]', space=smem, size = 0x4, offset = 0x4, fixed_abs, tag = 'smem constant byte address 0x4 - core index']
  #allocation1 [shape = 'u32[144,128]{1,0:T(1,128)}', space=vmem, size = 0x12000, scoped, tag = 'internal scratch']
  %s0 = inlined_call_operand.vmem [shape: f32[16,32], index: 0, kind: input, shape index: {}]
  %s1 = inlined_call_operand.vmem [shape: f32[1,32], index: 1, kind: input, shape index: {}]
  %s2 = inlined_call_operand.vmem [shape: f32[1,32], index: 2, kind: input, shape index: {}]
  %s3 = inlined_call_operand.vmem [shape: f32[16,32], index: 3, kind: output, shape index: {}]
  %s4 = sld [smem:[#allocation0]]
  $region22: #{_lambda_.13} parent=0
    _
  %s6 = ssub.s32 1, %s4
  %s7 = scalar_select 0, %s6, %s4
  // Predicated region
  $region2: #{_lambda_.13} parent=0 // pred_check
    _
  $region3: #{_lambda_.13} parent=0 // pred_check_branch
    %9 = sbr.rel (0) target = $region5
  $region4: #{_lambda_.13} parent=0 // pred_region
    _
  $region5: #{_lambda_.13} parent=0 // pred_fallthru
    _
  // Predicated region
  $region6: #{_lambda_.13} parent=0 // pred_check
    _
  $region7: #{_lambda_.13} parent=0 // pred_check_branch
    %11 = sbr.rel (0) target = $region9
  $region8: #{_lambda_.13} parent=0 // pred_region
    _
  $region9: #{_lambda_.13} parent=0 // pred_fallthru
    _
  // Predicated region
  $region10: #{_lambda_.13} parent=0 // pred_check
    _
  $region11: #{_lambda_.13} parent=0 // pred_check_branch
    %13 = sbr.rel (0) target = $region13
  $region12: #{_lambda_.13} parent=0 // pred_region
    _
  $region13: #{_lambda_.13} parent=0 // pred_fallthru
    _
  %v14 = vld [vmem:[%s0] sm:$0xff]
  %v15 = vld [vmem:[%s0 + $0x8] sm:$0xff]
  %v16 = vld [vmem:[%s1] sm:$0x1]
  %v17 = vld [vmem:[%s2] sm:$0x1]
  %vm18 = vcmask 261120
  %v19 = vsel %vm18, %v14, 0.0
  %20 = vadd.xlane.f32.xlu0 %v19
  %v21 = vpop.xlane.xlu0 %20
  %v22 = vsel %vm18, %v15, 0.0
  %23 = vadd.xlane.f32.xlu0 %v22
  %v24 = vpop.xlane.xlu0 %23
  %v25 = vrcp.pop 32.0
  %v26 = vmul.f32 %v21, %v25
  %v27 = vmul.f32 %v24, %v25
  %v28 = vsub.f32 %v14, %v26
  %v29 = vsub.f32 %v15, %v27
  %v30 = vmul.f32 %v28, %v28
  %v31 = vmul.f32 %v29, %v29
  %v32 = vsel %vm18, %v30, 0.0
  %33 = vadd.xlane.f32.xlu0 %v32
  %v34 = vpop.xlane.xlu0 %33
  %v35 = vsel %vm18, %v31, 0.0
  %36 = vadd.xlane.f32.xlu0 %v35
  %v37 = vpop.xlane.xlu0 %36
  %v38 = vmul.f32 %v34, %v25
  %v39 = vmul.f32 %v37, %v25
  %v40 = vadd.f32 %v38, 1e-05
  %v41 = vadd.f32 %v39, 1e-05
  %v42 = vrsqrt.pop %v40
  %v43 = vrsqrt.pop %v41
  %v44 = vmul.f32 %v28, %v42
  %v45 = vmul.f32 %v29, %v43
  %v47 = vlaneseq
  %v48 = vshrl.u32 %v47, 7
  %v49 = vsub.s32 0, %v48
  %v50 = vrot.slane %v16, %v49
  %v52 = vmul.f32 %v44, %v50
  %v53 = vmul.f32 %v45, %v50
  %v55 = vlaneseq
  %v56 = vshrl.u32 %v55, 7
  %v57 = vsub.s32 0, %v56
  %v58 = vrot.slane %v17, %v57
  %v60 = vadd.f32 %v52, %v58
  %v61 = vadd.f32 %v53, %v58
  %62 = vst.msk [vmem:[%s3] sm:$0xff] %vm18, %v60
  %63 = vst.msk [vmem:[%s3 + $0x8] sm:$0xff] %vm18, %v61
  // Predicated region
  $region14: #{_lambda_.13} parent=0 // pred_check
    _
  $region15: #{_lambda_.13} parent=0 // pred_check_branch
    %65 = sbr.rel (0) target = $region17
  $region16: #{_lambda_.13} parent=0 // pred_region
    _
  $region17: #{_lambda_.13} parent=0 // pred_fallthru
    _
  // Predicated region
  $region18: #{_lambda_.13} parent=0 // pred_check
    _
  $region19: #{_lambda_.13} parent=0 // pred_check_branch
    %67 = sbr.rel (0) target = $region21
  $region20: #{_lambda_.13} parent=0 // pred_region
    _
  $region21: #{_lambda_.13} parent=0 // pred_fallthru
    _

// kernel: _lambda_.9
$region0: #{_lambda_.9}
  #allocation0 [shape = 'u32[]', space=smem, size = 0x4, offset = 0x4, fixed_abs, tag = 'smem constant byte address 0x4 - core index']
  #allocation1 [shape = 'u32[144,128]{1,0:T(1,128)}', space=vmem, size = 0x12000, scoped, tag = 'internal scratch']
  #allocation2 [shape = 'f32[16,32]{1,0:T(8,128)}', space=vmem, size = 0x2000, scoped, tag = 'scratch operand']
  %s0 = inlined_call_operand.vmem [shape: f32[16,32], index: 0, kind: input, shape index: {}]
  %s1 = inlined_call_operand.vmem [shape: bf16[32,64], index: 1, kind: input, shape index: {}]
  %s2 = inlined_call_operand.vmem [shape: f32[1,64], index: 2, kind: input, shape index: {}]
  %s3 = inlined_call_operand.vmem [shape: bf16[64,32], index: 3, kind: input, shape index: {}]
  %s4 = inlined_call_operand.vmem [shape: f32[1,32], index: 4, kind: input, shape index: {}]
  %s5 = inlined_call_operand.vmem [shape: f32[1,32], index: 5, kind: input, shape index: {}]
  %s6 = inlined_call_operand.vmem [shape: f32[1,32], index: 6, kind: input, shape index: {}]
  %s7 = inlined_call_operand.vmem [shape: f32[16,32], index: 7, kind: output, shape index: {}]
  %s8 = sld [smem:[#allocation0]]
  $region46: #{_lambda_.9} parent=0
    _
  %s10 = ssub.s32 1, %s8
  %s11 = scalar_select 0, %s10, %s8
  // Predicated region
  $region2: #{_lambda_.9} parent=0 // pred_check
    _
  $region3: #{_lambda_.9} parent=0 // pred_check_branch
    %13 = sbr.rel (0) target = $region5
  $region4: #{_lambda_.9} parent=0 // pred_region
    _
  $region5: #{_lambda_.9} parent=0 // pred_fallthru
    _
  // Predicated region
  $region6: #{_lambda_.9} parent=0 // pred_check
    _
  $region7: #{_lambda_.9} parent=0 // pred_check_branch
    %15 = sbr.rel (0) target = $region9
  $region8: #{_lambda_.9} parent=0 // pred_region
    _
  $region9: #{_lambda_.9} parent=0 // pred_fallthru
    _
  // Predicated region
  $region10: #{_lambda_.9} parent=0 // pred_check
    _
  $region11: #{_lambda_.9} parent=0 // pred_check_branch
    %17 = sbr.rel (0) target = $region13
  $region12: #{_lambda_.9} parent=0 // pred_region
    _
  $region13: #{_lambda_.9} parent=0 // pred_fallthru
    _
  // Predicated region
  $region14: #{_lambda_.9} parent=0 // pred_check
    _
  $region15: #{_lambda_.9} parent=0 // pred_check_branch
    %19 = sbr.rel (0) target = $region17
  $region16: #{_lambda_.9} parent=0 // pred_region
    _
  $region17: #{_lambda_.9} parent=0 // pred_fallthru
    _
  // Predicated region
  $region18: #{_lambda_.9} parent=0 // pred_check
    _
  $region19: #{_lambda_.9} parent=0 // pred_check_branch
    %21 = sbr.rel (0) target = $region21
  $region20: #{_lambda_.9} parent=0 // pred_region
    _
  $region21: #{_lambda_.9} parent=0 // pred_fallthru
    _
  // Predicated region
  $region22: #{_lambda_.9} parent=0 // pred_check
    _
  $region23: #{_lambda_.9} parent=0 // pred_check_branch
    %23 = sbr.rel (0) target = $region25
  $region24: #{_lambda_.9} parent=0 // pred_region
    _
  $region25: #{_lambda_.9} parent=0 // pred_fallthru
    _
  // Predicated region
  $region26: #{_lambda_.9} parent=0 // pred_check
    _
  $region27: #{_lambda_.9} parent=0 // pred_check_branch
    %25 = sbr.rel (0) target = $region29
  $region28: #{_lambda_.9} parent=0 // pred_region
    _
  $region29: #{_lambda_.9} parent=0 // pred_fallthru
    _
  %p27 = scmp.eq.s32.totalorder 0, 0
  // Predicated region
  $region30: #{_lambda_.9} parent=0 // pred_check
    %p28 = pneg %p27
  $region31: #{_lambda_.9} parent=0 // pred_check_branch
    %30 = sbr.rel (%p28) target = $region33
  $region32: #{_lambda_.9} parent=0 // pred_region
    %vm31 = vcmask 261120
    %32 = vst.msk [vmem:[#allocation2] sm:$0xff] %vm31, 0.0
    %33 = vst.msk [vmem:[#allocation2 + $0x8] sm:$0xff] %vm31, 0.0
  $region33: #{_lambda_.9} parent=0 // pred_fallthru
    _
  %v34 = vld [vmem:[%s0] sm:$0xff]
  %v35 = vld [vmem:[%s0 + $0x8] sm:$0xff]
  %v36 = vpack.c.bf16 %v35, %v34
  %v37 = vld [vmem:[%s1] sm:$0xf]
  %v38 = vld [vmem:[%s1 + $0x4] sm:$0xf]
  %v39 = vld [vmem:[%s1 + $0x8] sm:$0xf]
  %v40 = vld [vmem:[%s1 + $0xc] sm:$0xf]
  %v41 = vld [vmem:[%s2] sm:$0x1]
  %v43 = vlaneseq
  %v44 = vshrl.u32 %v43, 7
  %v45 = vsub.s32 0, %v44
  %v46 = vrot.slane %v41, %v45
  %v52 = vunpack.c.l.b16 %v37
  %v53 = vunpack.c.l.b16 %v38
  %v54 = vunpack.c.l.b16 %v39
  %v55 = vunpack.c.l.b16 %v40
  %v56 = vpack.c.b16 %v53, %v52
  %v57 = vpack.c.b16 %v55, %v54
  %vm60 = vcmask 261120
  %v62 = vsel %vm60, %v36, 0
  %64 = vmatprep.subr.bf16.mxu0 0
  %65 = vmatpush1.bf16.msra.mxu0 %v56
  %66 = vmatprep.subr.bf16.mxu0 0
  %67 = vmatpush1.bf16.msra.mxu0 %v57
  %68 = vmatprep.subr.bf16.mxu0 0
  %69 = vmatpush1.bf16.msra.mxu0 0
  %70 = vmatprep.subr.bf16.mxu0 0
  %71 = vmatpush1.bf16.msra.mxu0 0
  %72 = vmatprep.subr.bf16.mxu0 0
  %73 = vmatpush1.bf16.msra.mxu0 0
  %74 = vmatprep.subr.bf16.mxu0 0
  %75 = vmatpush1.bf16.msra.mxu0 0
  %76 = vmatprep.subr.bf16.mxu0 0
  %77 = vmatpush1.bf16.msra.mxu0 0
  %78 = vmatprep.subr.bf16.mxu0 0
  %79 = vmatpush1.bf16.msra.mxu0 0
  %80 = vmatprep.subr.bf16.mxu0 0
  %81 = vmatpush1.bf16.msra.mxu0 0
  %82 = vmatprep.subr.bf16.mxu0 0
  %83 = vmatpush1.bf16.msra.mxu0 0
  %84 = vmatprep.subr.bf16.mxu0 0
  %85 = vmatpush1.bf16.msra.mxu0 0
  %86 = vmatprep.subr.bf16.mxu0 0
  %87 = vmatpush1.bf16.msra.mxu0 0
  %88 = vmatprep.subr.bf16.mxu0 0
  %89 = vmatpush1.bf16.msra.mxu0 0
  %90 = vmatprep.subr.bf16.mxu0 0
  %91 = vmatpush1.bf16.msra.mxu0 0
  %92 = vmatprep.subr.bf16.mxu0 0
  %93 = vmatpush1.bf16.msra.mxu0 0
  %94 = vmatprep.subr.bf16.mxu0 0
  %95 = vmatpush1.bf16.msra.mxu0 0
  %96 = vmatprep.mubr.bf16.mxu0 0
  %97 = vmatmul.mubr.bf16.gmra.mrb[0].mxu0 %v62
  %v98 = vpop.f32.mrb[0].mxu0
  %v99 = vadd.f32 %v46, %v98
  %v100 = vpop.f32.mrb[0].mxu0
  %v101 = vpop.f32.mrb[0].mxu0
  %v102 = vadd.f32 %v46, %v101
  %v103 = vpop.f32.mrb[0].mxu0
  %104 = vdwg.mxu0
  %v105 = vmax.f32 %v99, 0.0
  %v106 = vmax.f32 %v102, 0.0
  %v107 = vld [vmem:[#allocation2] sm:$0xff]
  %v108 = vld [vmem:[#allocation2 + $0x8] sm:$0xff]
  %v109 = vpack.c.bf16 %v106, %v105
  %v110 = vld [vmem:[%s3] sm:$0xf]
  %v111 = vld [vmem:[%s3 + $0x4] sm:$0xf]
  %v112 = vld [vmem:[%s3 + $0x8] sm:$0xf]
  %v113 = vld [vmem:[%s3 + $0xc] sm:$0xf]
  %v114 = vld [vmem:[%s3 + $0x10] sm:$0xf]
  %v115 = vld [vmem:[%s3 + $0x14] sm:$0xf]
  %v116 = vld [vmem:[%s3 + $0x18] sm:$0xf]
  %v117 = vld [vmem:[%s3 + $0x1c] sm:$0xf]
  %v126 = vunpack.c.l.b16 %v110
  %v127 = vunpack.c.l.b16 %v111
  %v128 = vunpack.c.l.b16 %v112
  %v129 = vunpack.c.l.b16 %v113
  %v130 = vunpack.c.l.b16 %v114
  %v131 = vunpack.c.l.b16 %v115
  %v132 = vunpack.c.l.b16 %v116
  %v133 = vunpack.c.l.b16 %v117
  %v134 = vpack.c.b16 %v127, %v126
  %v135 = vpack.c.b16 %v129, %v128
  %v136 = vpack.c.b16 %v131, %v130
  %v137 = vpack.c.b16 %v133, %v132
  %vm142 = vcmask 523264
  %v144 = vsel %vm142, %v109, 0
  %146 = vmatprep.subr.bf16.mxu0 0
  %147 = vmatpush1.bf16.msra.mxu0 %v134
  %148 = vmatprep.subr.bf16.mxu0 0
  %149 = vmatpush1.bf16.msra.mxu0 %v135
  %150 = vmatprep.subr.bf16.mxu0 0
  %151 = vmatpush1.bf16.msra.mxu0 %v136
  %152 = vmatprep.subr.bf16.mxu0 0
  %153 = vmatpush1.bf16.msra.mxu0 %v137
  %154 = vmatprep.subr.bf16.mxu0 0
  %155 = vmatpush1.bf16.msra.mxu0 0
  %156 = vmatprep.subr.bf16.mxu0 0
  %157 = vmatpush1.bf16.msra.mxu0 0
  %158 = vmatprep.subr.bf16.mxu0 0
  %159 = vmatpush1.bf16.msra.mxu0 0
  %160 = vmatprep.subr.bf16.mxu0 0
  %161 = vmatpush1.bf16.msra.mxu0 0
  %162 = vmatprep.subr.bf16.mxu0 0
  %163 = vmatpush1.bf16.msra.mxu0 0
  %164 = vmatprep.subr.bf16.mxu0 0
  %165 = vmatpush1.bf16.msra.mxu0 0
  %166 = vmatprep.subr.bf16.mxu0 0
  %167 = vmatpush1.bf16.msra.mxu0 0
  %168 = vmatprep.subr.bf16.mxu0 0
  %169 = vmatpush1.bf16.msra.mxu0 0
  %170 = vmatprep.subr.bf16.mxu0 0
  %171 = vmatpush1.bf16.msra.mxu0 0
  %172 = vmatprep.subr.bf16.mxu0 0
  %173 = vmatpush1.bf16.msra.mxu0 0
  %174 = vmatprep.subr.bf16.mxu0 0
  %175 = vmatpush1.bf16.msra.mxu0 0
  %176 = vmatprep.subr.bf16.mxu0 0
  %177 = vmatpush1.bf16.msra.mxu0 0
  %178 = vmatprep.mubr.bf16.mxu0 0
  %179 = vmatmul.mubr.bf16.gmra.mrb[0].mxu0 %v144
  %v180 = vpop.f32.mrb[0].mxu0
  %v181 = vadd.f32 0.0, %v180
  %v182 = vpop.f32.mrb[0].mxu0
  %v183 = vpop.f32.mrb[0].mxu0
  %v184 = vadd.f32 0.0, %v183
  %v185 = vpop.f32.mrb[0].mxu0
  %186 = vdwg.mxu0
  %v187 = vadd.f32 %v107, %v181
  %v188 = vadd.f32 %v108, %v184
  %189 = vst.msk [vmem:[#allocation2] sm:$0xff] %vm60, %v187
  %190 = vst.msk [vmem:[#allocation2 + $0x8] sm:$0xff] %vm60, %v188
  // Predicated region
  $region34: #{_lambda_.9} parent=0 // pred_check
    %p191 = pneg %p27
  $region35: #{_lambda_.9} parent=0 // pred_check_branch
    %193 = sbr.rel (%p191) target = $region37
  $region36: #{_lambda_.9} parent=0 // pred_region
    %v194 = vld [vmem:[#allocation2] sm:$0xff]
    %v195 = vld [vmem:[#allocation2 + $0x8] sm:$0xff]
    %v196 = vadd.f32 %v34, %v194
    %v197 = vadd.f32 %v35, %v195
    %v198 = vld [vmem:[%s4] sm:$0x1]
    %v200 = vlaneseq
    %v201 = vshrl.u32 %v200, 7
    %v202 = vsub.s32 0, %v201
    %v203 = vrot.slane %v198, %v202
    %v205 = vadd.f32 %v196, %v203
    %v206 = vadd.f32 %v197, %v203
    %v207 = vld [vmem:[%s5] sm:$0x1]
    %v208 = vld [vmem:[%s6] sm:$0x1]
    %v209 = vsel %vm60, %v205, 0.0
    %210 = vadd.xlane.f32.xlu0 %v209
    %v211 = vpop.xlane.xlu0 %210
    %v212 = vsel %vm60, %v206, 0.0
    %213 = vadd.xlane.f32.xlu0 %v212
    %v214 = vpop.xlane.xlu0 %213
    %v215 = vrcp.pop 32.0
    %v216 = vmul.f32 %v211, %v215
    %v217 = vmul.f32 %v214, %v215
    %v218 = vsub.f32 %v205, %v216
    %v219 = vsub.f32 %v206, %v217
    %v220 = vmul.f32 %v218, %v218
    %v221 = vmul.f32 %v219, %v219
    %v222 = vsel %vm60, %v220, 0.0
    %223 = vadd.xlane.f32.xlu0 %v222
    %v224 = vpop.xlane.xlu0 %223
    %v225 = vsel %vm60, %v221, 0.0
    %226 = vadd.xlane.f32.xlu0 %v225
    %v227 = vpop.xlane.xlu0 %226
    %v228 = vmul.f32 %v224, %v215
    %v229 = vmul.f32 %v227, %v215
    %v230 = vadd.f32 %v228, 1e-05
    %v231 = vadd.f32 %v229, 1e-05
    %v232 = vrsqrt.pop %v230
    %v233 = vrsqrt.pop %v231
    %v234 = vmul.f32 %v218, %v232
    %v235 = vmul.f32 %v219, %v233
    %v237 = vlaneseq
    %v238 = vshrl.u32 %v237, 7
    %v239 = vsub.s32 0, %v238
    %v240 = vrot.slane %v207, %v239
    %v242 = vmul.f32 %v234, %v240
    %v243 = vmul.f32 %v235, %v240
    %v245 = vlaneseq
    %v246 = vshrl.u32 %v245, 7
    %v247 = vsub.s32 0, %v246
    %v248 = vrot.slane %v208, %v247
    %v250 = vadd.f32 %v242, %v248
    %v251 = vadd.f32 %v243, %v248
    %252 = vst.msk [vmem:[%s7] sm:$0xff] %vm60, %v250
    %253 = vst.msk [vmem:[%s7 + $0x8] sm:$0xff] %vm60, %v251
  $region37: #{_lambda_.9} parent=0 // pred_fallthru
    _
  // Predicated region
  $region38: #{_lambda_.9} parent=0 // pred_check
    _
  $region39: #{_lambda_.9} parent=0 // pred_check_branch
    %255 = sbr.rel (0) target = $region41
  $region40: #{_lambda_.9} parent=0 // pred_region
    _
  $region41: #{_lambda_.9} parent=0 // pred_fallthru
    _
  // Predicated region
  $region42: #{_lambda_.9} parent=0 // pred_check
    _
  $region43: #{_lambda_.9} parent=0 // pred_check_branch
    %257 = sbr.rel (0) target = $region45
  $region44: #{_lambda_.9} parent=0 // pred_region
    _
  $region45: #{_lambda_.9} parent=0 // pred_fallthru
    _

// kernel: _lambda_.7
$region0: #{_lambda_.7}
  #allocation0 [shape = 'u32[]', space=smem, size = 0x4, offset = 0x4, fixed_abs, tag = 'smem constant byte address 0x4 - core index']
  #allocation1 [shape = 'u32[144,128]{1,0:T(1,128)}', space=vmem, size = 0x12000, scoped, tag = 'internal scratch']
  #allocation2 [shape = 'f32[8,32]{1,0:T(8,128)}', space=vmem, size = 0x1000, scoped, tag = 'scratch operand']
  %s0 = inlined_call_operand.vmem [shape: f32[2,8,32], index: 0, kind: input, shape index: {}, may-alias: {0,1}]
  %s1 = inlined_call_operand.vmem [shape: f32[2,8,32], index: 1, kind: input, shape index: {}, may-alias: {0,1}]
  %s2 = inlined_call_operand.vmem [shape: bf16[32,32], index: 2, kind: input, shape index: {}]
  %s3 = inlined_call_operand.vmem [shape: f32[1,32], index: 3, kind: input, shape index: {}]
  %s4 = inlined_call_operand.vmem [shape: bf16[32,64], index: 4, kind: input, shape index: {}]
  %s5 = inlined_call_operand.vmem [shape: f32[1,64], index: 5, kind: input, shape index: {}]
  %s6 = inlined_call_operand.vmem [shape: bf16[32,32], index: 6, kind: input, shape index: {}]
  %s7 = inlined_call_operand.vmem [shape: f32[1,32], index: 7, kind: input, shape index: {}]
  %s8 = inlined_call_operand.vmem [shape: f32[1,32], index: 8, kind: input, shape index: {}]
  %s9 = inlined_call_operand.vmem [shape: f32[1,32], index: 9, kind: input, shape index: {}]
  %s10 = inlined_call_operand.vmem [shape: f32[2,8,32], index: 10, kind: output, shape index: {}]
  %s11 = sld [smem:[#allocation0]]
  $region73: #{_lambda_.7} parent=0
    _
  %s13 = ssub.s32 1, %s11
  %s14 = scalar_select 0, %s13, %s11
  loop: start=0, step=1, limit=4
  $region2: #{_lambda_.7} parent=0 // loop_pre_header
    _
  $region3: #{_lambda_.7} parent=0 // loop_header
    %s16 = sphi 0, %s20
    %p17 = scmp.ge.s32.totalorder %s16, 4
    %s23 = sphi 0, %s35
    %s24 = sphi 0, %s31
    %s25 = sphi 0, %s23
    %s26 = sphi 0, %s24
    %s27 = sphi 0, %s25
    %s28 = sphi 0, %s26
    %s40 = sphi 0, %s42
    %s43 = sphi 0, %s40
    %s44 = sphi 0, %s43
    %s60 = sphi 0, %s44
    %s66 = sphi 0, %s68
    %s69 = sphi 0, %s66
    %s70 = sphi 0, %s69
    %s86 = sphi 0, %s70
    %s90 = sphi 0, %s90
    %s92 = sphi 0, %s90
    %s93 = sphi 0, %s92
    %s107 = sphi 0, %s93
    %s111 = sphi 0, %s111
    %s113 = sphi 0, %s111
    %s114 = sphi 0, %s113
    %s128 = sphi 0, %s114
    %s132 = sphi 0, %s132
    %s134 = sphi 0, %s132
    %s135 = sphi 0, %s134
    %s149 = sphi 0, %s135
    %s153 = sphi 0, %s153
    %s155 = sphi 0, %s153
    %s156 = sphi 0, %s155
    %s170 = sphi 0, %s156
    %s174 = sphi 0, %s174
    %s176 = sphi 0, %s174
    %s177 = sphi 0, %s176
    %s191 = sphi 0, %s177
    %s195 = sphi 0, %s195
    %s197 = sphi 0, %s195
    %s198 = sphi 0, %s197
    %s212 = sphi 0, %s198
    %s216 = sphi 0, %s216
    %s218 = sphi 0, %s216
    %s219 = sphi 0, %s218
    %s233 = sphi 0, %s219
    %s237 = sphi 0, %s237
    %s239 = sphi 0, %s237
    %s240 = sphi 0, %s239
    %s254 = sphi 0, %s240
    %s262 = sphi 0, %s264
    %s265 = sphi 0, %s262
    %s266 = sphi 0, %s265
    %s282 = sphi 0, %s266
  $region4: #{_lambda_.7} parent=0 // loop_header_branch
    %19 = sbr.rel (%p17) target = $region8
  $region5: #{_lambda_.7} parent=0 // loop_body
    %s21 = ssub.s32 %s16, 1
    %s22 = ssub.s32 %s16, 2
    %s29 = sadd.s32 1, %s24
    %p30 = scmp.ge.s32.totalorder %s29, 1
    %s31 = scalar_select %p30, 0, %s29
    %s32 = sadd.s32 1, %s23
    %s33 = scalar_select %p30, %s32, %s23
    %p34 = scmp.ge.s32.totalorder %s33, 2
    %s35 = scalar_select %p34, 0, %s33
    %s36 = ssub.s32 %s23, %s35
    %s37 = ssub.s32 %s24, %s31
    %s38 = sor.u32 %s36, %s37
    %p39 = scmp.eq.s32.totalorder %s38, 0
    %s41 = sadd.s32 %s40, 1
    %s42 = scalar_select %p39, %s40, %s41
    %p45 = pneg %p39
    %p46 = scmp.eq.s32.totalorder %s16, 1
    %p47 = por %p45, %p46
    %p48 = scmp.ne.s32.totalorder %s40, %s43
    %p49 = scmp.eq.s32.totalorder %s16, 0
    %p50 = por %p48, %p49
    %p51 = scmp.ne.s32.totalorder %s40, %s43
    %p52 = scmp.eq.s32.totalorder %s21, 1
    %p53 = por %p51, %p52
    %p54 = scmp.ne.s32.totalorder %s43, %s44
    %p55 = scmp.eq.s32.totalorder %s21, 0
    %p56 = por %p54, %p55
    %p57 = scmp.ne.s32.totalorder %s43, %s44
    %p58 = scmp.eq.s32.totalorder %s22, 1
    %p59 = por %p57, %p58
    %p61 = scmp.ne.s32.totalorder %s44, %s60
    %p62 = scmp.eq.s32.totalorder %s22, 0
    %p63 = por %p61, %p62
    %s64 = ssub.s32 %s23, %s35
    %p65 = scmp.eq.s32.totalorder %s64, 0
    %s67 = sadd.s32 %s66, 1
    %s68 = scalar_select %p65, %s66, %s67
    %p71 = pneg %p65
    %p72 = scmp.eq.s32.totalorder %s16, 1
    %p73 = por %p71, %p72
    %p74 = scmp.ne.s32.totalorder %s66, %s69
    %p75 = scmp.eq.s32.totalorder %s16, 0
    %p76 = por %p74, %p75
    %p77 = scmp.ne.s32.totalorder %s66, %s69
    %p78 = scmp.eq.s32.totalorder %s21, 1
    %p79 = por %p77, %p78
    %p80 = scmp.ne.s32.totalorder %s69, %s70
    %p81 = scmp.eq.s32.totalorder %s21, 0
    %p82 = por %p80, %p81
    %p83 = scmp.ne.s32.totalorder %s69, %s70
    %p84 = scmp.eq.s32.totalorder %s22, 1
    %p85 = por %p83, %p84
    %p87 = scmp.ne.s32.totalorder %s70, %s86
    %p88 = scmp.eq.s32.totalorder %s22, 0
    %p89 = por %p87, %p88
    %s91 = sadd.s32 %s90, 1
    %p94 = scmp.eq.s32.totalorder %s16, 1
    %p95 = scmp.ne.s32.totalorder %s90, %s92
    %p96 = scmp.eq.s32.totalorder %s16, 0
    %p97 = por %p95, %p96
    %p98 = scmp.ne.s32.totalorder %s90, %s92
    %p99 = scmp.eq.s32.totalorder %s21, 1
    %p100 = por %p98, %p99
    %p101 = scmp.ne.s32.totalorder %s92, %s93
    %p102 = scmp.eq.s32.totalorder %s21, 0
    %p103 = por %p101, %p102
    %p104 = scmp.ne.s32.totalorder %s92, %s93
    %p105 = scmp.eq.s32.totalorder %s22, 1
    %p106 = por %p104, %p105
    %p108 = scmp.ne.s32.totalorder %s93, %s107
    %p109 = scmp.eq.s32.totalorder %s22, 0
    %p110 = por %p108, %p109
    %s112 = sadd.s32 %s111, 1
    %p115 = scmp.eq.s32.totalorder %s16, 1
    %p116 = scmp.ne.s32.totalorder %s111, %s113
    %p117 = scmp.eq.s32.totalorder %s16, 0
    %p118 = por %p116, %p117
    %p119 = scmp.ne.s32.totalorder %s111, %s113
    %p120 = scmp.eq.s32.totalorder %s21, 1
    %p121 = por %p119, %p120
    %p122 = scmp.ne.s32.totalorder %s113, %s114
    %p123 = scmp.eq.s32.totalorder %s21, 0
    %p124 = por %p122, %p123
    %p125 = scmp.ne.s32.totalorder %s113, %s114
    %p126 = scmp.eq.s32.totalorder %s22, 1
    %p127 = por %p125, %p126
    %p129 = scmp.ne.s32.totalorder %s114, %s128
    %p130 = scmp.eq.s32.totalorder %s22, 0
    %p131 = por %p129, %p130
    %s133 = sadd.s32 %s132, 1
    %p136 = scmp.eq.s32.totalorder %s16, 1
    %p137 = scmp.ne.s32.totalorder %s132, %s134
    %p138 = scmp.eq.s32.totalorder %s16, 0
    %p139 = por %p137, %p138
    %p140 = scmp.ne.s32.totalorder %s132, %s134
    %p141 = scmp.eq.s32.totalorder %s21, 1
    %p142 = por %p140, %p141
    %p143 = scmp.ne.s32.totalorder %s134, %s135
    %p144 = scmp.eq.s32.totalorder %s21, 0
    %p145 = por %p143, %p144
    %p146 = scmp.ne.s32.totalorder %s134, %s135
    %p147 = scmp.eq.s32.totalorder %s22, 1
    %p148 = por %p146, %p147
    %p150 = scmp.ne.s32.totalorder %s135, %s149
    %p151 = scmp.eq.s32.totalorder %s22, 0
    %p152 = por %p150, %p151
    %s154 = sadd.s32 %s153, 1
    %p157 = scmp.eq.s32.totalorder %s16, 1
    %p158 = scmp.ne.s32.totalorder %s153, %s155
    %p159 = scmp.eq.s32.totalorder %s16, 0
    %p160 = por %p158, %p159
    %p161 = scmp.ne.s32.totalorder %s153, %s155
    %p162 = scmp.eq.s32.totalorder %s21, 1
    %p163 = por %p161, %p162
    %p164 = scmp.ne.s32.totalorder %s155, %s156
    %p165 = scmp.eq.s32.totalorder %s21, 0
    %p166 = por %p164, %p165
    %p167 = scmp.ne.s32.totalorder %s155, %s156
    %p168 = scmp.eq.s32.totalorder %s22, 1
    %p169 = por %p167, %p168
    %p171 = scmp.ne.s32.totalorder %s156, %s170
    %p172 = scmp.eq.s32.totalorder %s22, 0
    %p173 = por %p171, %p172
    %s175 = sadd.s32 %s174, 1
    %p178 = scmp.eq.s32.totalorder %s16, 1
    %p179 = scmp.ne.s32.totalorder %s174, %s176
    %p180 = scmp.eq.s32.totalorder %s16, 0
    %p181 = por %p179, %p180
    %p182 = scmp.ne.s32.totalorder %s174, %s176
    %p183 = scmp.eq.s32.totalorder %s21, 1
    %p184 = por %p182, %p183
    %p185 = scmp.ne.s32.totalorder %s176, %s177
    %p186 = scmp.eq.s32.totalorder %s21, 0
    %p187 = por %p185, %p186
    %p188 = scmp.ne.s32.totalorder %s176, %s177
    %p189 = scmp.eq.s32.totalorder %s22, 1
    %p190 = por %p188, %p189
    %p192 = scmp.ne.s32.totalorder %s177, %s191
    %p193 = scmp.eq.s32.totalorder %s22, 0
    %p194 = por %p192, %p193
    %s196 = sadd.s32 %s195, 1
    %p199 = scmp.eq.s32.totalorder %s16, 1
    %p200 = scmp.ne.s32.totalorder %s195, %s197
    %p201 = scmp.eq.s32.totalorder %s16, 0
    %p202 = por %p200, %p201
    %p203 = scmp.ne.s32.totalorder %s195, %s197
    %p204 = scmp.eq.s32.totalorder %s21, 1
    %p205 = por %p203, %p204
    %p206 = scmp.ne.s32.totalorder %s197, %s198
    %p207 = scmp.eq.s32.totalorder %s21, 0
    %p208 = por %p206, %p207
    %p209 = scmp.ne.s32.totalorder %s197, %s198
    %p210 = scmp.eq.s32.totalorder %s22, 1
    %p211 = por %p209, %p210
    %p213 = scmp.ne.s32.totalorder %s198, %s212
    %p214 = scmp.eq.s32.totalorder %s22, 0
    %p215 = por %p213, %p214
    %s217 = sadd.s32 %s216, 1
    %p220 = scmp.eq.s32.totalorder %s16, 1
    %p221 = scmp.ne.s32.totalorder %s216, %s218
    %p222 = scmp.eq.s32.totalorder %s16, 0
    %p223 = por %p221, %p222
    %p224 = scmp.ne.s32.totalorder %s216, %s218
    %p225 = scmp.eq.s32.totalorder %s21, 1
    %p226 = por %p224, %p225
    %p227 = scmp.ne.s32.totalorder %s218, %s219
    %p228 = scmp.eq.s32.totalorder %s21, 0
    %p229 = por %p227, %p228
    %p230 = scmp.ne.s32.totalorder %s218, %s219
    %p231 = scmp.eq.s32.totalorder %s22, 1
    %p232 = por %p230, %p231
    %p234 = scmp.ne.s32.totalorder %s219, %s233
    %p235 = scmp.eq.s32.totalorder %s22, 0
    %p236 = por %p234, %p235
    %s238 = sadd.s32 %s237, 1
    %p241 = scmp.eq.s32.totalorder %s16, 1
    %p242 = scmp.ne.s32.totalorder %s237, %s239
    %p243 = scmp.eq.s32.totalorder %s16, 0
    %p244 = por %p242, %p243
    %p245 = scmp.ne.s32.totalorder %s237, %s239
    %p246 = scmp.eq.s32.totalorder %s21, 1
    %p247 = por %p245, %p246
    %p248 = scmp.ne.s32.totalorder %s239, %s240
    %p249 = scmp.eq.s32.totalorder %s21, 0
    %p250 = por %p248, %p249
    %p251 = scmp.ne.s32.totalorder %s239, %s240
    %p252 = scmp.eq.s32.totalorder %s22, 1
    %p253 = por %p251, %p252
    %p255 = scmp.ne.s32.totalorder %s240, %s254
    %p256 = scmp.eq.s32.totalorder %s22, 0
    %p257 = por %p255, %p256
    %s258 = ssub.s32 %s23, %s35
    %s259 = ssub.s32 %s24, %s31
    %s260 = sor.u32 %s258, %s259
    %p261 = scmp.eq.s32.totalorder %s260, 0
    %s263 = sadd.s32 %s262, 1
    %s264 = scalar_select %p261, %s262, %s263
    %p267 = pneg %p261
    %p268 = scmp.eq.s32.totalorder %s16, 1
    %p269 = por %p267, %p268
    %p270 = scmp.ne.s32.totalorder %s262, %s265
    %p271 = scmp.eq.s32.totalorder %s16, 0
    %p272 = por %p270, %p271
    %p273 = scmp.ne.s32.totalorder %s262, %s265
    %p274 = scmp.eq.s32.totalorder %s21, 1
    %p275 = por %p273, %p274
    %p276 = scmp.ne.s32.totalorder %s265, %s266
    %p277 = scmp.eq.s32.totalorder %s21, 0
    %p278 = por %p276, %p277
    %p279 = scmp.ne.s32.totalorder %s265, %s266
    %p280 = scmp.eq.s32.totalorder %s22, 1
    %p281 = por %p279, %p280
    %p283 = scmp.ne.s32.totalorder %s266, %s282
    %p284 = scmp.eq.s32.totalorder %s22, 0
    %p285 = por %p283, %p284
    %p286 = scmp.le.s32.totalorder 1, %s16
    %p287 = scmp.lt.s32.totalorder %s16, 3
    %p288 = pnand %p286, %p287
    %p289 = pneg %p288
    // Predicated region
    $region9: #{_lambda_.7} parent=5 // pred_check
      _
    $region10: #{_lambda_.7} parent=5 // pred_check_branch
      %291 = sbr.rel (%p288) target = $region12
    $region11: #{_lambda_.7} parent=5 // pred_region
      %s292 = ssub.s32 %s16, 1
      // Predicated region
      $region13: #{_lambda_.7} parent=11 // pred_check
        %p293 = pneg %p103
      $region14: #{_lambda_.7} parent=11 // pred_check_branch
        %295 = sbr.rel (%p293) target = $region16
      $region15: #{_lambda_.7} parent=11 // pred_region
        _
      $region16: #{_lambda_.7} parent=11 // pred_fallthru
        _
      // Predicated region
      $region17: #{_lambda_.7} parent=11 // pred_check
        %p296 = pneg %p124
      $region18: #{_lambda_.7} parent=11 // pred_check_branch
        %298 = sbr.rel (%p296) target = $region20
      $region19: #{_lambda_.7} parent=11 // pred_region
        _
      $region20: #{_lambda_.7} parent=11 // pred_fallthru
        _
      // Predicated region
      $region21: #{_lambda_.7} parent=11 // pred_check
        %p299 = pneg %p145
      $region22: #{_lambda_.7} parent=11 // pred_check_branch
        %301 = sbr.rel (%p299) target = $region24
      $region23: #{_lambda_.7} parent=11 // pred_region
        _
      $region24: #{_lambda_.7} parent=11 // pred_fallthru
        _
      // Predicated region
      $region25: #{_lambda_.7} parent=11 // pred_check
        %p302 = pneg %p166
      $region26: #{_lambda_.7} parent=11 // pred_check_branch
        %304 = sbr.rel (%p302) target = $region28
      $region27: #{_lambda_.7} parent=11 // pred_region
        _
      $region28: #{_lambda_.7} parent=11 // pred_fallthru
        _
      // Predicated region
      $region29: #{_lambda_.7} parent=11 // pred_check
        %p305 = pneg %p187
      $region30: #{_lambda_.7} parent=11 // pred_check_branch
        %307 = sbr.rel (%p305) target = $region32
      $region31: #{_lambda_.7} parent=11 // pred_region
        _
      $region32: #{_lambda_.7} parent=11 // pred_fallthru
        _
      // Predicated region
      $region33: #{_lambda_.7} parent=11 // pred_check
        %p308 = pneg %p208
      $region34: #{_lambda_.7} parent=11 // pred_check_branch
        %310 = sbr.rel (%p308) target = $region36
      $region35: #{_lambda_.7} parent=11 // pred_region
        _
      $region36: #{_lambda_.7} parent=11 // pred_fallthru
        _
      // Predicated region
      $region37: #{_lambda_.7} parent=11 // pred_check
        %p311 = pneg %p229
      $region38: #{_lambda_.7} parent=11 // pred_check_branch
        %313 = sbr.rel (%p311) target = $region40
      $region39: #{_lambda_.7} parent=11 // pred_region
        _
      $region40: #{_lambda_.7} parent=11 // pred_fallthru
        _
      // Predicated region
      $region41: #{_lambda_.7} parent=11 // pred_check
        %p314 = pneg %p250
      $region42: #{_lambda_.7} parent=11 // pred_check_branch
        %316 = sbr.rel (%p314) target = $region44
      $region43: #{_lambda_.7} parent=11 // pred_region
        _
      $region44: #{_lambda_.7} parent=11 // pred_fallthru
        _
    $region12: #{_lambda_.7} parent=5 // pred_fallthru
      _
    %p317 = scmp.lt.s32.totalorder %s16, 2
    // Predicated region
    $region45: #{_lambda_.7} parent=5 // pred_check
      %p318 = pneg %p317
    $region46: #{_lambda_.7} parent=5 // pred_check_branch
      %320 = sbr.rel (%p318) target = $region48
    $region47: #{_lambda_.7} parent=5 // pred_region
      // Predicated region
      $region49: #{_lambda_.7} parent=47 // pred_check
        %p321 = pneg %p50
      $region50: #{_lambda_.7} parent=47 // pred_check_branch
        %323 = sbr.rel (%p321) target = $region52
      $region51: #{_lambda_.7} parent=47 // pred_region
        %p324 = scmp.lt.s32.totalorder %s23, 1
        %s325 = scalar_select %p324, %s23, 1
        %p326 = scmp.lt.s32.totalorder %s24, 0
        %s327 = scalar_select %p326, %s24, 0
        %s328 = sadd.s32 %s327, %s325
        %s329 = smul.addr %s328, 8
        %s330 = scalar_lea.vmem %s0, %s329
      $region52: #{_lambda_.7} parent=47 // pred_fallthru
        _
      // Predicated region
      $region53: #{_lambda_.7} parent=47 // pred_check
        %p331 = pneg %p76
      $region54: #{_lambda_.7} parent=47 // pred_check_branch
        %333 = sbr.rel (%p331) target = $region56
      $region55: #{_lambda_.7} parent=47 // pred_region
        %p334 = scmp.lt.s32.totalorder %s23, 1
        %s335 = scalar_select %p334, %s23, 1
        %s336 = smul.addr %s335, 8
        %s337 = scalar_lea.vmem %s1, %s336
      $region56: #{_lambda_.7} parent=47 // pred_fallthru
        _
    $region48: #{_lambda_.7} parent=5 // pred_fallthru
      _
    %p338 = scmp.le.s32.totalorder 1, %s16
    %p339 = scmp.lt.s32.totalorder %s16, 3
    %p340 = pnand %p338, %p339
    %p341 = pneg %p340
    // Predicated region
    $region57: #{_lambda_.7} parent=5 // pred_check
      _
    $region58: #{_lambda_.7} parent=5 // pred_check_branch
      %343 = sbr.rel (%p340) target = $region60
    $region59: #{_lambda_.7} parent=5 // pred_region
      %s344 = ssub.s32 %s16, 1
      %p345 = scmp.lt.s32.totalorder %s25, 1
      %s346 = scalar_select %p345, %s25, 1
      %p347 = scmp.lt.s32.totalorder %s26, 0
      %s348 = scalar_select %p347, %s26, 0
      %s349 = sadd.s32 %s348, %s346
      %s350 = smul.addr %s349, 8
      %s351 = scalar_lea.vmem %s0, %s350
      %p352 = pneg %p56
      %p353 = pneg %p53
      %p354 = scmp.lt.s32.totalorder %s25, 1
      %s355 = scalar_select %p354, %s25, 1
      %s356 = smul.addr %s355, 8
      %s357 = scalar_lea.vmem %s1, %s356
      %p358 = pneg %p82
      %p359 = pneg %p79
      %p360 = pneg %p103
      %p361 = pneg %p100
      %p362 = pneg %p124
      %p363 = pneg %p121
      %p364 = pneg %p145
      %p365 = pneg %p142
      %p366 = pneg %p166
      %p367 = pneg %p163
      %p368 = pneg %p187
      %p369 = pneg %p184
      %p370 = pneg %p208
      %p371 = pneg %p205
      %p372 = pneg %p229
      %p373 = pneg %p226
      %p374 = pneg %p250
      %p375 = pneg %p247
      %p376 = pneg %p278
      %p377 = pneg %p275
      %p378 = scmp.lt.s32.totalorder %s25, 1
      %s379 = scalar_select %p378, %s25, 1
      %p380 = scmp.lt.s32.totalorder %s26, 0
      %s381 = scalar_select %p380, %s26, 0
      %s382 = sadd.s32 %s381, %s379
      %s383 = smul.addr %s382, 8
      %s384 = scalar_lea.vmem %s10, %s383
      %p385 = scmp.lt.s32.totalorder %s25, 1
      %s386 = scalar_select %p385, %s25, 1
      %p387 = scmp.lt.s32.totalorder %s26, 0
      %s388 = scalar_select %p387, %s26, 0
      %s389 = sadd.s32 %s388, %s386
      %s390 = smul.addr %s389, 8
      %s391 = scalar_lea.vmem %s0, %s390
      %p392 = scmp.lt.s32.totalorder %s25, 1
      %s393 = scalar_select %p392, %s25, 1
      %s394 = smul.addr %s393, 8
      %s395 = scalar_lea.vmem %s1, %s394
      %p396 = scmp.lt.s32.totalorder %s25, 1
      %s397 = scalar_select %p396, %s25, 1
      %p398 = scmp.lt.s32.totalorder %s26, 0
      %s399 = scalar_select %p398, %s26, 0
      %s400 = sadd.s32 %s399, %s397
      %s401 = smul.addr %s400, 8
      %s402 = scalar_lea.vmem %s10, %s401
      %v404 = vld [vmem:[%s391] sm:$0xff]
      %v405 = vld [vmem:[%s395] sm:$0xff]
      %v406 = vpack.c.bf16 %v404, %v404
      %v407 = vld [vmem:[%s2] sm:$0xf]
      %v408 = vld [vmem:[%s2 + $0x4] sm:$0xf]
      %v409 = vld [vmem:[%s2 + $0x8] sm:$0xf]
      %v410 = vld [vmem:[%s2 + $0xc] sm:$0xf]
      %v411 = vld [vmem:[%s3] sm:$0x1]
      %v413 = vlaneseq
      %v414 = vshrl.u32 %v413, 7
      %v415 = vsub.s32 0, %v414
      %v416 = vrot.slane %v411, %v415
      %v422 = vunpack.c.l.b16 %v407
      %v423 = vunpack.c.l.b16 %v408
      %v424 = vunpack.c.l.b16 %v409
      %v425 = vunpack.c.l.b16 %v410
      %v426 = vpack.c.b16 %v423, %v422
      %v427 = vpack.c.b16 %v425, %v424
      %vm430 = vcmask 261120
      %v432 = vsel %vm430, %v406, 0
      %434 = vmatprep.subr.bf16.mxu0 0
      %435 = vmatpush1.bf16.msra.mxu0 %v426
      %436 = vmatprep.subr.bf16.mxu0 0
      %437 = vmatpush1.bf16.msra.mxu0 %v427
      %438 = vmatprep.subr.bf16.mxu0 0
      %439 = vmatpush1.bf16.msra.mxu0 0
      %440 = vmatprep.subr.bf16.mxu0 0
      %441 = vmatpush1.bf16.msra.mxu0 0
      %442 = vmatprep.subr.bf16.mxu0 0
      %443 = vmatpush1.bf16.msra.mxu0 0
      %444 = vmatprep.subr.bf16.mxu0 0
      %445 = vmatpush1.bf16.msra.mxu0 0
      %446 = vmatprep.subr.bf16.mxu0 0
      %447 = vmatpush1.bf16.msra.mxu0 0
      %448 = vmatprep.subr.bf16.mxu0 0
      %449 = vmatpush1.bf16.msra.mxu0 0
      %450 = vmatprep.subr.bf16.mxu0 0
      %451 = vmatpush1.bf16.msra.mxu0 0
      %452 = vmatprep.subr.bf16.mxu0 0
      %453 = vmatpush1.bf16.msra.mxu0 0
      %454 = vmatprep.subr.bf16.mxu0 0
      %455 = vmatpush1.bf16.msra.mxu0 0
      %456 = vmatprep.subr.bf16.mxu0 0
      %457 = vmatpush1.bf16.msra.mxu0 0
      %458 = vmatprep.subr.bf16.mxu0 0
      %459 = vmatpush1.bf16.msra.mxu0 0
      %460 = vmatprep.subr.bf16.mxu0 0
      %461 = vmatpush1.bf16.msra.mxu0 0
      %462 = vmatprep.subr.bf16.mxu0 0
      %463 = vmatpush1.bf16.msra.mxu0 0
      %464 = vmatprep.subr.bf16.mxu0 0
      %465 = vmatpush1.bf16.msra.mxu0 0
      %466 = vmatprep.mubr.bf16.mxu0 0
      %467 = vmatmul.mubr.bf16.gmra.mrb[0].mxu0 %v432
      %v468 = vpop.f32.mrb[0].mxu0
      %v469 = vadd.f32 %v416, %v468
      %v470 = vpop.f32.mrb[0].mxu0
      %v471 = vpop.f32.mrb[0].mxu0
      %v472 = vpop.f32.mrb[0].mxu0
      %473 = vdwg.mxu0
      %v474 = vmul.f32 %v469, 0.35355338
      %v475 = vpack.c.bf16 %v405, %v405
      %v476 = vld [vmem:[%s4] sm:$0xf]
      %v477 = vld [vmem:[%s4 + $0x4] sm:$0xf]
      %v478 = vld [vmem:[%s4 + $0x8] sm:$0xf]
      %v479 = vld [vmem:[%s4 + $0xc] sm:$0xf]
      %v480 = vld [vmem:[%s5] sm:$0x1]
      %v482 = vlaneseq
      %v483 = vshrl.u32 %v482, 7
      %v484 = vsub.s32 0, %v483
      %v485 = vrot.slane %v480, %v484
      %v491 = vunpack.c.l.b16 %v476
      %v492 = vunpack.c.l.b16 %v477
      %v493 = vunpack.c.l.b16 %v478
      %v494 = vunpack.c.l.b16 %v479
      %v495 = vpack.c.b16 %v492, %v491
      %v496 = vpack.c.b16 %v494, %v493
      %v500 = vsel %vm430, %v475, 0
      %502 = vmatprep.subr.bf16.mxu0 0
      %503 = vmatpush1.bf16.msra.mxu0 %v495
      %504 = vmatprep.subr.bf16.mxu0 0
      %505 = vmatpush1.bf16.msra.mxu0 %v496
      %506 = vmatprep.subr.bf16.mxu0 0
      %507 = vmatpush1.bf16.msra.mxu0 0
      %508 = vmatprep.subr.bf16.mxu0 0
      %509 = vmatpush1.bf16.msra.mxu0 0
      %510 = vmatprep.subr.bf16.mxu0 0
      %511 = vmatpush1.bf16.msra.mxu0 0
      %512 = vmatprep.subr.bf16.mxu0 0
      %513 = vmatpush1.bf16.msra.mxu0 0
      %514 = vmatprep.subr.bf16.mxu0 0
      %515 = vmatpush1.bf16.msra.mxu0 0
      %516 = vmatprep.subr.bf16.mxu0 0
      %517 = vmatpush1.bf16.msra.mxu0 0
      %518 = vmatprep.subr.bf16.mxu0 0
      %519 = vmatpush1.bf16.msra.mxu0 0
      %520 = vmatprep.subr.bf16.mxu0 0
      %521 = vmatpush1.bf16.msra.mxu0 0
      %522 = vmatprep.subr.bf16.mxu0 0
      %523 = vmatpush1.bf16.msra.mxu0 0
      %524 = vmatprep.subr.bf16.mxu0 0
      %525 = vmatpush1.bf16.msra.mxu0 0
      %526 = vmatprep.subr.bf16.mxu0 0
      %527 = vmatpush1.bf16.msra.mxu0 0
      %528 = vmatprep.subr.bf16.mxu0 0
      %529 = vmatpush1.bf16.msra.mxu0 0
      %530 = vmatprep.subr.bf16.mxu0 0
      %531 = vmatpush1.bf16.msra.mxu0 0
      %532 = vmatprep.subr.bf16.mxu0 0
      %533 = vmatpush1.bf16.msra.mxu0 0
      %534 = vmatprep.mubr.bf16.mxu0 0
      %535 = vmatmul.mubr.bf16.gmra.mrb[0].mxu0 %v500
      %v536 = vpop.f32.mrb[0].mxu0
      %v537 = vadd.f32 %v485, %v536
      %v538 = vpop.f32.mrb[0].mxu0
      %v539 = vpop.f32.mrb[0].mxu0
      %v540 = vpop.f32.mrb[0].mxu0
      %541 = vdwg.mxu0
      %v542 = vpack.c.bf16 %v474, %v474
      %v543 = vpack.c.bf16 %v537, %v537
      %vm544 = vcmask 64512
      %v546 = vsel %vm544, %v542, 0
      %v549 = vsel %vm544, %v543, 0
      %551 = vmatprep.subr.bf16.mxu0 0
      %552 = vmatpush1.bf16.xpose.msra.mxu0 %v549
      %553 = vmatprep.subr.bf16.mxu0 0
      %554 = vmatpush1.bf16.xpose.msra.mxu0 0
      %555 = vmatprep.subr.bf16.mxu0 0
      %556 = vmatpush1.bf16.xpose.msra.mxu0 0
      %557 = vmatprep.subr.bf16.mxu0 0
      %558 = vmatpush1.bf16.xpose.msra.mxu0 0
      %559 = vmatprep.subr.bf16.mxu0 0
      %560 = vmatpush1.bf16.xpose.msra.mxu0 0
      %561 = vmatprep.subr.bf16.mxu0 0
      %562 = vmatpush1.bf16.xpose.msra.mxu0 0
      %563 = vmatprep.subr.bf16.mxu0 0
      %564 = vmatpush1.bf16.xpose.msra.mxu0 0
      %565 = vmatprep.subr.bf16.mxu0 0
      %566 = vmatpush1.bf16.xpose.msra.mxu0 0
      %567 = vmatprep.subr.bf16.mxu0 0
      %568 = vmatpush1.bf16.xpose.msra.mxu0 0
      %569 = vmatprep.subr.bf16.mxu0 0
      %570 = vmatpush1.bf16.xpose.msra.mxu0 0
      %571 = vmatprep.subr.bf16.mxu0 0
      %572 = vmatpush1.bf16.xpose.msra.mxu0 0
      %573 = vmatprep.subr.bf16.mxu0 0
      %574 = vmatpush1.bf16.xpose.msra.mxu0 0
      %575 = vmatprep.subr.bf16.mxu0 0
      %576 = vmatpush1.bf16.xpose.msra.mxu0 0
      %577 = vmatprep.subr.bf16.mxu0 0
      %578 = vmatpush1.bf16.xpose.msra.mxu0 0
      %579 = vmatprep.subr.bf16.mxu0 0
      %580 = vmatpush1.bf16.xpose.msra.mxu0 0
      %581 = vmatprep.subr.bf16.mxu0 0
      %582 = vmatpush1.bf16.xpose.msra.mxu0 0
      %583 = vmatprep.mubr.bf16.mxu0 0
      %584 = vmatmul.mubr.bf16.gmra.mrb[0].mxu0 %v546
      %v585 = vpop.f32.mrb[0].mxu0
      %v586 = vadd.f32 0.0, %v585
      %v587 = vpop.f32.mrb[0].mxu0
      %v588 = vpop.f32.mrb[0].mxu0
      %v589 = vpop.f32.mrb[0].mxu0
      %590 = vdwg.mxu0
      %v591 = vsel %vm544, %v586, -inf
      %592 = vmax.xlane.f32.xlu0 %v591
      %v593 = vpop.xlane.xlu0 %592
      %v594 = vsub.f32 %v586, %v593
      %v595 = vmul.f32 %v594, 1.442695
      %v596 = vpow.pop %v595
      %v597 = vsel %vm544, %v596, 0.0
      %598 = vadd.xlane.f32.xlu0 %v597
      %v599 = vpop.xlane.xlu0 %598
      %v600 = vrcp.pop %v599
      %v601 = vpack.c.bf16 %v596, %v596
      %603 = vrot.lane.b32.xlu0 %v543, 96
      %v604 = vpop.permute.xlu0 %603
      %v606 = vsel %vm544, %v601, 0
      %vm608 = vcmask 1043456
      %v610 = vsel %vm608, %v604, 0
      %612 = vmatprep.subr.bf16.mxu0 0
      %613 = vmatpush1.bf16.msra.mxu0 %v610
      %614 = vmatprep.subr.bf16.mxu0 0
      %615 = vmatpush1.bf16.msra.mxu0 0
      %616 = vmatprep.subr.bf16.mxu0 0
      %617 = vmatpush1.bf16.msra.mxu0 0
      %618 = vmatprep.subr.bf16.mxu0 0
      %619 = vmatpush1.bf16.msra.mxu0 0
      %620 = vmatprep.subr.bf16.mxu0 0
      %621 = vmatpush1.bf16.msra.mxu0 0
      %622 = vmatprep.subr.bf16.mxu0 0
      %623 = vmatpush1.bf16.msra.mxu0 0
      %624 = vmatprep.subr.bf16.mxu0 0
      %625 = vmatpush1.bf16.msra.mxu0 0
      %626 = vmatprep.subr.bf16.mxu0 0
      %627 = vmatpush1.bf16.msra.mxu0 0
      %628 = vmatprep.subr.bf16.mxu0 0
      %629 = vmatpush1.bf16.msra.mxu0 0
      %630 = vmatprep.subr.bf16.mxu0 0
      %631 = vmatpush1.bf16.msra.mxu0 0
      %632 = vmatprep.subr.bf16.mxu0 0
      %633 = vmatpush1.bf16.msra.mxu0 0
      %634 = vmatprep.subr.bf16.mxu0 0
      %635 = vmatpush1.bf16.msra.mxu0 0
      %636 = vmatprep.subr.bf16.mxu0 0
      %637 = vmatpush1.bf16.msra.mxu0 0
      %638 = vmatprep.subr.bf16.mxu0 0
      %639 = vmatpush1.bf16.msra.mxu0 0
      %640 = vmatprep.subr.bf16.mxu0 0
      %641 = vmatpush1.bf16.msra.mxu0 0
      %642 = vmatprep.subr.bf16.mxu0 0
      %643 = vmatpush1.bf16.msra.mxu0 0
      %644 = vmatprep.mubr.bf16.mxu0 0
      %645 = vmatmul.mubr.bf16.gmra.mrb[0].mxu0 %v606
      %v646 = vpop.f32.mrb[0].mxu0
      %v647 = vadd.f32 0.0, %v646
      %v648 = vpop.f32.mrb[0].mxu0
      %v649 = vpop.f32.mrb[0].mxu0
      %v650 = vpop.f32.mrb[0].mxu0
      %651 = vdwg.mxu0
      %v652 = vmul.f32 %v647, %v600
      %653 = vst.msk [vmem:[#allocation2] sm:$0xff] %vm544, %v652
      %655 = vrot.lane.b32.xlu0 %v542, 120
      %v656 = vpop.permute.xlu0 %655
      %657 = vrot.lane.b32.xlu0 %v543, 120
      %v658 = vpop.permute.xlu0 %657
      %v660 = vsel %vm544, %v656, 0
      %v663 = vsel %vm544, %v658, 0
      %665 = vmatprep.subr.bf16.mxu0 0
      %666 = vmatpush1.bf16.xpose.msra.mxu0 %v663
      %667 = vmatprep.subr.bf16.mxu0 0
      %668 = vmatpush1.bf16.xpose.msra.mxu0 0
      %669 = vmatprep.subr.bf16.mxu0 0
      %670 = vmatpush1.bf16.xpose.msra.mxu0 0
      %671 = vmatprep.subr.bf16.mxu0 0
      %672 = vmatpush1.bf16.xpose.msra.mxu0 0
      %673 = vmatprep.subr.bf16.mxu0 0
      %674 = vmatpush1.bf16.xpose.msra.mxu0 0
      %675 = vmatprep.subr.bf16.mxu0 0
      %676 = vmatpush1.bf16.xpose.msra.mxu0 0
      %677 = vmatprep.subr.bf16.mxu0 0
      %678 = vmatpush1.bf16.xpose.msra.mxu0 0
      %679 = vmatprep.subr.bf16.mxu0 0
      %680 = vmatpush1.bf16.xpose.msra.mxu0 0
      %681 = vmatprep.subr.bf16.mxu0 0
      %682 = vmatpush1.bf16.xpose.msra.mxu0 0
      %683 = vmatprep.subr.bf16.mxu0 0
      %684 = vmatpush1.bf16.xpose.msra.mxu0 0
      %685 = vmatprep.subr.bf16.mxu0 0
      %686 = vmatpush1.bf16.xpose.msra.mxu0 0
      %687 = vmatprep.subr.bf16.mxu0 0
      %688 = vmatpush1.bf16.xpose.msra.mxu0 0
      %689 = vmatprep.subr.bf16.mxu0 0
      %690 = vmatpush1.bf16.xpose.msra.mxu0 0
      %691 = vmatprep.subr.bf16.mxu0 0
      %692 = vmatpush1.bf16.xpose.msra.mxu0 0
      %693 = vmatprep.subr.bf16.mxu0 0
      %694 = vmatpush1.bf16.xpose.msra.mxu0 0
      %695 = vmatprep.subr.bf16.mxu0 0
      %696 = vmatpush1.bf16.xpose.msra.mxu0 0
      %697 = vmatprep.mubr.bf16.mxu0 0
      %698 = vmatmul.mubr.bf16.gmra.mrb[0].mxu0 %v660
      %v699 = vpop.f32.mrb[0].mxu0
      %v700 = vadd.f32 0.0, %v699
      %v701 = vpop.f32.mrb[0].mxu0
      %v702 = vpop.f32.mrb[0].mxu0
      %v703 = vpop.f32.mrb[0].mxu0
      %704 = vdwg.mxu0
      %v705 = vsel %vm544, %v700, -inf
      %706 = vmax.xlane.f32.xlu0 %v705
      %v707 = vpop.xlane.xlu0 %706
      %v708 = vsub.f32 %v700, %v707
      %v709 = vmul.f32 %v708, 1.442695
      %v710 = vpow.pop %v709
      %v711 = vsel %vm544, %v710, 0.0
      %712 = vadd.xlane.f32.xlu0 %v711
      %v713 = vpop.xlane.xlu0 %712
      %v714 = vrcp.pop %v713
      %v715 = vpack.c.bf16 %v710, %v710
      %716 = vrot.lane.b32.xlu0 %v543, 88
      %v717 = vpop.permute.xlu0 %716
      %v719 = vsel %vm544, %v715, 0
      %v722 = vsel %vm608, %v717, 0
      %724 = vmatprep.subr.bf16.mxu0 0
      %725 = vmatpush1.bf16.msra.mxu0 %v722
      %726 = vmatprep.subr.bf16.mxu0 0
      %727 = vmatpush1.bf16.msra.mxu0 0
      %728 = vmatprep.subr.bf16.mxu0 0
      %729 = vmatpush1.bf16.msra.mxu0 0
      %730 = vmatprep.subr.bf16.mxu0 0
      %731 = vmatpush1.bf16.msra.mxu0 0
      %732 = vmatprep.subr.bf16.mxu0 0
      %733 = vmatpush1.bf16.msra.mxu0 0
      %734 = vmatprep.subr.bf16.mxu0 0
      %735 = vmatpush1.bf16.msra.mxu0 0
      %736 = vmatprep.subr.bf16.mxu0 0
      %737 = vmatpush1.bf16.msra.mxu0 0
      %738 = vmatprep.subr.bf16.mxu0 0
      %739 = vmatpush1.bf16.msra.mxu0 0
      %740 = vmatprep.subr.bf16.mxu0 0
      %741 = vmatpush1.bf16.msra.mxu0 0
      %742 = vmatprep.subr.bf16.mxu0 0
      %743 = vmatpush1.bf16.msra.mxu0 0
      %744 = vmatprep.subr.bf16.mxu0 0
      %745 = vmatpush1.bf16.msra.mxu0 0
      %746 = vmatprep.subr.bf16.mxu0 0
      %747 = vmatpush1.bf16.msra.mxu0 0
      %748 = vmatprep.subr.bf16.mxu0 0
      %749 = vmatpush1.bf16.msra.mxu0 0
      %750 = vmatprep.subr.bf16.mxu0 0
      %751 = vmatpush1.bf16.msra.mxu0 0
      %752 = vmatprep.subr.bf16.mxu0 0
      %753 = vmatpush1.bf16.msra.mxu0 0
      %754 = vmatprep.subr.bf16.mxu0 0
      %755 = vmatpush1.bf16.msra.mxu0 0
      %756 = vmatprep.mubr.bf16.mxu0 0
      %757 = vmatmul.mubr.bf16.gmra.mrb[0].mxu0 %v719
      %v758 = vpop.f32.mrb[0].mxu0
      %v759 = vadd.f32 0.0, %v758
      %v760 = vpop.f32.mrb[0].mxu0
      %v761 = vpop.f32.mrb[0].mxu0
      %v762 = vpop.f32.mrb[0].mxu0
      %763 = vdwg.mxu0
      %v764 = vmul.f32 %v759, %v714
      %766 = vrot.lane.b32.xlu0 %v764, 8
      %v767 = vpop.permute.xlu0 %766
      %vm769 = vcmask 130112
      %770 = vst.msk [vmem:[#allocation2] sm:$0xff] %vm769, %v767
      %771 = vrot.lane.b32.xlu0 %v542, 112
      %v772 = vpop.permute.xlu0 %771
      %773 = vrot.lane.b32.xlu0 %v543, 112
      %v774 = vpop.permute.xlu0 %773
      %v776 = vsel %vm544, %v772, 0
      %v779 = vsel %vm544, %v774, 0
      %781 = vmatprep.subr.bf16.mxu0 0
      %782 = vmatpush1.bf16.xpose.msra.mxu0 %v779
      %783 = vmatprep.subr.bf16.mxu0 0
      %784 = vmatpush1.bf16.xpose.msra.mxu0 0
      %785 = vmatprep.subr.bf16.mxu0 0
      %786 = vmatpush1.bf16.xpose.msra.mxu0 0
      %787 = vmatprep.subr.bf16.mxu0 0
      %788 = vmatpush1.bf16.xpose.msra.mxu0 0
      %789 = vmatprep.subr.bf16.mxu0 0
      %790 = vmatpush1.bf16.xpose.msra.mxu0 0
      %791 = vmatprep.subr.bf16.mxu0 0
      %792 = vmatpush1.bf16.xpose.msra.mxu0 0
      %793 = vmatprep.subr.bf16.mxu0 0
      %794 = vmatpush1.bf16.xpose.msra.mxu0 0
      %795 = vmatprep.subr.bf16.mxu0 0
      %796 = vmatpush1.bf16.xpose.msra.mxu0 0
      %797 = vmatprep.subr.bf16.mxu0 0
      %798 = vmatpush1.bf16.xpose.msra.mxu0 0
      %799 = vmatprep.subr.bf16.mxu0 0
      %800 = vmatpush1.bf16.xpose.msra.mxu0 0
      %801 = vmatprep.subr.bf16.mxu0 0
      %802 = vmatpush1.bf16.xpose.msra.mxu0 0
      %803 = vmatprep.subr.bf16.mxu0 0
      %804 = vmatpush1.bf16.xpose.msra.mxu0 0
      %805 = vmatprep.subr.bf16.mxu0 0
      %806 = vmatpush1.bf16.xpose.msra.mxu0 0
      %807 = vmatprep.subr.bf16.mxu0 0
      %808 = vmatpush1.bf16.xpose.msra.mxu0 0
      %809 = vmatprep.subr.bf16.mxu0 0
      %810 = vmatpush1.bf16.xpose.msra.mxu0 0
      %811 = vmatprep.subr.bf16.mxu0 0
      %812 = vmatpush1.bf16.xpose.msra.mxu0 0
      %813 = vmatprep.mubr.bf16.mxu0 0
      %814 = vmatmul.mubr.bf16.gmra.mrb[0].mxu0 %v776
      %v815 = vpop.f32.mrb[0].mxu0
      %v816 = vadd.f32 0.0, %v815
      %v817 = vpop.f32.mrb[0].mxu0
      %v818 = vpop.f32.mrb[0].mxu0
      %v819 = vpop.f32.mrb[0].mxu0
      %820 = vdwg.mxu0
      %v821 = vsel %vm544, %v816, -inf
      %822 = vmax.xlane.f32.xlu0 %v821
      %v823 = vpop.xlane.xlu0 %822
      %v824 = vsub.f32 %v816, %v823
      %v825 = vmul.f32 %v824, 1.442695
      %v826 = vpow.pop %v825
      %v827 = vsel %vm544, %v826, 0.0
      %828 = vadd.xlane.f32.xlu0 %v827
      %v829 = vpop.xlane.xlu0 %828
      %v830 = vrcp.pop %v829
      %v831 = vpack.c.bf16 %v826, %v826
      %832 = vrot.lane.b32.xlu0 %v543, 80
      %v833 = vpop.permute.xlu0 %832
      %v835 = vsel %vm544, %v831, 0
      %v838 = vsel %vm608, %v833, 0
      %840 = vmatprep.subr.bf16.mxu0 0
      %841 = vmatpush1.bf16.msra.mxu0 %v838
      %842 = vmatprep.subr.bf16.mxu0 0
      %843 = vmatpush1.bf16.msra.mxu0 0
      %844 = vmatprep.subr.bf16.mxu0 0
      %845 = vmatpush1.bf16.msra.mxu0 0
      %846 = vmatprep.subr.bf16.mxu0 0
      %847 = vmatpush1.bf16.msra.mxu0 0
      %848 = vmatprep.subr.bf16.mxu0 0
      %849 = vmatpush1.bf16.msra.mxu0 0
      %850 = vmatprep.subr.bf16.mxu0 0
      %851 = vmatpush1.bf16.msra.mxu0 0
      %852 = vmatprep.subr.bf16.mxu0 0
      %853 = vmatpush1.bf16.msra.mxu0 0
      %854 = vmatprep.subr.bf16.mxu0 0
      %855 = vmatpush1.bf16.msra.mxu0 0
      %856 = vmatprep.subr.bf16.mxu0 0
      %857 = vmatpush1.bf16.msra.mxu0 0
      %858 = vmatprep.subr.bf16.mxu0 0
      %859 = vmatpush1.bf16.msra.mxu0 0
      %860 = vmatprep.subr.bf16.mxu0 0
      %861 = vmatpush1.bf16.msra.mxu0 0
      %862 = vmatprep.subr.bf16.mxu0 0
      %863 = vmatpush1.bf16.msra.mxu0 0
      %864 = vmatprep.subr.bf16.mxu0 0
      %865 = vmatpush1.bf16.msra.mxu0 0
      %866 = vmatprep.subr.bf16.mxu0 0
      %867 = vmatpush1.bf16.msra.mxu0 0
      %868 = vmatprep.subr.bf16.mxu0 0
      %869 = vmatpush1.bf16.msra.mxu0 0
      %870 = vmatprep.subr.bf16.mxu0 0
      %871 = vmatpush1.bf16.msra.mxu0 0
      %872 = vmatprep.mubr.bf16.mxu0 0
      %873 = vmatmul.mubr.bf16.gmra.mrb[0].mxu0 %v835
      %v874 = vpop.f32.mrb[0].mxu0
      %v875 = vadd.f32 0.0, %v874
      %v876 = vpop.f32.mrb[0].mxu0
      %v877 = vpop.f32.mrb[0].mxu0
      %v878 = vpop.f32.mrb[0].mxu0
      %879 = vdwg.mxu0
      %v880 = vmul.f32 %v875, %v830
      %882 = vrot.lane.b32.xlu0 %v880, 16
      %v883 = vpop.permute.xlu0 %882
      %vm885 = vcmask 195712
      %886 = vst.msk [vmem:[#allocation2] sm:$0xff] %vm885, %v883
      %887 = vrot.lane.b32.xlu0 %v542, 104
      %v888 = vpop.permute.xlu0 %887
      %889 = vrot.lane.b32.xlu0 %v543, 104
      %v890 = vpop.permute.xlu0 %889
      %v892 = vsel %vm544, %v888, 0
      %v895 = vsel %vm544, %v890, 0
      %897 = vmatprep.subr.bf16.mxu0 0
      %898 = vmatpush1.bf16.xpose.msra.mxu0 %v895
      %899 = vmatprep.subr.bf16.mxu0 0
      %900 = vmatpush1.bf16.xpose.msra.mxu0 0
      %901 = vmatprep.subr.bf16.mxu0 0
      %902 = vmatpush1.bf16.xpose.msra.mxu0 0
      %903 = vmatprep.subr.bf16.mxu0 0
      %904 = vmatpush1.bf16.xpose.msra.mxu0 0
      %905 = vmatprep.subr.bf16.mxu0 0
      %906 = vmatpush1.bf16.xpose.msra.mxu0 0
      %907 = vmatprep.subr.bf16.mxu0 0
      %908 = vmatpush1.bf16.xpose.msra.mxu0 0
      %909 = vmatprep.subr.bf16.mxu0 0
      %910 = vmatpush1.bf16.xpose.msra.mxu0 0
      %911 = vmatprep.subr.bf16.mxu0 0
      %912 = vmatpush1.bf16.xpose.msra.mxu0 0
      %913 = vmatprep.subr.bf16.mxu0 0
      %914 = vmatpush1.bf16.xpose.msra.mxu0 0
      %915 = vmatprep.subr.bf16.mxu0 0
      %916 = vmatpush1.bf16.xpose.msra.mxu0 0
      %917 = vmatprep.subr.bf16.mxu0 0
      %918 = vmatpush1.bf16.xpose.msra.mxu0 0
      %919 = vmatprep.subr.bf16.mxu0 0
      %920 = vmatpush1.bf16.xpose.msra.mxu0 0
      %921 = vmatprep.subr.bf16.mxu0 0
      %922 = vmatpush1.bf16.xpose.msra.mxu0 0
      %923 = vmatprep.subr.bf16.mxu0 0
      %924 = vmatpush1.bf16.xpose.msra.mxu0 0
      %925 = vmatprep.subr.bf16.mxu0 0
      %926 = vmatpush1.bf16.xpose.msra.mxu0 0
      %927 = vmatprep.subr.bf16.mxu0 0
      %928 = vmatpush1.bf16.xpose.msra.mxu0 0
      %929 = vmatprep.mubr.bf16.mxu0 0
      %930 = vmatmul.mubr.bf16.gmra.mrb[0].mxu0 %v892
      %v931 = vpop.f32.mrb[0].mxu0
      %v932 = vadd.f32 0.0, %v931
      %v933 = vpop.f32.mrb[0].mxu0
      %v934 = vpop.f32.mrb[0].mxu0
      %v935 = vpop.f32.mrb[0].mxu0
      %936 = vdwg.mxu0
      %v937 = vsel %vm544, %v932, -inf
      %938 = vmax.xlane.f32.xlu0 %v937
      %v939 = vpop.xlane.xlu0 %938
      %v940 = vsub.f32 %v932, %v939
      %v941 = vmul.f32 %v940, 1.442695
      %v942 = vpow.pop %v941
      %v943 = vsel %vm544, %v942, 0.0
      %944 = vadd.xlane.f32.xlu0 %v943
      %v945 = vpop.xlane.xlu0 %944
      %v946 = vrcp.pop %v945
      %v947 = vpack.c.bf16 %v942, %v942
      %948 = vrot.lane.b32.xlu0 %v543, 72
      %v949 = vpop.permute.xlu0 %948
      %v951 = vsel %vm544, %v947, 0
      %v954 = vsel %vm608, %v949, 0
      %956 = vmatprep.subr.bf16.mxu0 0
      %957 = vmatpush1.bf16.msra.mxu0 %v954
      %958 = vmatprep.subr.bf16.mxu0 0
      %959 = vmatpush1.bf16.msra.mxu0 0
      %960 = vmatprep.subr.bf16.mxu0 0
      %961 = vmatpush1.bf16.msra.mxu0 0
      %962 = vmatprep.subr.bf16.mxu0 0
      %963 = vmatpush1.bf16.msra.mxu0 0
      %964 = vmatprep.subr.bf16.mxu0 0
      %965 = vmatpush1.bf16.msra.mxu0 0
      %966 = vmatprep.subr.bf16.mxu0 0
      %967 = vmatpush1.bf16.msra.mxu0 0
      %968 = vmatprep.subr.bf16.mxu0 0
      %969 = vmatpush1.bf16.msra.mxu0 0
      %970 = vmatprep.subr.bf16.mxu0 0
      %971 = vmatpush1.bf16.msra.mxu0 0
      %972 = vmatprep.subr.bf16.mxu0 0
      %973 = vmatpush1.bf16.msra.mxu0 0
      %974 = vmatprep.subr.bf16.mxu0 0
      %975 = vmatpush1.bf16.msra.mxu0 0
      %976 = vmatprep.subr.bf16.mxu0 0
      %977 = vmatpush1.bf16.msra.mxu0 0
      %978 = vmatprep.subr.bf16.mxu0 0
      %979 = vmatpush1.bf16.msra.mxu0 0
      %980 = vmatprep.subr.bf16.mxu0 0
      %981 = vmatpush1.bf16.msra.mxu0 0
      %982 = vmatprep.subr.bf16.mxu0 0
      %983 = vmatpush1.bf16.msra.mxu0 0
      %984 = vmatprep.subr.bf16.mxu0 0
      %985 = vmatpush1.bf16.msra.mxu0 0
      %986 = vmatprep.subr.bf16.mxu0 0
      %987 = vmatpush1.bf16.msra.mxu0 0
      %988 = vmatprep.mubr.bf16.mxu0 0
      %989 = vmatmul.mubr.bf16.gmra.mrb[0].mxu0 %v951
      %v990 = vpop.f32.mrb[0].mxu0
      %v991 = vadd.f32 0.0, %v990
      %v992 = vpop.f32.mrb[0].mxu0
      %v993 = vpop.f32.mrb[0].mxu0
      %v994 = vpop.f32.mrb[0].mxu0
      %995 = vdwg.mxu0
      %v996 = vmul.f32 %v991, %v946
      %998 = vrot.lane.b32.xlu0 %v996, 24
      %v999 = vpop.permute.xlu0 %998
      %vm1001 = vcmask 261312
      %1002 = vst.msk [vmem:[#allocation2] sm:$0xff] %vm1001, %v999
      %v1003 = vld [vmem:[#allocation2] sm:$0xff]
      %v1004 = vpack.c.bf16 %v1003, %v1003
      %v1005 = vld [vmem:[%s6] sm:$0xf]
      %v1006 = vld [vmem:[%s6 + $0x4] sm:$0xf]
      %v1007 = vld [vmem:[%s6 + $0x8] sm:$0xf]
      %v1008 = vld [vmem:[%s6 + $0xc] sm:$0xf]
      %v1009 = vld [vmem:[%s7] sm:$0x1]
      %v1011 = vlaneseq
      %v1012 = vshrl.u32 %v1011, 7
      %v1013 = vsub.s32 0, %v1012
      %v1014 = vrot.slane %v1009, %v1013
      %v1020 = vunpack.c.l.b16 %v1005
      %v1021 = vunpack.c.l.b16 %v1006
      %v1022 = vunpack.c.l.b16 %v1007
      %v1023 = vunpack.c.l.b16 %v1008
      %v1024 = vpack.c.b16 %v1021, %v1020
      %v1025 = vpack.c.b16 %v1023, %v1022
      %v1029 = vsel %vm430, %v1004, 0
      %1031 = vmatprep.subr.bf16.mxu0 0
      %1032 = vmatpush1.bf16.msra.mxu0 %v1024
      %1033 = vmatprep.subr.bf16.mxu0 0
      %1034 = vmatpush1.bf16.msra.mxu0 %v1025
      %1035 = vmatprep.subr.bf16.mxu0 0
      %1036 = vmatpush1.bf16.msra.mxu0 0
      %1037 = vmatprep.subr.bf16.mxu0 0
      %1038 = vmatpush1.bf16.msra.mxu0 0
      %1039 = vmatprep.subr.bf16.mxu0 0
      %1040 = vmatpush1.bf16.msra.mxu0 0
      %1041 = vmatprep.subr.bf16.mxu0 0
      %1042 = vmatpush1.bf16.msra.mxu0 0
      %1043 = vmatprep.subr.bf16.mxu0 0
      %1044 = vmatpush1.bf16.msra.mxu0 0
      %1045 = vmatprep.subr.bf16.mxu0 0
      %1046 = vmatpush1.bf16.msra.mxu0 0
      %1047 = vmatprep.subr.bf16.mxu0 0
      %1048 = vmatpush1.bf16.msra.mxu0 0
      %1049 = vmatprep.subr.bf16.mxu0 0
      %1050 = vmatpush1.bf16.msra.mxu0 0
      %1051 = vmatprep.subr.bf16.mxu0 0
      %1052 = vmatpush1.bf16.msra.mxu0 0
      %1053 = vmatprep.subr.bf16.mxu0 0
      %1054 = vmatpush1.bf16.msra.mxu0 0
      %1055 = vmatprep.subr.bf16.mxu0 0
      %1056 = vmatpush1.bf16.msra.mxu0 0
      %1057 = vmatprep.subr.bf16.mxu0 0
      %1058 = vmatpush1.bf16.msra.mxu0 0
      %1059 = vmatprep.subr.bf16.mxu0 0
      %1060 = vmatpush1.bf16.msra.mxu0 0
      %1061 = vmatprep.subr.bf16.mxu0 0
      %1062 = vmatpush1.bf16.msra.mxu0 0
      %1063 = vmatprep.mubr.bf16.mxu0 0
      %1064 = vmatmul.mubr.bf16.gmra.mrb[0].mxu0 %v1029
      %v1065 = vpop.f32.mrb[0].mxu0
      %v1066 = vadd.f32 %v1014, %v1065
      %v1067 = vpop.f32.mrb[0].mxu0
      %v1068 = vpop.f32.mrb[0].mxu0
      %v1069 = vpop.f32.mrb[0].mxu0
      %1070 = vdwg.mxu0
      %v1071 = vadd.f32 %v404, %v1066
      %v1072 = vld [vmem:[%s8] sm:$0x1]
      %v1073 = vld [vmem:[%s9] sm:$0x1]
      %v1074 = vsel %vm430, %v1071, 0.0
      %1075 = vadd.xlane.f32.xlu0 %v1074
      %v1076 = vpop.xlane.xlu0 %1075
      %v1077 = vrcp.pop 32.0
      %v1078 = vmul.f32 %v1076, %v1077
      %v1079 = vsub.f32 %v1071, %v1078
      %v1080 = vmul.f32 %v1079, %v1079
      %v1081 = vsel %vm430, %v1080, 0.0
      %1082 = vadd.xlane.f32.xlu0 %v1081
      %v1083 = vpop.xlane.xlu0 %1082
      %v1084 = vmul.f32 %v1083, %v1077
      %v1085 = vadd.f32 %v1084, 1e-05
      %v1086 = vrsqrt.pop %v1085
      %v1087 = vmul.f32 %v1079, %v1086
      %v1089 = vlaneseq
      %v1090 = vshrl.u32 %v1089, 7
      %v1091 = vsub.s32 0, %v1090
      %v1092 = vrot.slane %v1072, %v1091
      %v1094 = vmul.f32 %v1087, %v1092
      %v1096 = vlaneseq
      %v1097 = vshrl.u32 %v1096, 7
      %v1098 = vsub.s32 0, %v1097
      %v1099 = vrot.slane %v1073, %v1098
      %v1101 = vadd.f32 %v1094, %v1099
      %1102 = vst.msk [vmem:[%s402] sm:$0xff] %vm430, %v1101
      %p1103 = scmp.lt.s32.totalorder %s25, 1
      %s1104 = scalar_select %p1103, %s25, 1
      %p1105 = scmp.lt.s32.totalorder %s26, 0
      %s1106 = scalar_select %p1105, %s26, 0
      %s1107 = sadd.s32 %s1106, %s1104
      %s1108 = smul.addr %s1107, 8
      %s1109 = scalar_lea.vmem %s10, %s1108
      // Predicated region
      $region61: #{_lambda_.7} parent=59 // pred_check
        %p1110 = pneg %p275
      $region62: #{_lambda_.7} parent=59 // pred_check_branch
        %1112 = sbr.rel (%p1110) target = $region64
      $region63: #{_lambda_.7} parent=59 // pred_region
        _
      $region64: #{_lambda_.7} parent=59 // pred_fallthru
        _
    $region60: #{_lambda_.7} parent=5 // pred_fallthru
      _
    %p1113 = scmp.le.s32.totalorder 2, %s16
    // Predicated region
    $region65: #{_lambda_.7} parent=5 // pred_check
      %p1114 = pneg %p1113
    $region66: #{_lambda_.7} parent=5 // pred_check_branch
      %1116 = sbr.rel (%p1114) target = $region68
    $region67: #{_lambda_.7} parent=5 // pred_region
      %s1117 = ssub.s32 %s16, 2
      // Predicated region
      $region69: #{_lambda_.7} parent=67 // pred_check
        %p1118 = pneg %p281
      $region70: #{_lambda_.7} parent=67 // pred_check_branch
        %1120 = sbr.rel (%p1118) target = $region72
      $region71: #{_lambda_.7} parent=67 // pred_region
        %p1121 = scmp.lt.s32.totalorder %s27, 1
        %s1122 = scalar_select %p1121, %s27, 1
        %p1123 = scmp.lt.s32.totalorder %s28, 0
        %s1124 = scalar_select %p1123, %s28, 0
        %s1125 = sadd.s32 %s1124, %s1122
        %s1126 = smul.addr %s1125, 8
        %s1127 = scalar_lea.vmem %s10, %s1126
      $region72: #{_lambda_.7} parent=67 // pred_fallthru
        _
    $region68: #{_lambda_.7} parent=5 // pred_fallthru
      _
  $region6: #{_lambda_.7} parent=0 // loop_footer
    %s20 = sadd.s32 1, %s16
  $region7: #{_lambda_.7} parent=0 // loop_footer_branch
    %15 = sbr.rel target = $region3
  $region8: #{_lambda_.7} parent=0 // loop_exit
    _

</llo_original>
